<compile_context>
chip_gen: v6e
topology: v6e:2x2x1
jax: 0.10.0
libtpu: 0.0.40
codegen_flags: <defaults>
</compile_context>

<pallas_src>
import functools

import jax
import jax.numpy as jnp
from jax.experimental import pallas as pl
from jax.experimental.pallas import tpu as pltpu


# ----------------------------------------------------------------------------
# Generation-aware tiling / VMEM budget
# ----------------------------------------------------------------------------
@functools.lru_cache(maxsize=1)
def _hw_budget():
    """(max_rows_per_tile, vmem_limit_bytes), generation-aware.

    v5e / v6e have 128 MiB physical VMEM (scoped default is much lower), so we
    use big tiles and raise the scoped limit.  v7x has 64 MiB per TensorCore,
    so keep the 32 MiB budget and rely on >=2 grid steps for both TCs.
    """
    try:
        vmem_cap = pltpu.get_tpu_info().vmem_capacity_bytes
    except Exception:                      # unknown backend: be conservative
        vmem_cap = 64 * 1024 * 1024
    if vmem_cap >= 100 * 1024 * 1024:      # v5e / v6e (128 MiB physical)
        return 8192, 96 * 1024 * 1024
    return 2048, 32 * 1024 * 1024          # v7x (or unknown)


def _round_up(x, m):
    return ((x + m - 1) // m) * m


def _tile_rows(m, max_tile):
    """Balanced row tiling.

    * tm is a multiple of 16 (bf16 sublane tile) so in-kernel leading-dim
      collapses and row slices stay tile-aligned.
    * >=2 grid steps whenever there is enough work (>=32 rows) so v7x's two
      TensorCores both get a shard.
    * tiles are balanced via cdiv instead of padding m up to a multiple of
      max_tile -> padding waste is <16 rows per tile.
    """
    if m < 32:
        ntiles = 1
    else:
        ntiles = max(2, pl.cdiv(m, max_tile))
    tm = _round_up(pl.cdiv(m, ntiles), 16)
    return tm, ntiles * tm


# ----------------------------------------------------------------------------
# Pallas kernels
# ----------------------------------------------------------------------------
def conv_pool_kernel(p_ref, w_ref, b_ref, o_ref):
    """Fused conv-as-GEMM + bias + ReLU + 2x2 max-pool.

    p_ref: (4, TM, K) bf16 im2col patches; the leading axis holds the four
           members of each 2x2 pool window (same output-row index).
    w_ref: (K, Cout) bf16;  b_ref: (1, Cout) f32;  o_ref: (TM, Cout) bf16.

    The quad axis is collapsed into the matmul M dim (one long MXU matmul
    instead of four dependent short-K dots).  The pool is a 3-op tree max over
    the four TM-row slices of the f32 accumulator (TM is a multiple of 16, so
    the collapse and the slices are tile-aligned).  Bias/ReLU are monotone, so
    max-then-(bias,ReLU) == pool of activations.  Epilogue math stays f32.
    """
    tm = o_ref.shape[0]
    k = p_ref.shape[2]
    p = p_ref[...].reshape(4 * tm, k)                     # leading-dim collapse
    acc = jnp.dot(p, w_ref[...], preferred_element_type=jnp.float32)
    m01 = jnp.maximum(acc[0 * tm:1 * tm], acc[1 * tm:2 * tm])
    m23 = jnp.maximum(acc[2 * tm:3 * tm], acc[3 * tm:4 * tm])
    pooled = jnp.maximum(m01, m23)
    o_ref[...] = jnp.maximum(pooled + b_ref[...], 0.0).astype(o_ref.dtype)


def fc_head_kernel(x_ref, w1_ref, b1_ref, w2_ref, b2_ref, w3_ref, b3_ref, o_ref):
    """Fused fc1(ReLU) -> fc2(ReLU) -> fc3; all widths lane-padded to 128.

    Intermediates stay on-chip; bias+ReLU run in f32 on the accumulator and
    only the MXU operands are cast to bf16.
    """
    h = jnp.dot(x_ref[...], w1_ref[...], preferred_element_type=jnp.float32)
    h = jnp.maximum(h + b1_ref[...], 0.0).astype(jnp.bfloat16)
    h = jnp.dot(h, w2_ref[...], preferred_element_type=jnp.float32)
    h = jnp.maximum(h + b2_ref[...], 0.0).astype(jnp.bfloat16)
    out = jnp.dot(h, w3_ref[...], preferred_element_type=jnp.float32) + b3_ref[...]
    o_ref[...] = out.astype(o_ref.dtype)


# ----------------------------------------------------------------------------
# Pallas wrappers (row-tiled, parallel grid)
# ----------------------------------------------------------------------------
def pallas_conv_pool(quads, w, b):
    """quads (4, M, K) bf16 @ w (K, Cout) bf16 + b, ReLU, 2x2-pool -> (M, Cout) bf16."""
    _, m, k = quads.shape
    cout = w.shape[1]
    max_tile, vmem_limit = _hw_budget()
    tm, mpad = _tile_rows(m, max_tile)
    if mpad != m:
        quads = jnp.pad(quads, ((0, 0), (0, mpad - m), (0, 0)))
    cost = pl.CostEstimate(
        flops=2 * 4 * mpad * k * cout,
        transcendentals=0,
        bytes_accessed=4 * mpad * k * 2 + k * cout * 2 + cout * 4 + mpad * cout * 2,
    )
    # TODO(synk): fold wp into the output lane dim (or pad cout) for lane-dense
    # stores; kept (M, Cout) here to avoid an in-kernel sublane->lane relayout.
    out = pl.pallas_call(
        conv_pool_kernel,
        out_shape=jax.ShapeDtypeStruct((mpad, cout), jnp.bfloat16),
        grid_spec=pltpu.PrefetchScalarGridSpec(
            num_scalar_prefetch=0,
            grid=(mpad // tm,),
            in_specs=[
                pl.BlockSpec((4, tm, k), lambda i: (0, i, 0)),
                pl.BlockSpec((k, cout), lambda i: (0, 0)),
                pl.BlockSpec((1, cout), lambda i: (0, 0)),
            ],
            out_specs=pl.BlockSpec((tm, cout), lambda i: (i, 0)),
        ),
        compiler_params=pltpu.CompilerParams(
            dimension_semantics=("parallel",),
            vmem_limit_bytes=vmem_limit,
        ),
        cost_estimate=cost,
    )(quads, w, b)
    return out[:m] if mpad != m else out


def pallas_fc_head(flat, w1, b1, w2, b2, w3, b3):
    """flat (B, 400) bf16 -> (B, 128) f32 lane-padded logits (first 10 cols valid)."""
    bsz, k = flat.shape
    h1, h2, n_out = w1.shape[1], w2.shape[1], w3.shape[1]     # 128 / 128 / 128
    max_tile, vmem_limit = _hw_budget()
    tb, bpad = _tile_rows(bsz, max_tile)
    if bpad != bsz:
        flat = jnp.pad(flat, ((0, bpad - bsz), (0, 0)))
    cost = pl.CostEstimate(
        flops=2 * bpad * (k * h1 + h1 * h2 + h2 * n_out),
        transcendentals=0,
        bytes_accessed=(bpad * k * 2
                        + (k * h1 + h1 * h2 + h2 * n_out) * 2
                        + (h1 + h2 + n_out) * 4
                        + bpad * n_out * 4),
    )
    full = lambda arr: pl.BlockSpec(arr.shape, lambda i: (0, 0))
    out = pl.pallas_call(
        fc_head_kernel,
        out_shape=jax.ShapeDtypeStruct((bpad, n_out), jnp.float32),
        grid_spec=pltpu.PrefetchScalarGridSpec(
            num_scalar_prefetch=0,
            grid=(bpad // tb,),
            in_specs=[
                pl.BlockSpec((tb, k), lambda i: (i, 0)),
                full(w1), full(b1), full(w2), full(b2), full(w3), full(b3),
            ],
            out_specs=pl.BlockSpec((tb, n_out), lambda i: (i, 0)),
        ),
        compiler_params=pltpu.CompilerParams(
            dimension_semantics=("parallel",),
            vmem_limit_bytes=vmem_limit,
        ),
        cost_estimate=cost,
    )(flat, w1, b1, w2, b2, w3, b3)
    return out[:bsz] if bpad != bsz else out


# ----------------------------------------------------------------------------
# Conv stage glue: quad-grouped patches built directly from x (no full im2col
# intermediate tensor) with strided slices -> single XLA fusion x -> quads.
# ----------------------------------------------------------------------------
def conv_pool_stage(x_nhwc, w_mat, b, kh, kw):
    """Valid conv (stride 1) + bias + ReLU + 2x2/2 max-pool; NHWC in, NHWC out."""
    n, h, w, c = x_nhwc.shape
    ho, wo = h - kh + 1, w - kw + 1
    hp, wp = ho // 2, wo // 2
    k = kh * kw * c
    # TODO(synk): move im2col fully inside the kernel (assemble taps from an
    # NHWC row-band tile in VMEM) to drop the remaining ~kh*kw-x HBM expansion
    # of the quads stream at very large batch sizes.
    quad_list = []
    for qr in (0, 1):
        for qc in (0, 1):
            taps = [
                x_nhwc[:, qr + i: qr + i + 2 * hp: 2,
                          qc + j: qc + j + 2 * wp: 2, :]        # (n, hp, wp, c)
                for i in range(kh) for j in range(kw)
            ]
            quad_list.append(
                jnp.stack(taps, axis=3).reshape(n * hp * wp, k))  # (tap, cin) minor
    quads = jnp.stack(quad_list, axis=0)                          # (4, n*hp*wp, K)
    out = pallas_conv_pool(quads, w_mat, b)                       # (n*hp*wp, cout)
    return out.reshape(n, hp, wp, w_mat.shape[1])


# ----------------------------------------------------------------------------
# Parameters: PyTorch-style init, then one-time repack for the kernels
# ----------------------------------------------------------------------------
def init_params(key):
    def uni(k, shape, fan_in):
        bound = 1.0 / jnp.sqrt(jnp.float32(fan_in))
        return jax.random.uniform(k, shape, jnp.float32, -bound, bound)

    ks = jax.random.split(key, 10)
    return {
        "conv1_w": uni(ks[0], (6, 3, 5, 5), 3 * 5 * 5),
        "conv1_b": uni(ks[1], (6,), 3 * 5 * 5),
        "conv2_w": uni(ks[2], (16, 6, 5, 5), 6 * 5 * 5),
        "conv2_b": uni(ks[3], (16,), 6 * 5 * 5),
        "fc1_w": uni(ks[4], (120, 400), 400),   # PyTorch Linear: (out, in)
        "fc1_b": uni(ks[5], (120,), 400),
        "fc2_w": uni(ks[6], (84, 120), 120),
        "fc2_b": uni(ks[7], (84,), 120),
        "fc3_w": uni(ks[8], (10, 84), 84),
        "fc3_b": uni(ks[9], (10,), 84),
    }


def _pad_to(arr, shape):
    return jnp.pad(arr, [(0, t - s) for s, t in zip(arr.shape, shape)])


def prepare_params(p):
    """One-time repack: conv weights -> (kh*kw*cin, cout), fc weights -> (in, out),
    PyTorch's NCHW flatten permutation folded into fc1 rows, fc widths
    zero-padded to the 128-lane width, matmul operands bf16."""
    prep = {}
    prep["c1_w"] = jnp.transpose(p["conv1_w"], (2, 3, 1, 0)).reshape(75, 6).astype(jnp.bfloat16)
    prep["c1_b"] = p["conv1_b"].reshape(1, 6).astype(jnp.float32)
    prep["c2_w"] = jnp.transpose(p["conv2_w"], (2, 3, 1, 0)).reshape(150, 16).astype(jnp.bfloat16)
    prep["c2_b"] = p["conv2_b"].reshape(1, 16).astype(jnp.float32)
    # PyTorch x.view(-1, 400) flat index is c*25 + h*5 + w; our flatten is (h, w, c):
    # fold that permutation into fc1's rows.  Zero pads (120/84/10 -> 128)
    # contribute nothing downstream (zero weights, zero bias, ReLU(0)=0).
    w1 = jnp.transpose(p["fc1_w"].reshape(120, 16, 5, 5), (2, 3, 1, 0)).reshape(400, 120)
    prep["fc1_w"] = _pad_to(w1, (400, 128)).astype(jnp.bfloat16)
    prep["fc1_b"] = _pad_to(p["fc1_b"].reshape(1, 120), (1, 128)).astype(jnp.float32)
    prep["fc2_w"] = _pad_to(p["fc2_w"].T, (128, 128)).astype(jnp.bfloat16)
    prep["fc2_b"] = _pad_to(p["fc2_b"].reshape(1, 84), (1, 128)).astype(jnp.float32)
    prep["fc3_w"] = _pad_to(p["fc3_w"].T, (128, 128)).astype(jnp.bfloat16)
    prep["fc3_b"] = _pad_to(p["fc3_b"].reshape(1, 10), (1, 128)).astype(jnp.float32)
    return prep


# ----------------------------------------------------------------------------
# Full forward pass (matches PyTorch Net.forward semantics)
# ----------------------------------------------------------------------------
def net_forward(x_nchw, prep):
    x = jnp.transpose(x_nchw, (0, 2, 3, 1)).astype(jnp.bfloat16)     # NCHW -> NHWC
    x = conv_pool_stage(x, prep["c1_w"], prep["c1_b"], 5, 5)         # (N,14,14,6)
    x = conv_pool_stage(x, prep["c2_w"], prep["c2_b"], 5, 5)         # (N,5,5,16)
    flat = x.reshape(x.shape[0], 5 * 5 * 16)    # (h,w,c) order; fc1_w rows pre-permuted
    logits = pallas_fc_head(flat, prep["fc1_w"], prep["fc1_b"],
                            prep["fc2_w"], prep["fc2_b"],
                            prep["fc3_w"], prep["fc3_b"])            # (N,128) f32
    return logits[:, :10]                       # drop the lane-padding columns


if __name__ == "__main__":
    key = jax.random.PRNGKey(0)
    k_x, k_p = jax.random.split(key)
    # Architecture requires 32x32 spatial input (16*5*5 flatten); small batch = 2.
    x = jax.random.normal(k_x, (2, 3, 32, 32), dtype=jnp.float32)
    prep = prepare_params(init_params(k_p))

    fwd = jax.jit(net_forward)
    logits = jax.block_until_ready(fwd(x, prep))
    assert logits.shape == (2, 10), logits.shape
    assert logits.dtype == jnp.float32
    print("KERNEL_OK")
</pallas_src>

<mosaic_0001>
module attributes {stable_mosaic.version = 11 : i64} {
  func.func @conv_pool_kernel(%arg0: i32, %arg1: memref<4x208x75xbf16, #tpu.memory_space<vmem>>, %arg2: memref<75x6xbf16, #tpu.memory_space<vmem>>, %arg3: memref<1x6xf32, #tpu.memory_space<vmem>>, %arg4: memref<208x6xbf16, #tpu.memory_space<vmem>>) attributes {dimension_semantics = [#tpu.dimension_semantics<parallel>], iteration_bounds = array<i64: 2>, scalar_prefetch = 0 : i64, scratch_operands = 0 : i64, tpu.core_type = #tpu.core_type<tc>, window_params = [{transform_indices = @transform_0, window_bounds = array<i64: 4, 208, 75>}, {pipeline_mode = #tpu.pipeline_mode<synchronous>, transform_indices = @transform_1, window_bounds = array<i64: 75, 6>}, {pipeline_mode = #tpu.pipeline_mode<synchronous>, transform_indices = @transform_2, window_bounds = array<i64: 1, 6>}, {transform_indices = @transform_3, window_bounds = array<i64: 208, 6>}]} {
    %c0 = arith.constant 0 : index
    %c0_0 = arith.constant 0 : index
    %c0_1 = arith.constant 0 : index
    %0 = vector.load %arg1[%c0, %c0_0, %c0_1] : memref<4x208x75xbf16, #tpu.memory_space<vmem>>, vector<4x208x75xbf16>
    %1 = vector.shape_cast %0 : vector<4x208x75xbf16> to vector<832x75xbf16>
    %c0_2 = arith.constant 0 : index
    %c0_3 = arith.constant 0 : index
    %2 = vector.load %arg2[%c0_2, %c0_3] : memref<75x6xbf16, #tpu.memory_space<vmem>>, vector<75x6xbf16>
    %cst = arith.constant dense<0.000000e+00> : vector<832x6xf32>
    %3 = tpu.matmul %1, %2, %cst {dimension_numbers = #tpu.dot_dimension_numbers<[1], [0], [0], [1], [0, 0, 1, 1], [], []>} : vector<832x75xbf16>, vector<75x6xbf16>, vector<832x6xf32> -> vector<832x6xf32>
    %4 = vector.extract_strided_slice %3 {offsets = [0, 0], sizes = [208, 6], strides = [1, 1]} : vector<832x6xf32> to vector<208x6xf32>
    %5 = vector.extract_strided_slice %3 {offsets = [208, 0], sizes = [208, 6], strides = [1, 1]} : vector<832x6xf32> to vector<208x6xf32>
    %6 = arith.maximumf %4, %5 : vector<208x6xf32>
    %7 = vector.extract_strided_slice %3 {offsets = [416, 0], sizes = [208, 6], strides = [1, 1]} : vector<832x6xf32> to vector<208x6xf32>
    %8 = vector.extract_strided_slice %3 {offsets = [624, 0], sizes = [208, 6], strides = [1, 1]} : vector<832x6xf32> to vector<208x6xf32>
    %9 = arith.maximumf %7, %8 : vector<208x6xf32>
    %10 = arith.maximumf %6, %9 : vector<208x6xf32>
    %c0_4 = arith.constant 0 : index
    %c0_5 = arith.constant 0 : index
    %11 = vector.load %arg3[%c0_4, %c0_5] : memref<1x6xf32, #tpu.memory_space<vmem>>, vector<1x6xf32>
    %12 = vector.broadcast %11 : vector<1x6xf32> to vector<208x6xf32>
    %13 = arith.addf %10, %12 : vector<208x6xf32>
    %cst_6 = arith.constant 0.000000e+00 : f32
    %14 = vector.broadcast %cst_6 : f32 to vector<208x6xf32>
    %15 = arith.maximumf %13, %14 : vector<208x6xf32>
    %16 = arith.truncf %15 : vector<208x6xf32> to vector<208x6xbf16>
    %c0_7 = arith.constant 0 : index
    %c0_8 = arith.constant 0 : index
    %17 = vector.load %arg4[%c0_7, %c0_8] : memref<208x6xbf16, #tpu.memory_space<vmem>>, vector<208x6xbf16>
    tpu.vector_store %arg4[%c0_7, %c0_8], %16 {strides = array<i32>} : memref<208x6xbf16, #tpu.memory_space<vmem>>, vector<208x6xbf16>,
    return
  }
  func.func @transform_0(%arg0: i32) -> (i32, i32, i32) {
    %c0_i32 = arith.constant 0 : i32
    %c0_i32_0 = arith.constant 0 : i32
    %c0_i32_1 = arith.constant 0 : i32
    return %c0_i32, %arg0, %c0_i32_0 : i32, i32, i32
  }
  func.func @transform_1(%arg0: i32) -> (i32, i32) {
    %c0_i32 = arith.constant 0 : i32
    %c0_i32_0 = arith.constant 0 : i32
    %c0_i32_1 = arith.constant 0 : i32
    return %c0_i32, %c0_i32_0 : i32, i32
  }
  func.func @transform_2(%arg0: i32) -> (i32, i32) {
    %c0_i32 = arith.constant 0 : i32
    %c0_i32_0 = arith.constant 0 : i32
    %c0_i32_1 = arith.constant 0 : i32
    return %c0_i32, %c0_i32_0 : i32, i32
  }
  func.func @transform_3(%arg0: i32) -> (i32, i32) {
    %c0_i32 = arith.constant 0 : i32
    %c0_i32_0 = arith.constant 0 : i32
    return %arg0, %c0_i32 : i32, i32
  }
}

module attributes {stable_mosaic.version = 11 : i64} {
  func.func @conv_pool_kernel(%arg0: i32, %arg1: memref<4x32x150xbf16, #tpu.memory_space<vmem>>, %arg2: memref<150x16xbf16, #tpu.memory_space<vmem>>, %arg3: memref<1x16xf32, #tpu.memory_space<vmem>>, %arg4: memref<32x16xbf16, #tpu.memory_space<vmem>>) attributes {dimension_semantics = [#tpu.dimension_semantics<parallel>], iteration_bounds = array<i64: 2>, scalar_prefetch = 0 : i64, scratch_operands = 0 : i64, tpu.core_type = #tpu.core_type<tc>, window_params = [{transform_indices = @transform_0, window_bounds = array<i64: 4, 32, 150>}, {pipeline_mode = #tpu.pipeline_mode<synchronous>, transform_indices = @transform_1, window_bounds = array<i64: 150, 16>}, {pipeline_mode = #tpu.pipeline_mode<synchronous>, transform_indices = @transform_2, window_bounds = array<i64: 1, 16>}, {transform_indices = @transform_3, window_bounds = array<i64: 32, 16>}]} {
    %c0 = arith.constant 0 : index
    %c0_0 = arith.constant 0 : index
    %c0_1 = arith.constant 0 : index
    %0 = vector.load %arg1[%c0, %c0_0, %c0_1] : memref<4x32x150xbf16, #tpu.memory_space<vmem>>, vector<4x32x150xbf16>
    %1 = vector.shape_cast %0 : vector<4x32x150xbf16> to vector<128x150xbf16>
    %c0_2 = arith.constant 0 : index
    %c0_3 = arith.constant 0 : index
    %2 = vector.load %arg2[%c0_2, %c0_3] : memref<150x16xbf16, #tpu.memory_space<vmem>>, vector<150x16xbf16>
    %cst = arith.constant dense<0.000000e+00> : vector<128x16xf32>
    %3 = tpu.matmul %1, %2, %cst {dimension_numbers = #tpu.dot_dimension_numbers<[1], [0], [0], [1], [0, 0, 1, 1], [], []>} : vector<128x150xbf16>, vector<150x16xbf16>, vector<128x16xf32> -> vector<128x16xf32>
    %4 = vector.extract_strided_slice %3 {offsets = [0, 0], sizes = [32, 16], strides = [1, 1]} : vector<128x16xf32> to vector<32x16xf32>
    %5 = vector.extract_strided_slice %3 {offsets = [32, 0], sizes = [32, 16], strides = [1, 1]} : vector<128x16xf32> to vector<32x16xf32>
    %6 = arith.maximumf %4, %5 : vector<32x16xf32>
    %7 = vector.extract_strided_slice %3 {offsets = [64, 0], sizes = [32, 16], strides = [1, 1]} : vector<128x16xf32> to vector<32x16xf32>
    %8 = vector.extract_strided_slice %3 {offsets = [96, 0], sizes = [32, 16], strides = [1, 1]} : vector<128x16xf32> to vector<32x16xf32>
    %9 = arith.maximumf %7, %8 : vector<32x16xf32>
    %10 = arith.maximumf %6, %9 : vector<32x16xf32>
    %c0_4 = arith.constant 0 : index
    %c0_5 = arith.constant 0 : index
    %11 = vector.load %arg3[%c0_4, %c0_5] : memref<1x16xf32, #tpu.memory_space<vmem>>, vector<1x16xf32>
    %12 = vector.broadcast %11 : vector<1x16xf32> to vector<32x16xf32>
    %13 = arith.addf %10, %12 : vector<32x16xf32>
    %cst_6 = arith.constant 0.000000e+00 : f32
    %14 = vector.broadcast %cst_6 : f32 to vector<32x16xf32>
    %15 = arith.maximumf %13, %14 : vector<32x16xf32>
    %16 = arith.truncf %15 : vector<32x16xf32> to vector<32x16xbf16>
    %c0_7 = arith.constant 0 : index
    %c0_8 = arith.constant 0 : index
    %17 = vector.load %arg4[%c0_7, %c0_8] : memref<32x16xbf16, #tpu.memory_space<vmem>>, vector<32x16xbf16>
    tpu.vector_store %arg4[%c0_7, %c0_8], %16 {strides = array<i32>} : memref<32x16xbf16, #tpu.memory_space<vmem>>, vector<32x16xbf16>,
    return
  }
  func.func @transform_0(%arg0: i32) -> (i32, i32, i32) {
    %c0_i32 = arith.constant 0 : i32
    %c0_i32_0 = arith.constant 0 : i32
    %c0_i32_1 = arith.constant 0 : i32
    return %c0_i32, %arg0, %c0_i32_0 : i32, i32, i32
  }
  func.func @transform_1(%arg0: i32) -> (i32, i32) {
    %c0_i32 = arith.constant 0 : i32
    %c0_i32_0 = arith.constant 0 : i32
    %c0_i32_1 = arith.constant 0 : i32
    return %c0_i32, %c0_i32_0 : i32, i32
  }
  func.func @transform_2(%arg0: i32) -> (i32, i32) {
    %c0_i32 = arith.constant 0 : i32
    %c0_i32_0 = arith.constant 0 : i32
    %c0_i32_1 = arith.constant 0 : i32
    return %c0_i32, %c0_i32_0 : i32, i32
  }
  func.func @transform_3(%arg0: i32) -> (i32, i32) {
    %c0_i32 = arith.constant 0 : i32
    %c0_i32_0 = arith.constant 0 : i32
    return %arg0, %c0_i32 : i32, i32
  }
}

module attributes {stable_mosaic.version = 11 : i64} {
  func.func @fc_head_kernel(%arg0: i32, %arg1: memref<16x400xbf16, #tpu.memory_space<vmem>>, %arg2: memref<400x128xbf16, #tpu.memory_space<vmem>>, %arg3: memref<1x128xf32, #tpu.memory_space<vmem>>, %arg4: memref<128x128xbf16, #tpu.memory_space<vmem>>, %arg5: memref<1x128xf32, #tpu.memory_space<vmem>>, %arg6: memref<128x128xbf16, #tpu.memory_space<vmem>>, %arg7: memref<1x128xf32, #tpu.memory_space<vmem>>, %arg8: memref<16x128xf32, #tpu.memory_space<vmem>>) attributes {dimension_semantics = [#tpu.dimension_semantics<parallel>], iteration_bounds = array<i64: 1>, scalar_prefetch = 0 : i64, scratch_operands = 0 : i64, tpu.core_type = #tpu.core_type<tc>, window_params = [{transform_indices = @transform_0, window_bounds = array<i64: 16, 400>}, {pipeline_mode = #tpu.pipeline_mode<synchronous>, transform_indices = @transform_1, window_bounds = array<i64: 400, 128>}, {pipeline_mode = #tpu.pipeline_mode<synchronous>, transform_indices = @transform_2, window_bounds = array<i64: 1, 128>}, {pipeline_mode = #tpu.pipeline_mode<synchronous>, transform_indices = @transform_3, window_bounds = array<i64: 128, 128>}, {pipeline_mode = #tpu.pipeline_mode<synchronous>, transform_indices = @transform_4, window_bounds = array<i64: 1, 128>}, {pipeline_mode = #tpu.pipeline_mode<synchronous>, transform_indices = @transform_5, window_bounds = array<i64: 128, 128>}, {pipeline_mode = #tpu.pipeline_mode<synchronous>, transform_indices = @transform_6, window_bounds = array<i64: 1, 128>}, {transform_indices = @transform_7, window_bounds = array<i64: 16, 128>}]} {
    %c0 = arith.constant 0 : index
    %c0_0 = arith.constant 0 : index
    %0 = vector.load %arg1[%c0, %c0_0] : memref<16x400xbf16, #tpu.memory_space<vmem>>, vector<16x400xbf16>
    %c0_1 = arith.constant 0 : index
    %c0_2 = arith.constant 0 : index
    %1 = vector.load %arg2[%c0_1, %c0_2] : memref<400x128xbf16, #tpu.memory_space<vmem>>, vector<400x128xbf16>
    %cst = arith.constant dense<0.000000e+00> : vector<16x128xf32>
    %2 = tpu.matmul %0, %1, %cst {dimension_numbers = #tpu.dot_dimension_numbers<[1], [0], [0], [1], [0, 0, 1, 1], [], []>} : vector<16x400xbf16>, vector<400x128xbf16>, vector<16x128xf32> -> vector<16x128xf32>
    %c0_3 = arith.constant 0 : index
    %c0_4 = arith.constant 0 : index
    %3 = vector.load %arg3[%c0_3, %c0_4] : memref<1x128xf32, #tpu.memory_space<vmem>>, vector<1x128xf32>
    %4 = vector.broadcast %3 : vector<1x128xf32> to vector<16x128xf32>
    %5 = arith.addf %2, %4 : vector<16x128xf32>
    %cst_5 = arith.constant 0.000000e+00 : f32
    %6 = vector.broadcast %cst_5 : f32 to vector<16x128xf32>
    %7 = arith.maximumf %5, %6 : vector<16x128xf32>
    %8 = arith.truncf %7 : vector<16x128xf32> to vector<16x128xbf16>
    %c0_6 = arith.constant 0 : index
    %c0_7 = arith.constant 0 : index
    %9 = vector.load %arg4[%c0_6, %c0_7] : memref<128x128xbf16, #tpu.memory_space<vmem>>, vector<128x128xbf16>
    %cst_8 = arith.constant dense<0.000000e+00> : vector<16x128xf32>
    %10 = tpu.matmul %8, %9, %cst_8 {dimension_numbers = #tpu.dot_dimension_numbers<[1], [0], [0], [1], [0, 0, 1, 1], [], []>} : vector<16x128xbf16>, vector<128x128xbf16>, vector<16x128xf32> -> vector<16x128xf32>
    %c0_9 = arith.constant 0 : index
    %c0_10 = arith.constant 0 : index
    %11 = vector.load %arg5[%c0_9, %c0_10] : memref<1x128xf32, #tpu.memory_space<vmem>>, vector<1x128xf32>
    %12 = vector.broadcast %11 : vector<1x128xf32> to vector<16x128xf32>
    %13 = arith.addf %10, %12 : vector<16x128xf32>
    %cst_11 = arith.constant 0.000000e+00 : f32
    %14 = vector.broadcast %cst_11 : f32 to vector<16x128xf32>
    %15 = arith.maximumf %13, %14 : vector<16x128xf32>
    %16 = arith.truncf %15 : vector<16x128xf32> to vector<16x128xbf16>
    %c0_12 = arith.constant 0 : index
    %c0_13 = arith.constant 0 : index
    %17 = vector.load %arg6[%c0_12, %c0_13] : memref<128x128xbf16, #tpu.memory_space<vmem>>, vector<128x128xbf16>
    %cst_14 = arith.constant dense<0.000000e+00> : vector<16x128xf32>
    %18 = tpu.matmul %16, %17, %cst_14 {dimension_numbers = #tpu.dot_dimension_numbers<[1], [0], [0], [1], [0, 0, 1, 1], [], []>} : vector<16x128xbf16>, vector<128x128xbf16>, vector<16x128xf32> -> vector<16x128xf32>
    %c0_15 = arith.constant 0 : index
    %c0_16 = arith.constant 0 : index
    %19 = vector.load %arg7[%c0_15, %c0_16] : memref<1x128xf32, #tpu.memory_space<vmem>>, vector<1x128xf32>
    %20 = vector.broadcast %19 : vector<1x128xf32> to vector<16x128xf32>
    %21 = arith.addf %18, %20 : vector<16x128xf32>
    %c0_17 = arith.constant 0 : index
    %c0_18 = arith.constant 0 : index
    %22 = vector.load %arg8[%c0_17, %c0_18] : memref<16x128xf32, #tpu.memory_space<vmem>>, vector<16x128xf32>
    tpu.vector_store %arg8[%c0_17, %c0_18], %21 {strides = array<i32>} : memref<16x128xf32, #tpu.memory_space<vmem>>, vector<16x128xf32>,
    return
  }
  func.func @transform_0(%arg0: i32) -> (i32, i32) {
    %c0_i32 = arith.constant 0 : i32
    %c0_i32_0 = arith.constant 0 : i32
    return %arg0, %c0_i32 : i32, i32
  }
  func.func @transform_1(%arg0: i32) -> (i32, i32) {
    %c0_i32 = arith.constant 0 : i32
    %c0_i32_0 = arith.constant 0 : i32
    %c0_i32_1 = arith.constant 0 : i32
    return %c0_i32, %c0_i32_0 : i32, i32
  }
  func.func @transform_2(%arg0: i32) -> (i32, i32) {
    %c0_i32 = arith.constant 0 : i32
    %c0_i32_0 = arith.constant 0 : i32
    %c0_i32_1 = arith.constant 0 : i32
    return %c0_i32, %c0_i32_0 : i32, i32
  }
  func.func @transform_3(%arg0: i32) -> (i32, i32) {
    %c0_i32 = arith.constant 0 : i32
    %c0_i32_0 = arith.constant 0 : i32
    %c0_i32_1 = arith.constant 0 : i32
    return %c0_i32, %c0_i32_0 : i32, i32
  }
  func.func @transform_4(%arg0: i32) -> (i32, i32) {
    %c0_i32 = arith.constant 0 : i32
    %c0_i32_0 = arith.constant 0 : i32
    %c0_i32_1 = arith.constant 0 : i32
    return %c0_i32, %c0_i32_0 : i32, i32
  }
  func.func @transform_5(%arg0: i32) -> (i32, i32) {
    %c0_i32 = arith.constant 0 : i32
    %c0_i32_0 = arith.constant 0 : i32
    %c0_i32_1 = arith.constant 0 : i32
    return %c0_i32, %c0_i32_0 : i32, i32
  }
  func.func @transform_6(%arg0: i32) -> (i32, i32) {
    %c0_i32 = arith.constant 0 : i32
    %c0_i32_0 = arith.constant 0 : i32
    %c0_i32_1 = arith.constant 0 : i32
    return %c0_i32, %c0_i32_0 : i32, i32
  }
  func.func @transform_7(%arg0: i32) -> (i32, i32) {
    %c0_i32 = arith.constant 0 : i32
    %c0_i32_0 = arith.constant 0 : i32
    return %arg0, %c0_i32 : i32, i32
  }
}

</mosaic_0001>

<llo_original>
// kernel: net_forward.3
$region0: #{net_forward.3}
  #allocation0 [shape = 'u32[]', space=smem, size = 0x4, offset = 0x4, fixed_abs, tag = 'smem constant byte address 0x4 - core index']
  #allocation1 [shape = 'u32[144,128]{1,0:T(1,128)}', space=vmem, size = 0x12000, scoped, tag = 'internal scratch']
  %s0 = inlined_call_operand.vmem [shape: bf16[4,416,75], index: 0, kind: input, shape index: {}]
  %s1 = inlined_call_operand.vmem [shape: bf16[75,6], index: 1, kind: input, shape index: {}]
  %s2 = inlined_call_operand.vmem [shape: f32[1,6], index: 2, kind: input, shape index: {}]
  %s3 = inlined_call_operand.vmem [shape: bf16[416,6], index: 3, kind: output, shape index: {}]
  %s4 = sld [smem:[#allocation0]]
  $region86: #{net_forward.3} parent=0
    _
  %s6 = ssub.s32 1, %s4
  %s7 = scalar_select 0, %s6, %s4
  $region1: #{net_forward.3} parent=0
    #allocation2 [shape = 'u8[425984]{0}', space=vmem, size = 0x68000, scoped, tag = 'input window, operand 0']
    loop: start=0, step=1, limit=4
    $region2: #{net_forward.3} parent=1 // loop_pre_header
      _
    $region3: #{net_forward.3} parent=1 // loop_header
      %s9 = sphi 0, %s13
      %p10 = scmp.ge.s32.totalorder %s9, 4
      %s19 = sphi 0, %s21
      %s22 = sphi 0, %s19
      %s23 = sphi 0, %s22
      %s39 = sphi 0, %s23
      %s43 = sphi 0, %s43
      %s45 = sphi 0, %s43
      %s46 = sphi 0, %s45
      %s60 = sphi 0, %s46
      %s64 = sphi 0, %s64
      %s66 = sphi 0, %s64
      %s67 = sphi 0, %s66
      %s81 = sphi 0, %s67
      %s87 = sphi 0, %s89
      %s90 = sphi 0, %s87
      %s91 = sphi 0, %s90
      %s107 = sphi 0, %s91
    $region4: #{net_forward.3} parent=1 // loop_header_branch
      %12 = sbr.rel (%p10) target = $region8
    $region5: #{net_forward.3} parent=1 // loop_body
      %s14 = ssub.s32 %s9, 1
      %s15 = ssub.s32 %s9, 2
      %s16 = sadd.s32 %s9, 1
      %s17 = ssub.s32 %s9, %s16
      %p18 = scmp.eq.s32.totalorder %s17, 0
      %s20 = sadd.s32 %s19, 1
      %s21 = scalar_select %p18, %s19, %s20
      %p24 = pneg %p18
      %p25 = scmp.eq.s32.totalorder %s9, 1
      %p26 = por %p24, %p25
      %p27 = scmp.ne.s32.totalorder %s19, %s22
      %p28 = scmp.eq.s32.totalorder %s9, 0
      %p29 = por %p27, %p28
      %p30 = scmp.ne.s32.totalorder %s19, %s22
      %p31 = scmp.eq.s32.totalorder %s14, 1
      %p32 = por %p30, %p31
      %p33 = scmp.ne.s32.totalorder %s22, %s23
      %p34 = scmp.eq.s32.totalorder %s14, 0
      %p35 = por %p33, %p34
      %p36 = scmp.ne.s32.totalorder %s22, %s23
      %p37 = scmp.eq.s32.totalorder %s15, 1
      %p38 = por %p36, %p37
      %p40 = scmp.ne.s32.totalorder %s23, %s39
      %p41 = scmp.eq.s32.totalorder %s15, 0
      %p42 = por %p40, %p41
      %s44 = sadd.s32 %s43, 1
      %p47 = scmp.eq.s32.totalorder %s9, 1
      %p48 = scmp.ne.s32.totalorder %s43, %s45
      %p49 = scmp.eq.s32.totalorder %s9, 0
      %p50 = por %p48, %p49
      %p51 = scmp.ne.s32.totalorder %s43, %s45
      %p52 = scmp.eq.s32.totalorder %s14, 1
      %p53 = por %p51, %p52
      %p54 = scmp.ne.s32.totalorder %s45, %s46
      %p55 = scmp.eq.s32.totalorder %s14, 0
      %p56 = por %p54, %p55
      %p57 = scmp.ne.s32.totalorder %s45, %s46
      %p58 = scmp.eq.s32.totalorder %s15, 1
      %p59 = por %p57, %p58
      %p61 = scmp.ne.s32.totalorder %s46, %s60
      %p62 = scmp.eq.s32.totalorder %s15, 0
      %p63 = por %p61, %p62
      %s65 = sadd.s32 %s64, 1
      %p68 = scmp.eq.s32.totalorder %s9, 1
      %p69 = scmp.ne.s32.totalorder %s64, %s66
      %p70 = scmp.eq.s32.totalorder %s9, 0
      %p71 = por %p69, %p70
      %p72 = scmp.ne.s32.totalorder %s64, %s66
      %p73 = scmp.eq.s32.totalorder %s14, 1
      %p74 = por %p72, %p73
      %p75 = scmp.ne.s32.totalorder %s66, %s67
      %p76 = scmp.eq.s32.totalorder %s14, 0
      %p77 = por %p75, %p76
      %p78 = scmp.ne.s32.totalorder %s66, %s67
      %p79 = scmp.eq.s32.totalorder %s15, 1
      %p80 = por %p78, %p79
      %p82 = scmp.ne.s32.totalorder %s67, %s81
      %p83 = scmp.eq.s32.totalorder %s15, 0
      %p84 = por %p82, %p83
      %s85 = ssub.s32 %s9, %s16
      %p86 = scmp.eq.s32.totalorder %s85, 0
      %s88 = sadd.s32 %s87, 1
      %s89 = scalar_select %p86, %s87, %s88
      %p92 = pneg %p86
      %p93 = scmp.eq.s32.totalorder %s9, 1
      %p94 = por %p92, %p93
      %p95 = scmp.ne.s32.totalorder %s87, %s90
      %p96 = scmp.eq.s32.totalorder %s9, 0
      %p97 = por %p95, %p96
      %p98 = scmp.ne.s32.totalorder %s87, %s90
      %p99 = scmp.eq.s32.totalorder %s14, 1
      %p100 = por %p98, %p99
      %p101 = scmp.ne.s32.totalorder %s90, %s91
      %p102 = scmp.eq.s32.totalorder %s14, 0
      %p103 = por %p101, %p102
      %p104 = scmp.ne.s32.totalorder %s90, %s91
      %p105 = scmp.eq.s32.totalorder %s15, 1
      %p106 = por %p104, %p105
      %p108 = scmp.ne.s32.totalorder %s91, %s107
      %p109 = scmp.eq.s32.totalorder %s15, 0
      %p110 = por %p108, %p109
      %p111 = scmp.le.s32.totalorder 1, %s9
      %p112 = scmp.lt.s32.totalorder %s9, 3
      %p113 = pnand %p111, %p112
      %p114 = pneg %p113
      // Predicated region
      $region9: #{net_forward.3} parent=5 // pred_check
        _
      $region10: #{net_forward.3} parent=5 // pred_check_branch
        %116 = sbr.rel (%p113) target = $region12
      $region11: #{net_forward.3} parent=5 // pred_region
        %s117 = ssub.s32 %s9, 1
        // Predicated region
        $region13: #{net_forward.3} parent=11 // pred_check
          %p118 = pneg %p56
        $region14: #{net_forward.3} parent=11 // pred_check_branch
          %120 = sbr.rel (%p118) target = $region16
        $region15: #{net_forward.3} parent=11 // pred_region
          _
        $region16: #{net_forward.3} parent=11 // pred_fallthru
          _
        // Predicated region
        $region17: #{net_forward.3} parent=11 // pred_check
          %p121 = pneg %p77
        $region18: #{net_forward.3} parent=11 // pred_check_branch
          %123 = sbr.rel (%p121) target = $region20
        $region19: #{net_forward.3} parent=11 // pred_region
          _
        $region20: #{net_forward.3} parent=11 // pred_fallthru
          _
      $region12: #{net_forward.3} parent=5 // pred_fallthru
        _
      %p124 = scmp.lt.s32.totalorder %s9, 2
      // Predicated region
      $region21: #{net_forward.3} parent=5 // pred_check
        %p125 = pneg %p124
      $region22: #{net_forward.3} parent=5 // pred_check_branch
        %127 = sbr.rel (%p125) target = $region24
      $region23: #{net_forward.3} parent=5 // pred_region
        // Predicated region
        $region25: #{net_forward.3} parent=23 // pred_check
          %p128 = pneg %p29
        $region26: #{net_forward.3} parent=23 // pred_check_branch
          %130 = sbr.rel (%p128) target = $region28
        $region27: #{net_forward.3} parent=23 // pred_region
          %s131 = sand.u32 %s19, 1
          %s132 = sand.u32 %s19, 1
          %s133 = smul.addr %s132, 416
          %s134 = scalar_lea.vmem [#allocation2], %s133
          %s135 = smul.u32 26, %s9
          %s136 = smul.addr %s135, 4
          %s137 = scalar_lea.vmem %s0, %s136
          // Predicated region
          $region29: #{net_forward.3} parent=27 // pred_check
            _
          $region30: #{net_forward.3} parent=27 // pred_check_branch
            %139 = sbr.rel (0) target = $region32
          $region31: #{net_forward.3} parent=27 // pred_region
            // Predicated region
            $region33: #{net_forward.3} parent=31 // pred_check
              _
            $region34: #{net_forward.3} parent=31 // pred_check_branch
              %141 = sbr.rel target = $region36
            $region35: #{net_forward.3} parent=31 // pred_region
              // Predicated region
              $region48: #{net_forward.3} parent=35 // pred_check
                _
              $region49: #{net_forward.3} parent=35 // pred_check_branch
                %363 = sbr.rel (0) target = $region51
              $region50: #{net_forward.3} parent=35 // pred_region
                loop: start=0, step=1, limit=1
                $region52: #{net_forward.3} parent=50 // loop_pre_header
                  _
                $region53: #{net_forward.3} parent=50 // loop_header
                  %s365 = sphi 0, %s369
                  %p366 = scmp.ge.s32.totalorder %s365, 1
                  %s370 = sphi %s137, %s137
                  %s371 = sphi %s134, %s134
                $region54: #{net_forward.3} parent=50 // loop_header_branch
                  %368 = sbr.rel (%p366) target = $region58
                $region55: #{net_forward.3} parent=50 // loop_body
                  _
                $region56: #{net_forward.3} parent=50 // loop_footer
                  %s369 = sadd.s32 1, %s365
                $region57: #{net_forward.3} parent=50 // loop_footer_branch
                  %364 = sbr.rel target = $region53
                $region58: #{net_forward.3} parent=50 // loop_exit
                  _
                %s373 = ssub.s32 16, 1
                loop: start=0, step=1, limit=1
                $region59: #{net_forward.3} parent=50 // loop_pre_header
                  _
                $region60: #{net_forward.3} parent=50 // loop_header
                  %s375 = sphi 0, %s379
                  %p376 = scmp.ge.s32.totalorder %s375, 1
                  %s380 = sphi %s137, %s137
                  %s381 = sphi %s134, %s134
                $region61: #{net_forward.3} parent=50 // loop_header_branch
                  %378 = sbr.rel (%p376) target = $region65
                $region62: #{net_forward.3} parent=50 // loop_body
                  %v382 = vld [vmem:[%s380] sm:%s373]
                  %383 = vst [vmem:[%s381] sm:%s373] %v382
                  %v384 = vld [vmem:[%s380 + $0x4] sm:%s373]
                  %385 = vst [vmem:[%s381 + $0x4] sm:%s373] %v384
                  %v386 = vld [vmem:[%s380 + $0x8] sm:%s373]
                  %387 = vst [vmem:[%s381 + $0x8] sm:%s373] %v386
                  %v388 = vld [vmem:[%s380 + $0xc] sm:%s373]
                  %389 = vst [vmem:[%s381 + $0xc] sm:%s373] %v388
                  %v390 = vld [vmem:[%s380 + $0x10] sm:%s373]
                  %391 = vst [vmem:[%s381 + $0x10] sm:%s373] %v390
                  %v392 = vld [vmem:[%s380 + $0x14] sm:%s373]
                  %393 = vst [vmem:[%s381 + $0x14] sm:%s373] %v392
                  %v394 = vld [vmem:[%s380 + $0x18] sm:%s373]
                  %395 = vst [vmem:[%s381 + $0x18] sm:%s373] %v394
                  %v396 = vld [vmem:[%s380 + $0x1c] sm:%s373]
                  %397 = vst [vmem:[%s381 + $0x1c] sm:%s373] %v396
                  %v398 = vld [vmem:[%s380 + $0x20] sm:%s373]
                  %399 = vst [vmem:[%s381 + $0x20] sm:%s373] %v398
                  %v400 = vld [vmem:[%s380 + $0x24] sm:%s373]
                  %401 = vst [vmem:[%s381 + $0x24] sm:%s373] %v400
                  %v402 = vld [vmem:[%s380 + $0x28] sm:%s373]
                  %403 = vst [vmem:[%s381 + $0x28] sm:%s373] %v402
                  %v404 = vld [vmem:[%s380 + $0x2c] sm:%s373]
                  %405 = vst [vmem:[%s381 + $0x2c] sm:%s373] %v404
                  %v406 = vld [vmem:[%s380 + $0x30] sm:%s373]
                  %407 = vst [vmem:[%s381 + $0x30] sm:%s373] %v406
                  %v408 = vld [vmem:[%s380 + $0x34] sm:%s373]
                  %409 = vst [vmem:[%s381 + $0x34] sm:%s373] %v408
                  %v410 = vld [vmem:[%s380 + $0x38] sm:%s373]
                  %411 = vst [vmem:[%s381 + $0x38] sm:%s373] %v410
                  %v412 = vld [vmem:[%s380 + $0x3c] sm:%s373]
                  %413 = vst [vmem:[%s381 + $0x3c] sm:%s373] %v412
                  %v414 = vld [vmem:[%s380 + $0x40] sm:%s373]
                  %415 = vst [vmem:[%s381 + $0x40] sm:%s373] %v414
                  %v416 = vld [vmem:[%s380 + $0x44] sm:%s373]
                  %417 = vst [vmem:[%s381 + $0x44] sm:%s373] %v416
                  %v418 = vld [vmem:[%s380 + $0x48] sm:%s373]
                  %419 = vst [vmem:[%s381 + $0x48] sm:%s373] %v418
                  %v420 = vld [vmem:[%s380 + $0x4c] sm:%s373]
                  %421 = vst [vmem:[%s381 + $0x4c] sm:%s373] %v420
                  %v422 = vld [vmem:[%s380 + $0x50] sm:%s373]
                  %423 = vst [vmem:[%s381 + $0x50] sm:%s373] %v422
                  %v424 = vld [vmem:[%s380 + $0x54] sm:%s373]
                  %425 = vst [vmem:[%s381 + $0x54] sm:%s373] %v424
                  %v426 = vld [vmem:[%s380 + $0x58] sm:%s373]
                  %427 = vst [vmem:[%s381 + $0x58] sm:%s373] %v426
                  %v428 = vld [vmem:[%s380 + $0x5c] sm:%s373]
                  %429 = vst [vmem:[%s381 + $0x5c] sm:%s373] %v428
                  %v430 = vld [vmem:[%s380 + $0x60] sm:%s373]
                  %431 = vst [vmem:[%s381 + $0x60] sm:%s373] %v430
                  %v432 = vld [vmem:[%s380 + $0x64] sm:%s373]
                  %433 = vst [vmem:[%s381 + $0x64] sm:%s373] %v432
                  %v434 = vld [vmem:[%s380 + $0xd0] sm:%s373]
                  %435 = vst [vmem:[%s381 + $0x68] sm:%s373] %v434
                  %v436 = vld [vmem:[%s380 + $0xd4] sm:%s373]
                  %437 = vst [vmem:[%s381 + $0x6c] sm:%s373] %v436
                  %v438 = vld [vmem:[%s380 + $0xd8] sm:%s373]
                  %439 = vst [vmem:[%s381 + $0x70] sm:%s373] %v438
                  %v440 = vld [vmem:[%s380 + $0xdc] sm:%s373]
                  %441 = vst [vmem:[%s381 + $0x74] sm:%s373] %v440
                  %v442 = vld [vmem:[%s380 + $0xe0] sm:%s373]
                  %443 = vst [vmem:[%s381 + $0x78] sm:%s373] %v442
                  %v444 = vld [vmem:[%s380 + $0xe4] sm:%s373]
                  %445 = vst [vmem:[%s381 + $0x7c] sm:%s373] %v444
                  %v446 = vld [vmem:[%s380 + $0xe8] sm:%s373]
                  %447 = vst [vmem:[%s381 + $0x80] sm:%s373] %v446
                  %v448 = vld [vmem:[%s380 + $0xec] sm:%s373]
                  %449 = vst [vmem:[%s381 + $0x84] sm:%s373] %v448
                  %v450 = vld [vmem:[%s380 + $0xf0] sm:%s373]
                  %451 = vst [vmem:[%s381 + $0x88] sm:%s373] %v450
                  %v452 = vld [vmem:[%s380 + $0xf4] sm:%s373]
                  %453 = vst [vmem:[%s381 + $0x8c] sm:%s373] %v452
                  %v454 = vld [vmem:[%s380 + $0xf8] sm:%s373]
                  %455 = vst [vmem:[%s381 + $0x90] sm:%s373] %v454
                  %v456 = vld [vmem:[%s380 + $0xfc] sm:%s373]
                  %457 = vst [vmem:[%s381 + $0x94] sm:%s373] %v456
                  %v458 = vld [vmem:[%s380 + $0x100] sm:%s373]
                  %459 = vst [vmem:[%s381 + $0x98] sm:%s373] %v458
                  %v460 = vld [vmem:[%s380 + $0x104] sm:%s373]
                  %461 = vst [vmem:[%s381 + $0x9c] sm:%s373] %v460
                  %v462 = vld [vmem:[%s380 + $0x108] sm:%s373]
                  %463 = vst [vmem:[%s381 + $0xa0] sm:%s373] %v462
                  %v464 = vld [vmem:[%s380 + $0x10c] sm:%s373]
                  %465 = vst [vmem:[%s381 + $0xa4] sm:%s373] %v464
                  %v466 = vld [vmem:[%s380 + $0x110] sm:%s373]
                  %467 = vst [vmem:[%s381 + $0xa8] sm:%s373] %v466
                  %v468 = vld [vmem:[%s380 + $0x114] sm:%s373]
                  %469 = vst [vmem:[%s381 + $0xac] sm:%s373] %v468
                  %v470 = vld [vmem:[%s380 + $0x118] sm:%s373]
                  %471 = vst [vmem:[%s381 + $0xb0] sm:%s373] %v470
                  %v472 = vld [vmem:[%s380 + $0x11c] sm:%s373]
                  %473 = vst [vmem:[%s381 + $0xb4] sm:%s373] %v472
                  %v474 = vld [vmem:[%s380 + $0x120] sm:%s373]
                  %475 = vst [vmem:[%s381 + $0xb8] sm:%s373] %v474
                  %v476 = vld [vmem:[%s380 + $0x124] sm:%s373]
                  %477 = vst [vmem:[%s381 + $0xbc] sm:%s373] %v476
                  %v478 = vld [vmem:[%s380 + $0x128] sm:%s373]
                  %479 = vst [vmem:[%s381 + $0xc0] sm:%s373] %v478
                  %v480 = vld [vmem:[%s380 + $0x12c] sm:%s373]
                  %481 = vst [vmem:[%s381 + $0xc4] sm:%s373] %v480
                  %v482 = vld [vmem:[%s380 + $0x130] sm:%s373]
                  %483 = vst [vmem:[%s381 + $0xc8] sm:%s373] %v482
                  %v484 = vld [vmem:[%s380 + $0x134] sm:%s373]
                  %485 = vst [vmem:[%s381 + $0xcc] sm:%s373] %v484
                  %v486 = vld [vmem:[%s380 + $0x1a0] sm:%s373]
                  %487 = vst [vmem:[%s381 + $0xd0] sm:%s373] %v486
                  %v488 = vld [vmem:[%s380 + $0x1a4] sm:%s373]
                  %489 = vst [vmem:[%s381 + $0xd4] sm:%s373] %v488
                  %v490 = vld [vmem:[%s380 + $0x1a8] sm:%s373]
                  %491 = vst [vmem:[%s381 + $0xd8] sm:%s373] %v490
                  %v492 = vld [vmem:[%s380 + $0x1ac] sm:%s373]
                  %493 = vst [vmem:[%s381 + $0xdc] sm:%s373] %v492
                  %v494 = vld [vmem:[%s380 + $0x1b0] sm:%s373]
                  %495 = vst [vmem:[%s381 + $0xe0] sm:%s373] %v494
                  %v496 = vld [vmem:[%s380 + $0x1b4] sm:%s373]
                  %497 = vst [vmem:[%s381 + $0xe4] sm:%s373] %v496
                  %v498 = vld [vmem:[%s380 + $0x1b8] sm:%s373]
                  %499 = vst [vmem:[%s381 + $0xe8] sm:%s373] %v498
                  %v500 = vld [vmem:[%s380 + $0x1bc] sm:%s373]
                  %501 = vst [vmem:[%s381 + $0xec] sm:%s373] %v500
                  %v502 = vld [vmem:[%s380 + $0x1c0] sm:%s373]
                  %503 = vst [vmem:[%s381 + $0xf0] sm:%s373] %v502
                  %v504 = vld [vmem:[%s380 + $0x1c4] sm:%s373]
                  %505 = vst [vmem:[%s381 + $0xf4] sm:%s373] %v504
                  %v506 = vld [vmem:[%s380 + $0x1c8] sm:%s373]
                  %507 = vst [vmem:[%s381 + $0xf8] sm:%s373] %v506
                  %v508 = vld [vmem:[%s380 + $0x1cc] sm:%s373]
                  %509 = vst [vmem:[%s381 + $0xfc] sm:%s373] %v508
                  %v510 = vld [vmem:[%s380 + $0x1d0] sm:%s373]
                  %511 = vst [vmem:[%s381 + $0x100] sm:%s373] %v510
                  %v512 = vld [vmem:[%s380 + $0x1d4] sm:%s373]
                  %513 = vst [vmem:[%s381 + $0x104] sm:%s373] %v512
                  %v514 = vld [vmem:[%s380 + $0x1d8] sm:%s373]
                  %515 = vst [vmem:[%s381 + $0x108] sm:%s373] %v514
                  %v516 = vld [vmem:[%s380 + $0x1dc] sm:%s373]
                  %517 = vst [vmem:[%s381 + $0x10c] sm:%s373] %v516
                  %v518 = vld [vmem:[%s380 + $0x1e0] sm:%s373]
                  %519 = vst [vmem:[%s381 + $0x110] sm:%s373] %v518
                  %v520 = vld [vmem:[%s380 + $0x1e4] sm:%s373]
                  %521 = vst [vmem:[%s381 + $0x114] sm:%s373] %v520
                  %v522 = vld [vmem:[%s380 + $0x1e8] sm:%s373]
                  %523 = vst [vmem:[%s381 + $0x118] sm:%s373] %v522
                  %v524 = vld [vmem:[%s380 + $0x1ec] sm:%s373]
                  %525 = vst [vmem:[%s381 + $0x11c] sm:%s373] %v524
                  %v526 = vld [vmem:[%s380 + $0x1f0] sm:%s373]
                  %527 = vst [vmem:[%s381 + $0x120] sm:%s373] %v526
                  %v528 = vld [vmem:[%s380 + $0x1f4] sm:%s373]
                  %529 = vst [vmem:[%s381 + $0x124] sm:%s373] %v528
                  %v530 = vld [vmem:[%s380 + $0x1f8] sm:%s373]
                  %531 = vst [vmem:[%s381 + $0x128] sm:%s373] %v530
                  %v532 = vld [vmem:[%s380 + $0x1fc] sm:%s373]
                  %533 = vst [vmem:[%s381 + $0x12c] sm:%s373] %v532
                  %v534 = vld [vmem:[%s380 + $0x200] sm:%s373]
                  %535 = vst [vmem:[%s381 + $0x130] sm:%s373] %v534
                  %v536 = vld [vmem:[%s380 + $0x204] sm:%s373]
                  %537 = vst [vmem:[%s381 + $0x134] sm:%s373] %v536
                  %v538 = vld [vmem:[%s380 + $0x270] sm:%s373]
                  %539 = vst [vmem:[%s381 + $0x138] sm:%s373] %v538
                  %v540 = vld [vmem:[%s380 + $0x274] sm:%s373]
                  %541 = vst [vmem:[%s381 + $0x13c] sm:%s373] %v540
                  %v542 = vld [vmem:[%s380 + $0x278] sm:%s373]
                  %543 = vst [vmem:[%s381 + $0x140] sm:%s373] %v542
                  %v544 = vld [vmem:[%s380 + $0x27c] sm:%s373]
                  %545 = vst [vmem:[%s381 + $0x144] sm:%s373] %v544
                  %v546 = vld [vmem:[%s380 + $0x280] sm:%s373]
                  %547 = vst [vmem:[%s381 + $0x148] sm:%s373] %v546
                  %v548 = vld [vmem:[%s380 + $0x284] sm:%s373]
                  %549 = vst [vmem:[%s381 + $0x14c] sm:%s373] %v548
                  %v550 = vld [vmem:[%s380 + $0x288] sm:%s373]
                  %551 = vst [vmem:[%s381 + $0x150] sm:%s373] %v550
                  %v552 = vld [vmem:[%s380 + $0x28c] sm:%s373]
                  %553 = vst [vmem:[%s381 + $0x154] sm:%s373] %v552
                  %v554 = vld [vmem:[%s380 + $0x290] sm:%s373]
                  %555 = vst [vmem:[%s381 + $0x158] sm:%s373] %v554
                  %v556 = vld [vmem:[%s380 + $0x294] sm:%s373]
                  %557 = vst [vmem:[%s381 + $0x15c] sm:%s373] %v556
                  %v558 = vld [vmem:[%s380 + $0x298] sm:%s373]
                  %559 = vst [vmem:[%s381 + $0x160] sm:%s373] %v558
                  %v560 = vld [vmem:[%s380 + $0x29c] sm:%s373]
                  %561 = vst [vmem:[%s381 + $0x164] sm:%s373] %v560
                  %v562 = vld [vmem:[%s380 + $0x2a0] sm:%s373]
                  %563 = vst [vmem:[%s381 + $0x168] sm:%s373] %v562
                  %v564 = vld [vmem:[%s380 + $0x2a4] sm:%s373]
                  %565 = vst [vmem:[%s381 + $0x16c] sm:%s373] %v564
                  %v566 = vld [vmem:[%s380 + $0x2a8] sm:%s373]
                  %567 = vst [vmem:[%s381 + $0x170] sm:%s373] %v566
                  %v568 = vld [vmem:[%s380 + $0x2ac] sm:%s373]
                  %569 = vst [vmem:[%s381 + $0x174] sm:%s373] %v568
                  %v570 = vld [vmem:[%s380 + $0x2b0] sm:%s373]
                  %571 = vst [vmem:[%s381 + $0x178] sm:%s373] %v570
                  %v572 = vld [vmem:[%s380 + $0x2b4] sm:%s373]
                  %573 = vst [vmem:[%s381 + $0x17c] sm:%s373] %v572
                  %v574 = vld [vmem:[%s380 + $0x2b8] sm:%s373]
                  %575 = vst [vmem:[%s381 + $0x180] sm:%s373] %v574
                  %v576 = vld [vmem:[%s380 + $0x2bc] sm:%s373]
                  %577 = vst [vmem:[%s381 + $0x184] sm:%s373] %v576
                  %v578 = vld [vmem:[%s380 + $0x2c0] sm:%s373]
                  %579 = vst [vmem:[%s381 + $0x188] sm:%s373] %v578
                  %v580 = vld [vmem:[%s380 + $0x2c4] sm:%s373]
                  %581 = vst [vmem:[%s381 + $0x18c] sm:%s373] %v580
                  %v582 = vld [vmem:[%s380 + $0x2c8] sm:%s373]
                  %583 = vst [vmem:[%s381 + $0x190] sm:%s373] %v582
                  %v584 = vld [vmem:[%s380 + $0x2cc] sm:%s373]
                  %585 = vst [vmem:[%s381 + $0x194] sm:%s373] %v584
                  %v586 = vld [vmem:[%s380 + $0x2d0] sm:%s373]
                  %587 = vst [vmem:[%s381 + $0x198] sm:%s373] %v586
                  %v588 = vld [vmem:[%s380 + $0x2d4] sm:%s373]
                  %589 = vst [vmem:[%s381 + $0x19c] sm:%s373] %v588
                $region63: #{net_forward.3} parent=50 // loop_footer
                  %s379 = sadd.s32 1, %s375
                $region64: #{net_forward.3} parent=50 // loop_footer_branch
                  %374 = sbr.rel target = $region60
                $region65: #{net_forward.3} parent=50 // loop_exit
                  _
              $region51: #{net_forward.3} parent=35 // pred_fallthru
                _
            $region36: #{net_forward.3} parent=31 // pred_fallthru
              _
            // Predicated region
            $region37: #{net_forward.3} parent=31 // pred_check
              _
            $region38: #{net_forward.3} parent=31 // pred_check_branch
              %143 = sbr.rel (0) target = $region40
            $region39: #{net_forward.3} parent=31 // pred_region
              %s145 = ssub.s32 16, 1
              loop: start=0, step=1, limit=1
              $region41: #{net_forward.3} parent=39 // loop_pre_header
                _
              $region42: #{net_forward.3} parent=39 // loop_header
                %s147 = sphi 0, %s151
                %p148 = scmp.ge.s32.totalorder %s147, 1
                %s152 = sphi %s137, %s137
                %s153 = sphi %s134, %s134
              $region43: #{net_forward.3} parent=39 // loop_header_branch
                %150 = sbr.rel (%p148) target = $region47
              $region44: #{net_forward.3} parent=39 // loop_body
                %v154 = vld [vmem:[%s152] sm:%s145]
                %155 = vst [vmem:[%s153] sm:%s145] %v154
                %v156 = vld [vmem:[%s152 + $0x4] sm:%s145]
                %157 = vst [vmem:[%s153 + $0x4] sm:%s145] %v156
                %v158 = vld [vmem:[%s152 + $0x8] sm:%s145]
                %159 = vst [vmem:[%s153 + $0x8] sm:%s145] %v158
                %v160 = vld [vmem:[%s152 + $0xc] sm:%s145]
                %161 = vst [vmem:[%s153 + $0xc] sm:%s145] %v160
                %v162 = vld [vmem:[%s152 + $0x10] sm:%s145]
                %163 = vst [vmem:[%s153 + $0x10] sm:%s145] %v162
                %v164 = vld [vmem:[%s152 + $0x14] sm:%s145]
                %165 = vst [vmem:[%s153 + $0x14] sm:%s145] %v164
                %v166 = vld [vmem:[%s152 + $0x18] sm:%s145]
                %167 = vst [vmem:[%s153 + $0x18] sm:%s145] %v166
                %v168 = vld [vmem:[%s152 + $0x1c] sm:%s145]
                %169 = vst [vmem:[%s153 + $0x1c] sm:%s145] %v168
                %v170 = vld [vmem:[%s152 + $0x20] sm:%s145]
                %171 = vst [vmem:[%s153 + $0x20] sm:%s145] %v170
                %v172 = vld [vmem:[%s152 + $0x24] sm:%s145]
                %173 = vst [vmem:[%s153 + $0x24] sm:%s145] %v172
                %v174 = vld [vmem:[%s152 + $0x28] sm:%s145]
                %175 = vst [vmem:[%s153 + $0x28] sm:%s145] %v174
                %v176 = vld [vmem:[%s152 + $0x2c] sm:%s145]
                %177 = vst [vmem:[%s153 + $0x2c] sm:%s145] %v176
                %v178 = vld [vmem:[%s152 + $0x30] sm:%s145]
                %179 = vst [vmem:[%s153 + $0x30] sm:%s145] %v178
                %v180 = vld [vmem:[%s152 + $0x34] sm:%s145]
                %181 = vst [vmem:[%s153 + $0x34] sm:%s145] %v180
                %v182 = vld [vmem:[%s152 + $0x38] sm:%s145]
                %183 = vst [vmem:[%s153 + $0x38] sm:%s145] %v182
                %v184 = vld [vmem:[%s152 + $0x3c] sm:%s145]
                %185 = vst [vmem:[%s153 + $0x3c] sm:%s145] %v184
                %v186 = vld [vmem:[%s152 + $0x40] sm:%s145]
                %187 = vst [vmem:[%s153 + $0x40] sm:%s145] %v186
                %v188 = vld [vmem:[%s152 + $0x44] sm:%s145]
                %189 = vst [vmem:[%s153 + $0x44] sm:%s145] %v188
                %v190 = vld [vmem:[%s152 + $0x48] sm:%s145]
                %191 = vst [vmem:[%s153 + $0x48] sm:%s145] %v190
                %v192 = vld [vmem:[%s152 + $0x4c] sm:%s145]
                %193 = vst [vmem:[%s153 + $0x4c] sm:%s145] %v192
                %v194 = vld [vmem:[%s152 + $0x50] sm:%s145]
                %195 = vst [vmem:[%s153 + $0x50] sm:%s145] %v194
                %v196 = vld [vmem:[%s152 + $0x54] sm:%s145]
                %197 = vst [vmem:[%s153 + $0x54] sm:%s145] %v196
                %v198 = vld [vmem:[%s152 + $0x58] sm:%s145]
                %199 = vst [vmem:[%s153 + $0x58] sm:%s145] %v198
                %v200 = vld [vmem:[%s152 + $0x5c] sm:%s145]
                %201 = vst [vmem:[%s153 + $0x5c] sm:%s145] %v200
                %v202 = vld [vmem:[%s152 + $0x60] sm:%s145]
                %203 = vst [vmem:[%s153 + $0x60] sm:%s145] %v202
                %v204 = vld [vmem:[%s152 + $0x64] sm:%s145]
                %205 = vst [vmem:[%s153 + $0x64] sm:%s145] %v204
                %v206 = vld [vmem:[%s152 + $0xd0] sm:%s145]
                %207 = vst [vmem:[%s153 + $0x68] sm:%s145] %v206
                %v208 = vld [vmem:[%s152 + $0xd4] sm:%s145]
                %209 = vst [vmem:[%s153 + $0x6c] sm:%s145] %v208
                %v210 = vld [vmem:[%s152 + $0xd8] sm:%s145]
                %211 = vst [vmem:[%s153 + $0x70] sm:%s145] %v210
                %v212 = vld [vmem:[%s152 + $0xdc] sm:%s145]
                %213 = vst [vmem:[%s153 + $0x74] sm:%s145] %v212
                %v214 = vld [vmem:[%s152 + $0xe0] sm:%s145]
                %215 = vst [vmem:[%s153 + $0x78] sm:%s145] %v214
                %v216 = vld [vmem:[%s152 + $0xe4] sm:%s145]
                %217 = vst [vmem:[%s153 + $0x7c] sm:%s145] %v216
                %v218 = vld [vmem:[%s152 + $0xe8] sm:%s145]
                %219 = vst [vmem:[%s153 + $0x80] sm:%s145] %v218
                %v220 = vld [vmem:[%s152 + $0xec] sm:%s145]
                %221 = vst [vmem:[%s153 + $0x84] sm:%s145] %v220
                %v222 = vld [vmem:[%s152 + $0xf0] sm:%s145]
                %223 = vst [vmem:[%s153 + $0x88] sm:%s145] %v222
                %v224 = vld [vmem:[%s152 + $0xf4] sm:%s145]
                %225 = vst [vmem:[%s153 + $0x8c] sm:%s145] %v224
                %v226 = vld [vmem:[%s152 + $0xf8] sm:%s145]
                %227 = vst [vmem:[%s153 + $0x90] sm:%s145] %v226
                %v228 = vld [vmem:[%s152 + $0xfc] sm:%s145]
                %229 = vst [vmem:[%s153 + $0x94] sm:%s145] %v228
                %v230 = vld [vmem:[%s152 + $0x100] sm:%s145]
                %231 = vst [vmem:[%s153 + $0x98] sm:%s145] %v230
                %v232 = vld [vmem:[%s152 + $0x104] sm:%s145]
                %233 = vst [vmem:[%s153 + $0x9c] sm:%s145] %v232
                %v234 = vld [vmem:[%s152 + $0x108] sm:%s145]
                %235 = vst [vmem:[%s153 + $0xa0] sm:%s145] %v234
                %v236 = vld [vmem:[%s152 + $0x10c] sm:%s145]
                %237 = vst [vmem:[%s153 + $0xa4] sm:%s145] %v236
                %v238 = vld [vmem:[%s152 + $0x110] sm:%s145]
                %239 = vst [vmem:[%s153 + $0xa8] sm:%s145] %v238
                %v240 = vld [vmem:[%s152 + $0x114] sm:%s145]
                %241 = vst [vmem:[%s153 + $0xac] sm:%s145] %v240
                %v242 = vld [vmem:[%s152 + $0x118] sm:%s145]
                %243 = vst [vmem:[%s153 + $0xb0] sm:%s145] %v242
                %v244 = vld [vmem:[%s152 + $0x11c] sm:%s145]
                %245 = vst [vmem:[%s153 + $0xb4] sm:%s145] %v244
                %v246 = vld [vmem:[%s152 + $0x120] sm:%s145]
                %247 = vst [vmem:[%s153 + $0xb8] sm:%s145] %v246
                %v248 = vld [vmem:[%s152 + $0x124] sm:%s145]
                %249 = vst [vmem:[%s153 + $0xbc] sm:%s145] %v248
                %v250 = vld [vmem:[%s152 + $0x128] sm:%s145]
                %251 = vst [vmem:[%s153 + $0xc0] sm:%s145] %v250
                %v252 = vld [vmem:[%s152 + $0x12c] sm:%s145]
                %253 = vst [vmem:[%s153 + $0xc4] sm:%s145] %v252
                %v254 = vld [vmem:[%s152 + $0x130] sm:%s145]
                %255 = vst [vmem:[%s153 + $0xc8] sm:%s145] %v254
                %v256 = vld [vmem:[%s152 + $0x134] sm:%s145]
                %257 = vst [vmem:[%s153 + $0xcc] sm:%s145] %v256
                %v258 = vld [vmem:[%s152 + $0x1a0] sm:%s145]
                %259 = vst [vmem:[%s153 + $0xd0] sm:%s145] %v258
                %v260 = vld [vmem:[%s152 + $0x1a4] sm:%s145]
                %261 = vst [vmem:[%s153 + $0xd4] sm:%s145] %v260
                %v262 = vld [vmem:[%s152 + $0x1a8] sm:%s145]
                %263 = vst [vmem:[%s153 + $0xd8] sm:%s145] %v262
                %v264 = vld [vmem:[%s152 + $0x1ac] sm:%s145]
                %265 = vst [vmem:[%s153 + $0xdc] sm:%s145] %v264
                %v266 = vld [vmem:[%s152 + $0x1b0] sm:%s145]
                %267 = vst [vmem:[%s153 + $0xe0] sm:%s145] %v266
                %v268 = vld [vmem:[%s152 + $0x1b4] sm:%s145]
                %269 = vst [vmem:[%s153 + $0xe4] sm:%s145] %v268
                %v270 = vld [vmem:[%s152 + $0x1b8] sm:%s145]
                %271 = vst [vmem:[%s153 + $0xe8] sm:%s145] %v270
                %v272 = vld [vmem:[%s152 + $0x1bc] sm:%s145]
                %273 = vst [vmem:[%s153 + $0xec] sm:%s145] %v272
                %v274 = vld [vmem:[%s152 + $0x1c0] sm:%s145]
                %275 = vst [vmem:[%s153 + $0xf0] sm:%s145] %v274
                %v276 = vld [vmem:[%s152 + $0x1c4] sm:%s145]
                %277 = vst [vmem:[%s153 + $0xf4] sm:%s145] %v276
                %v278 = vld [vmem:[%s152 + $0x1c8] sm:%s145]
                %279 = vst [vmem:[%s153 + $0xf8] sm:%s145] %v278
                %v280 = vld [vmem:[%s152 + $0x1cc] sm:%s145]
                %281 = vst [vmem:[%s153 + $0xfc] sm:%s145] %v280
                %v282 = vld [vmem:[%s152 + $0x1d0] sm:%s145]
                %283 = vst [vmem:[%s153 + $0x100] sm:%s145] %v282
                %v284 = vld [vmem:[%s152 + $0x1d4] sm:%s145]
                %285 = vst [vmem:[%s153 + $0x104] sm:%s145] %v284
                %v286 = vld [vmem:[%s152 + $0x1d8] sm:%s145]
                %287 = vst [vmem:[%s153 + $0x108] sm:%s145] %v286
                %v288 = vld [vmem:[%s152 + $0x1dc] sm:%s145]
                %289 = vst [vmem:[%s153 + $0x10c] sm:%s145] %v288
                %v290 = vld [vmem:[%s152 + $0x1e0] sm:%s145]
                %291 = vst [vmem:[%s153 + $0x110] sm:%s145] %v290
                %v292 = vld [vmem:[%s152 + $0x1e4] sm:%s145]
                %293 = vst [vmem:[%s153 + $0x114] sm:%s145] %v292
                %v294 = vld [vmem:[%s152 + $0x1e8] sm:%s145]
                %295 = vst [vmem:[%s153 + $0x118] sm:%s145] %v294
                %v296 = vld [vmem:[%s152 + $0x1ec] sm:%s145]
                %297 = vst [vmem:[%s153 + $0x11c] sm:%s145] %v296
                %v298 = vld [vmem:[%s152 + $0x1f0] sm:%s145]
                %299 = vst [vmem:[%s153 + $0x120] sm:%s145] %v298
                %v300 = vld [vmem:[%s152 + $0x1f4] sm:%s145]
                %301 = vst [vmem:[%s153 + $0x124] sm:%s145] %v300
                %v302 = vld [vmem:[%s152 + $0x1f8] sm:%s145]
                %303 = vst [vmem:[%s153 + $0x128] sm:%s145] %v302
                %v304 = vld [vmem:[%s152 + $0x1fc] sm:%s145]
                %305 = vst [vmem:[%s153 + $0x12c] sm:%s145] %v304
                %v306 = vld [vmem:[%s152 + $0x200] sm:%s145]
                %307 = vst [vmem:[%s153 + $0x130] sm:%s145] %v306
                %v308 = vld [vmem:[%s152 + $0x204] sm:%s145]
                %309 = vst [vmem:[%s153 + $0x134] sm:%s145] %v308
                %v310 = vld [vmem:[%s152 + $0x270] sm:%s145]
                %311 = vst [vmem:[%s153 + $0x138] sm:%s145] %v310
                %v312 = vld [vmem:[%s152 + $0x274] sm:%s145]
                %313 = vst [vmem:[%s153 + $0x13c] sm:%s145] %v312
                %v314 = vld [vmem:[%s152 + $0x278] sm:%s145]
                %315 = vst [vmem:[%s153 + $0x140] sm:%s145] %v314
                %v316 = vld [vmem:[%s152 + $0x27c] sm:%s145]
                %317 = vst [vmem:[%s153 + $0x144] sm:%s145] %v316
                %v318 = vld [vmem:[%s152 + $0x280] sm:%s145]
                %319 = vst [vmem:[%s153 + $0x148] sm:%s145] %v318
                %v320 = vld [vmem:[%s152 + $0x284] sm:%s145]
                %321 = vst [vmem:[%s153 + $0x14c] sm:%s145] %v320
                %v322 = vld [vmem:[%s152 + $0x288] sm:%s145]
                %323 = vst [vmem:[%s153 + $0x150] sm:%s145] %v322
                %v324 = vld [vmem:[%s152 + $0x28c] sm:%s145]
                %325 = vst [vmem:[%s153 + $0x154] sm:%s145] %v324
                %v326 = vld [vmem:[%s152 + $0x290] sm:%s145]
                %327 = vst [vmem:[%s153 + $0x158] sm:%s145] %v326
                %v328 = vld [vmem:[%s152 + $0x294] sm:%s145]
                %329 = vst [vmem:[%s153 + $0x15c] sm:%s145] %v328
                %v330 = vld [vmem:[%s152 + $0x298] sm:%s145]
                %331 = vst [vmem:[%s153 + $0x160] sm:%s145] %v330
                %v332 = vld [vmem:[%s152 + $0x29c] sm:%s145]
                %333 = vst [vmem:[%s153 + $0x164] sm:%s145] %v332
                %v334 = vld [vmem:[%s152 + $0x2a0] sm:%s145]
                %335 = vst [vmem:[%s153 + $0x168] sm:%s145] %v334
                %v336 = vld [vmem:[%s152 + $0x2a4] sm:%s145]
                %337 = vst [vmem:[%s153 + $0x16c] sm:%s145] %v336
                %v338 = vld [vmem:[%s152 + $0x2a8] sm:%s145]
                %339 = vst [vmem:[%s153 + $0x170] sm:%s145] %v338
                %v340 = vld [vmem:[%s152 + $0x2ac] sm:%s145]
                %341 = vst [vmem:[%s153 + $0x174] sm:%s145] %v340
                %v342 = vld [vmem:[%s152 + $0x2b0] sm:%s145]
                %343 = vst [vmem:[%s153 + $0x178] sm:%s145] %v342
                %v344 = vld [vmem:[%s152 + $0x2b4] sm:%s145]
                %345 = vst [vmem:[%s153 + $0x17c] sm:%s145] %v344
                %v346 = vld [vmem:[%s152 + $0x2b8] sm:%s145]
                %347 = vst [vmem:[%s153 + $0x180] sm:%s145] %v346
                %v348 = vld [vmem:[%s152 + $0x2bc] sm:%s145]
                %349 = vst [vmem:[%s153 + $0x184] sm:%s145] %v348
                %v350 = vld [vmem:[%s152 + $0x2c0] sm:%s145]
                %351 = vst [vmem:[%s153 + $0x188] sm:%s145] %v350
                %v352 = vld [vmem:[%s152 + $0x2c4] sm:%s145]
                %353 = vst [vmem:[%s153 + $0x18c] sm:%s145] %v352
                %v354 = vld [vmem:[%s152 + $0x2c8] sm:%s145]
                %355 = vst [vmem:[%s153 + $0x190] sm:%s145] %v354
                %v356 = vld [vmem:[%s152 + $0x2cc] sm:%s145]
                %357 = vst [vmem:[%s153 + $0x194] sm:%s145] %v356
                %v358 = vld [vmem:[%s152 + $0x2d0] sm:%s145]
                %359 = vst [vmem:[%s153 + $0x198] sm:%s145] %v358
                %v360 = vld [vmem:[%s152 + $0x2d4] sm:%s145]
                %361 = vst [vmem:[%s153 + $0x19c] sm:%s145] %v360
              $region45: #{net_forward.3} parent=39 // loop_footer
                %s151 = sadd.s32 1, %s147
              $region46: #{net_forward.3} parent=39 // loop_footer_branch
                %146 = sbr.rel target = $region42
              $region47: #{net_forward.3} parent=39 // loop_exit
                _
            $region40: #{net_forward.3} parent=31 // pred_fallthru
              _
          $region32: #{net_forward.3} parent=27 // pred_fallthru
            _
          %590 = vnop
        $region28: #{net_forward.3} parent=23 // pred_fallthru
          _
      $region24: #{net_forward.3} parent=5 // pred_fallthru
        _
      %p591 = scmp.le.s32.totalorder 1, %s9
      %p592 = scmp.lt.s32.totalorder %s9, 3
      %p593 = pnand %p591, %p592
      %p594 = pneg %p593
      // Predicated region
      $region66: #{net_forward.3} parent=5 // pred_check
        _
      $region67: #{net_forward.3} parent=5 // pred_check_branch
        %596 = sbr.rel (%p593) target = $region69
      $region68: #{net_forward.3} parent=5 // pred_region
        %s597 = ssub.s32 %s9, 1
        %s598 = sand.u32 %s22, 1
        %s599 = sand.u32 %s22, 1
        %s600 = smul.addr %s599, 416
        %s601 = scalar_lea.vmem [#allocation2], %s600
        // Predicated region
        $region70: #{net_forward.3} parent=68 // pred_check
          %p602 = pneg %p35
        $region71: #{net_forward.3} parent=68 // pred_check_branch
          %604 = sbr.rel (%p602) target = $region73
        $region72: #{net_forward.3} parent=68 // pred_region
          _
        $region73: #{net_forward.3} parent=68 // pred_fallthru
          _
        %s605 = sand.u32 %s22, 1
        %s606 = sand.u32 %s22, 1
        %s607 = smul.addr %s606, 416
        %s608 = scalar_lea.vmem [#allocation2], %s607
        %p609 = pneg %p35
        %p610 = pneg %p32
        %p611 = pneg %p56
        %p612 = pneg %p53
        %p613 = pneg %p77
        %p614 = pneg %p74
        %p615 = pneg %p103
        %p616 = pneg %p100
        %s617 = smul.u32 26, %s14
        %p618 = scmp.lt.s32.totalorder %s617, 51
        %s619 = scalar_select %p618, %s617, 51
        %s620 = smul.addr %s619, 4
        %s621 = scalar_lea.vmem %s3, %s620
        %s622 = smul.u32 26, %s14
        %s623 = smul.u32 26, %s14
        %p624 = scmp.lt.s32.totalorder %s623, 51
        %s625 = scalar_select %p624, %s623, 51
        %s626 = smul.addr %s625, 4
        %s627 = scalar_lea.vmem %s3, %s626
        %s628 = smul.u32 26, %s14
        %v630 = vld [vmem:[%s601] sm:$0xf]
        %v631 = vld [vmem:[%s601 + $0x4] sm:$0xf]
        %v632 = vld [vmem:[%s601 + $0x8] sm:$0xf]
        %v633 = vld [vmem:[%s601 + $0xc] sm:$0xf]
        %v634 = vld [vmem:[%s601 + $0x10] sm:$0xf]
        %v635 = vld [vmem:[%s601 + $0x14] sm:$0xf]
        %v636 = vld [vmem:[%s601 + $0x18] sm:$0xf]
        %v637 = vld [vmem:[%s601 + $0x1c] sm:$0xf]
        %v638 = vld [vmem:[%s601 + $0x20] sm:$0xf]
        %v639 = vld [vmem:[%s601 + $0x24] sm:$0xf]
        %v640 = vld [vmem:[%s601 + $0x28] sm:$0xf]
        %v641 = vld [vmem:[%s601 + $0x2c] sm:$0xf]
        %v642 = vld [vmem:[%s601 + $0x30] sm:$0xf]
        %v643 = vld [vmem:[%s601 + $0x34] sm:$0xf]
        %v644 = vld [vmem:[%s601 + $0x38] sm:$0xf]
        %v645 = vld [vmem:[%s601 + $0x3c] sm:$0xf]
        %v646 = vld [vmem:[%s601 + $0x40] sm:$0xf]
        %v647 = vld [vmem:[%s601 + $0x44] sm:$0xf]
        %v648 = vld [vmem:[%s601 + $0x48] sm:$0xf]
        %v649 = vld [vmem:[%s601 + $0x4c] sm:$0xf]
        %v650 = vld [vmem:[%s601 + $0x50] sm:$0xf]
        %v651 = vld [vmem:[%s601 + $0x54] sm:$0xf]
        %v652 = vld [vmem:[%s601 + $0x58] sm:$0xf]
        %v653 = vld [vmem:[%s601 + $0x5c] sm:$0xf]
        %v654 = vld [vmem:[%s601 + $0x60] sm:$0xf]
        %v655 = vld [vmem:[%s601 + $0x64] sm:$0xf]
        %v656 = vld [vmem:[%s601 + $0x68] sm:$0xf]
        %v657 = vld [vmem:[%s601 + $0x6c] sm:$0xf]
        %v658 = vld [vmem:[%s601 + $0x70] sm:$0xf]
        %v659 = vld [vmem:[%s601 + $0x74] sm:$0xf]
        %v660 = vld [vmem:[%s601 + $0x78] sm:$0xf]
        %v661 = vld [vmem:[%s601 + $0x7c] sm:$0xf]
        %v662 = vld [vmem:[%s601 + $0x80] sm:$0xf]
        %v663 = vld [vmem:[%s601 + $0x84] sm:$0xf]
        %v664 = vld [vmem:[%s601 + $0x88] sm:$0xf]
        %v665 = vld [vmem:[%s601 + $0x8c] sm:$0xf]
        %v666 = vld [vmem:[%s601 + $0x90] sm:$0xf]
        %v667 = vld [vmem:[%s601 + $0x94] sm:$0xf]
        %v668 = vld [vmem:[%s601 + $0x98] sm:$0xf]
        %v669 = vld [vmem:[%s601 + $0x9c] sm:$0xf]
        %v670 = vld [vmem:[%s601 + $0xa0] sm:$0xf]
        %v671 = vld [vmem:[%s601 + $0xa4] sm:$0xf]
        %v672 = vld [vmem:[%s601 + $0xa8] sm:$0xf]
        %v673 = vld [vmem:[%s601 + $0xac] sm:$0xf]
        %v674 = vld [vmem:[%s601 + $0xb0] sm:$0xf]
        %v675 = vld [vmem:[%s601 + $0xb4] sm:$0xf]
        %v676 = vld [vmem:[%s601 + $0xb8] sm:$0xf]
        %v677 = vld [vmem:[%s601 + $0xbc] sm:$0xf]
        %v678 = vld [vmem:[%s601 + $0xc0] sm:$0xf]
        %v679 = vld [vmem:[%s601 + $0xc4] sm:$0xf]
        %v680 = vld [vmem:[%s601 + $0xc8] sm:$0xf]
        %v681 = vld [vmem:[%s601 + $0xcc] sm:$0xf]
        %v682 = vld [vmem:[%s601 + $0xd0] sm:$0xf]
        %v683 = vld [vmem:[%s601 + $0xd4] sm:$0xf]
        %v684 = vld [vmem:[%s601 + $0xd8] sm:$0xf]
        %v685 = vld [vmem:[%s601 + $0xdc] sm:$0xf]
        %v686 = vld [vmem:[%s601 + $0xe0] sm:$0xf]
        %v687 = vld [vmem:[%s601 + $0xe4] sm:$0xf]
        %v688 = vld [vmem:[%s601 + $0xe8] sm:$0xf]
        %v689 = vld [vmem:[%s601 + $0xec] sm:$0xf]
        %v690 = vld [vmem:[%s601 + $0xf0] sm:$0xf]
        %v691 = vld [vmem:[%s601 + $0xf4] sm:$0xf]
        %v692 = vld [vmem:[%s601 + $0xf8] sm:$0xf]
        %v693 = vld [vmem:[%s601 + $0xfc] sm:$0xf]
        %v694 = vld [vmem:[%s601 + $0x100] sm:$0xf]
        %v695 = vld [vmem:[%s601 + $0x104] sm:$0xf]
        %v696 = vld [vmem:[%s601 + $0x108] sm:$0xf]
        %v697 = vld [vmem:[%s601 + $0x10c] sm:$0xf]
        %v698 = vld [vmem:[%s601 + $0x110] sm:$0xf]
        %v699 = vld [vmem:[%s601 + $0x114] sm:$0xf]
        %v700 = vld [vmem:[%s601 + $0x118] sm:$0xf]
        %v701 = vld [vmem:[%s601 + $0x11c] sm:$0xf]
        %v702 = vld [vmem:[%s601 + $0x120] sm:$0xf]
        %v703 = vld [vmem:[%s601 + $0x124] sm:$0xf]
        %v704 = vld [vmem:[%s601 + $0x128] sm:$0xf]
        %v705 = vld [vmem:[%s601 + $0x12c] sm:$0xf]
        %v706 = vld [vmem:[%s601 + $0x130] sm:$0xf]
        %v707 = vld [vmem:[%s601 + $0x134] sm:$0xf]
        %v708 = vld [vmem:[%s601 + $0x138] sm:$0xf]
        %v709 = vld [vmem:[%s601 + $0x13c] sm:$0xf]
        %v710 = vld [vmem:[%s601 + $0x140] sm:$0xf]
        %v711 = vld [vmem:[%s601 + $0x144] sm:$0xf]
        %v712 = vld [vmem:[%s601 + $0x148] sm:$0xf]
        %v713 = vld [vmem:[%s601 + $0x14c] sm:$0xf]
        %v714 = vld [vmem:[%s601 + $0x150] sm:$0xf]
        %v715 = vld [vmem:[%s601 + $0x154] sm:$0xf]
        %v716 = vld [vmem:[%s601 + $0x158] sm:$0xf]
        %v717 = vld [vmem:[%s601 + $0x15c] sm:$0xf]
        %v718 = vld [vmem:[%s601 + $0x160] sm:$0xf]
        %v719 = vld [vmem:[%s601 + $0x164] sm:$0xf]
        %v720 = vld [vmem:[%s601 + $0x168] sm:$0xf]
        %v721 = vld [vmem:[%s601 + $0x16c] sm:$0xf]
        %v722 = vld [vmem:[%s601 + $0x170] sm:$0xf]
        %v723 = vld [vmem:[%s601 + $0x174] sm:$0xf]
        %v724 = vld [vmem:[%s601 + $0x178] sm:$0xf]
        %v725 = vld [vmem:[%s601 + $0x17c] sm:$0xf]
        %v726 = vld [vmem:[%s601 + $0x180] sm:$0xf]
        %v727 = vld [vmem:[%s601 + $0x184] sm:$0xf]
        %v728 = vld [vmem:[%s601 + $0x188] sm:$0xf]
        %v729 = vld [vmem:[%s601 + $0x18c] sm:$0xf]
        %v730 = vld [vmem:[%s601 + $0x190] sm:$0xf]
        %v731 = vld [vmem:[%s601 + $0x194] sm:$0xf]
        %v732 = vld [vmem:[%s601 + $0x198] sm:$0xf]
        %v733 = vld [vmem:[%s601 + $0x19c] sm:$0xf]
        %v734 = vld [vmem:[%s1] sm:$0xf]
        %v735 = vld [vmem:[%s1 + $0x4] sm:$0xf]
        %v736 = vld [vmem:[%s1 + $0x8] sm:$0xf]
        %v737 = vld [vmem:[%s1 + $0xc] sm:$0xf]
        %v738 = vld [vmem:[%s1 + $0x10] sm:$0xf]
        %v739 = vld [vmem:[%s1 + $0x14] sm:$0xf]
        %v740 = vld [vmem:[%s1 + $0x18] sm:$0xf]
        %v741 = vld [vmem:[%s1 + $0x1c] sm:$0xf]
        %v742 = vld [vmem:[%s1 + $0x20] sm:$0xf]
        %v743 = vld [vmem:[%s1 + $0x24] sm:$0x3]
        %v848 = vunpack.c.l.b16 %v630
        %v849 = vunpack.c.l.b16 %v631
        %v850 = vunpack.c.l.b16 %v632
        %v851 = vunpack.c.l.b16 %v633
        %v852 = vunpack.c.l.b16 %v634
        %v853 = vunpack.c.l.b16 %v635
        %v854 = vunpack.c.l.b16 %v636
        %v855 = vunpack.c.l.b16 %v637
        %v856 = vunpack.c.l.b16 %v638
        %v857 = vunpack.c.l.b16 %v639
        %v858 = vunpack.c.l.b16 %v640
        %v859 = vunpack.c.l.b16 %v641
        %v860 = vunpack.c.l.b16 %v642
        %v861 = vunpack.c.l.b16 %v643
        %v862 = vunpack.c.l.b16 %v644
        %v863 = vunpack.c.l.b16 %v645
        %v864 = vunpack.c.l.b16 %v646
        %v865 = vunpack.c.l.b16 %v647
        %v866 = vunpack.c.l.b16 %v648
        %v867 = vunpack.c.l.b16 %v649
        %v868 = vunpack.c.l.b16 %v650
        %v869 = vunpack.c.l.b16 %v651
        %v870 = vunpack.c.l.b16 %v652
        %v871 = vunpack.c.l.b16 %v653
        %v872 = vunpack.c.l.b16 %v654
        %v873 = vunpack.c.l.b16 %v655
        %v874 = vunpack.c.l.b16 %v656
        %v875 = vunpack.c.l.b16 %v657
        %v876 = vunpack.c.l.b16 %v658
        %v877 = vunpack.c.l.b16 %v659
        %v878 = vunpack.c.l.b16 %v660
        %v879 = vunpack.c.l.b16 %v661
        %v880 = vunpack.c.l.b16 %v662
        %v881 = vunpack.c.l.b16 %v663
        %v882 = vunpack.c.l.b16 %v664
        %v883 = vunpack.c.l.b16 %v665
        %v884 = vunpack.c.l.b16 %v666
        %v885 = vunpack.c.l.b16 %v667
        %v886 = vunpack.c.l.b16 %v668
        %v887 = vunpack.c.l.b16 %v669
        %v888 = vunpack.c.l.b16 %v670
        %v889 = vunpack.c.l.b16 %v671
        %v890 = vunpack.c.l.b16 %v672
        %v891 = vunpack.c.l.b16 %v673
        %v892 = vunpack.c.l.b16 %v674
        %v893 = vunpack.c.l.b16 %v675
        %v894 = vunpack.c.l.b16 %v676
        %v895 = vunpack.c.l.b16 %v677
        %v896 = vunpack.c.l.b16 %v678
        %v897 = vunpack.c.l.b16 %v679
        %v898 = vunpack.c.l.b16 %v680
        %v899 = vunpack.c.l.b16 %v681
        %v900 = vunpack.c.l.b16 %v682
        %v901 = vunpack.c.l.b16 %v683
        %v902 = vunpack.c.l.b16 %v684
        %v903 = vunpack.c.l.b16 %v685
        %v904 = vunpack.c.l.b16 %v686
        %v905 = vunpack.c.l.b16 %v687
        %v906 = vunpack.c.l.b16 %v688
        %v907 = vunpack.c.l.b16 %v689
        %v908 = vunpack.c.l.b16 %v690
        %v909 = vunpack.c.l.b16 %v691
        %v910 = vunpack.c.l.b16 %v692
        %v911 = vunpack.c.l.b16 %v693
        %v912 = vunpack.c.l.b16 %v694
        %v913 = vunpack.c.l.b16 %v695
        %v914 = vunpack.c.l.b16 %v696
        %v915 = vunpack.c.l.b16 %v697
        %v916 = vunpack.c.l.b16 %v698
        %v917 = vunpack.c.l.b16 %v699
        %v918 = vunpack.c.l.b16 %v700
        %v919 = vunpack.c.l.b16 %v701
        %v920 = vunpack.c.l.b16 %v702
        %v921 = vunpack.c.l.b16 %v703
        %v922 = vunpack.c.l.b16 %v704
        %v923 = vunpack.c.l.b16 %v705
        %v924 = vunpack.c.l.b16 %v706
        %v925 = vunpack.c.l.b16 %v707
        %v926 = vunpack.c.l.b16 %v708
        %v927 = vunpack.c.l.b16 %v709
        %v928 = vunpack.c.l.b16 %v710
        %v929 = vunpack.c.l.b16 %v711
        %v930 = vunpack.c.l.b16 %v712
        %v931 = vunpack.c.l.b16 %v713
        %v932 = vunpack.c.l.b16 %v714
        %v933 = vunpack.c.l.b16 %v715
        %v934 = vunpack.c.l.b16 %v716
        %v935 = vunpack.c.l.b16 %v717
        %v936 = vunpack.c.l.b16 %v718
        %v937 = vunpack.c.l.b16 %v719
        %v938 = vunpack.c.l.b16 %v720
        %v939 = vunpack.c.l.b16 %v721
        %v940 = vunpack.c.l.b16 %v722
        %v941 = vunpack.c.l.b16 %v723
        %v942 = vunpack.c.l.b16 %v724
        %v943 = vunpack.c.l.b16 %v725
        %v944 = vunpack.c.l.b16 %v726
        %v945 = vunpack.c.l.b16 %v727
        %v946 = vunpack.c.l.b16 %v728
        %v947 = vunpack.c.l.b16 %v729
        %v948 = vunpack.c.l.b16 %v730
        %v949 = vunpack.c.l.b16 %v731
        %v950 = vunpack.c.l.b16 %v732
        %v951 = vunpack.c.l.b16 %v733
        %v952 = vpack.c.b16 %v849, %v848
        %v953 = vpack.c.b16 %v851, %v850
        %v954 = vpack.c.b16 %v853, %v852
        %v955 = vpack.c.b16 %v855, %v854
        %v956 = vpack.c.b16 %v857, %v856
        %v957 = vpack.c.b16 %v859, %v858
        %v958 = vpack.c.b16 %v861, %v860
        %v959 = vpack.c.b16 %v863, %v862
        %v960 = vpack.c.b16 %v865, %v864
        %v961 = vpack.c.b16 %v867, %v866
        %v962 = vpack.c.b16 %v869, %v868
        %v963 = vpack.c.b16 %v871, %v870
        %v964 = vpack.c.b16 %v873, %v872
        %v965 = vpack.c.b16 %v875, %v874
        %v966 = vpack.c.b16 %v877, %v876
        %v967 = vpack.c.b16 %v879, %v878
        %v968 = vpack.c.b16 %v881, %v880
        %v969 = vpack.c.b16 %v883, %v882
        %v970 = vpack.c.b16 %v885, %v884
        %v971 = vpack.c.b16 %v887, %v886
        %v972 = vpack.c.b16 %v889, %v888
        %v973 = vpack.c.b16 %v891, %v890
        %v974 = vpack.c.b16 %v893, %v892
        %v975 = vpack.c.b16 %v895, %v894
        %v976 = vpack.c.b16 %v897, %v896
        %v977 = vpack.c.b16 %v899, %v898
        %v978 = vpack.c.b16 %v901, %v900
        %v979 = vpack.c.b16 %v903, %v902
        %v980 = vpack.c.b16 %v905, %v904
        %v981 = vpack.c.b16 %v907, %v906
        %v982 = vpack.c.b16 %v909, %v908
        %v983 = vpack.c.b16 %v911, %v910
        %v984 = vpack.c.b16 %v913, %v912
        %v985 = vpack.c.b16 %v915, %v914
        %v986 = vpack.c.b16 %v917, %v916
        %v987 = vpack.c.b16 %v919, %v918
        %v988 = vpack.c.b16 %v921, %v920
        %v989 = vpack.c.b16 %v923, %v922
        %v990 = vpack.c.b16 %v925, %v924
        %v991 = vpack.c.b16 %v927, %v926
        %v992 = vpack.c.b16 %v929, %v928
        %v993 = vpack.c.b16 %v931, %v930
        %v994 = vpack.c.b16 %v933, %v932
        %v995 = vpack.c.b16 %v935, %v934
        %v996 = vpack.c.b16 %v937, %v936
        %v997 = vpack.c.b16 %v939, %v938
        %v998 = vpack.c.b16 %v941, %v940
        %v999 = vpack.c.b16 %v943, %v942
        %v1000 = vpack.c.b16 %v945, %v944
        %v1001 = vpack.c.b16 %v947, %v946
        %v1002 = vpack.c.b16 %v949, %v948
        %v1003 = vpack.c.b16 %v951, %v950
        %v1014 = vunpack.c.l.b16 %v734
        %v1015 = vunpack.c.l.b16 %v735
        %v1016 = vunpack.c.l.b16 %v736
        %v1017 = vunpack.c.l.b16 %v737
        %v1018 = vunpack.c.l.b16 %v738
        %v1019 = vunpack.c.l.b16 %v739
        %v1020 = vunpack.c.l.b16 %v740
        %v1021 = vunpack.c.l.b16 %v741
        %v1022 = vunpack.c.l.b16 %v742
        %v1023 = vunpack.c.l.b16 %v743
        %v1024 = vpack.c.b16 %v1015, %v1014
        %v1025 = vpack.c.b16 %v1017, %v1016
        %v1026 = vpack.c.b16 %v1019, %v1018
        %v1027 = vpack.c.b16 %v1021, %v1020
        %v1028 = vpack.c.b16 %v1023, %v1022
        %vm1033 = vcmask 613376
        %v1035 = vsel %vm1033, %v952, 0
        %v1038 = vsel %vm1033, %v953, 0
        %v1041 = vsel %vm1033, %v954, 0
        %v1044 = vsel %vm1033, %v955, 0
        %v1047 = vsel %vm1033, %v956, 0
        %v1050 = vsel %vm1033, %v957, 0
        %v1053 = vsel %vm1033, %v958, 0
        %v1056 = vsel %vm1033, %v959, 0
        %v1059 = vsel %vm1033, %v960, 0
        %v1062 = vsel %vm1033, %v961, 0
        %v1065 = vsel %vm1033, %v962, 0
        %v1068 = vsel %vm1033, %v963, 0
        %v1071 = vsel %vm1033, %v964, 0
        %v1074 = vsel %vm1033, %v965, 0
        %v1077 = vsel %vm1033, %v966, 0
        %v1080 = vsel %vm1033, %v967, 0
        %v1083 = vsel %vm1033, %v968, 0
        %v1086 = vsel %vm1033, %v969, 0
        %v1089 = vsel %vm1033, %v970, 0
        %v1092 = vsel %vm1033, %v971, 0
        %v1095 = vsel %vm1033, %v972, 0
        %v1098 = vsel %vm1033, %v973, 0
        %v1101 = vsel %vm1033, %v974, 0
        %v1104 = vsel %vm1033, %v975, 0
        %v1107 = vsel %vm1033, %v976, 0
        %v1110 = vsel %vm1033, %v977, 0
        %v1113 = vsel %vm1033, %v978, 0
        %v1116 = vsel %vm1033, %v979, 0
        %v1119 = vsel %vm1033, %v980, 0
        %v1122 = vsel %vm1033, %v981, 0
        %v1125 = vsel %vm1033, %v982, 0
        %v1128 = vsel %vm1033, %v983, 0
        %v1131 = vsel %vm1033, %v984, 0
        %v1134 = vsel %vm1033, %v985, 0
        %v1137 = vsel %vm1033, %v986, 0
        %v1140 = vsel %vm1033, %v987, 0
        %v1143 = vsel %vm1033, %v988, 0
        %v1146 = vsel %vm1033, %v989, 0
        %v1149 = vsel %vm1033, %v990, 0
        %v1152 = vsel %vm1033, %v991, 0
        %v1155 = vsel %vm1033, %v992, 0
        %v1158 = vsel %vm1033, %v993, 0
        %v1161 = vsel %vm1033, %v994, 0
        %v1164 = vsel %vm1033, %v995, 0
        %v1167 = vsel %vm1033, %v996, 0
        %v1170 = vsel %vm1033, %v997, 0
        %v1173 = vsel %vm1033, %v998, 0
        %v1176 = vsel %vm1033, %v999, 0
        %v1179 = vsel %vm1033, %v1000, 0
        %v1182 = vsel %vm1033, %v1001, 0
        %v1185 = vsel %vm1033, %v1002, 0
        %v1188 = vsel %vm1033, %v1003, 0
        %vm1190 = vcmask 1044480
        %vm1191 = vcmask 1045504
        %v1192 = vsel %vm1190, 4294967295, 65535
        %v1193 = vsel %vm1191, %v1192, 0
        %v1195 = vand.u32 %v1028, %v1193
        %1197 = vmatprep.subr.bf16.mxu0 0
        %1198 = vmatpush1.bf16.msra.mxu0 0
        %1199 = vmatprep.subr.bf16.mxu0 0
        %1200 = vmatpush1.bf16.msra.mxu0 0
        %1201 = vmatprep.subr.bf16.mxu0 0
        %1202 = vmatpush1.bf16.msra.mxu0 0
        %1203 = vmatprep.subr.bf16.mxu0 0
        %1204 = vmatpush1.bf16.msra.mxu0 %v1195
        %1205 = vmatprep.subr.bf16.mxu0 0
        %1206 = vmatpush1.bf16.msra.mxu0 %v1027
        %1207 = vmatprep.subr.bf16.mxu0 0
        %1208 = vmatpush1.bf16.msra.mxu0 %v1026
        %1209 = vmatprep.subr.bf16.mxu0 0
        %1210 = vmatpush1.bf16.msra.mxu0 %v1025
        %1211 = vmatprep.subr.bf16.mxu0 0
        %1212 = vmatpush1.bf16.msra.mxu0 %v1024
        %1213 = vmatprep.subr.bf16.mxu0 0
        %1214 = vmatpush2.bf16.msra.mxu0 0
        %1215 = vmatprep.subr.bf16.mxu0 0
        %1216 = vmatpush2.bf16.msra.mxu0 0
        %1217 = vmatprep.subr.bf16.mxu0 0
        %1218 = vmatpush2.bf16.msra.mxu0 0
        %1219 = vmatprep.subr.bf16.mxu0 0
        %1220 = vmatpush2.bf16.msra.mxu0 0
        %1221 = vmatprep.subr.bf16.mxu0 0
        %1222 = vmatpush2.bf16.msra.mxu0 0
        %1223 = vmatprep.subr.bf16.mxu0 0
        %1224 = vmatpush2.bf16.msra.mxu0 0
        %1225 = vmatprep.subr.bf16.mxu0 0
        %1226 = vmatpush2.bf16.msra.mxu0 0
        %1227 = vmatprep.subr.bf16.mxu0 0
        %1228 = vmatpush2.bf16.msra.mxu0 0
        %1229 = vmatprep.mubr.bf16.mxu0 0
        %1230 = vmatmul.mubr.bf16.gmra.mxu0 %v1035
        %v1231 = vpop.f32.mrf.mxu0
        %v1232 = vadd.f32 0.0, %v1231
        %v1233 = vpop.f32.mrf.mxu0
        %v1234 = vpop.f32.mrf.mxu0
        %v1235 = vadd.f32 0.0, %v1234
        %v1236 = vpop.f32.mrf.mxu0
        %1237 = vmatprep.mubr.bf16.mxu0 0
        %1238 = vmatmul.mubr.bf16.gmra.mxu0 %v1038
        %v1239 = vpop.f32.mrf.mxu0
        %v1240 = vadd.f32 0.0, %v1239
        %v1241 = vpop.f32.mrf.mxu0
        %v1242 = vpop.f32.mrf.mxu0
        %v1243 = vadd.f32 0.0, %v1242
        %v1244 = vpop.f32.mrf.mxu0
        %1245 = vmatprep.mubr.bf16.mxu0 0
        %1246 = vmatmul.mubr.bf16.gmra.mxu0 %v1041
        %v1247 = vpop.f32.mrf.mxu0
        %v1248 = vadd.f32 0.0, %v1247
        %v1249 = vpop.f32.mrf.mxu0
        %v1250 = vpop.f32.mrf.mxu0
        %v1251 = vadd.f32 0.0, %v1250
        %v1252 = vpop.f32.mrf.mxu0
        %1253 = vmatprep.mubr.bf16.mxu0 0
        %1254 = vmatmul.mubr.bf16.gmra.mxu0 %v1044
        %v1255 = vpop.f32.mrf.mxu0
        %v1256 = vadd.f32 0.0, %v1255
        %v1257 = vpop.f32.mrf.mxu0
        %v1258 = vpop.f32.mrf.mxu0
        %v1259 = vadd.f32 0.0, %v1258
        %v1260 = vpop.f32.mrf.mxu0
        %1261 = vmatprep.mubr.bf16.mxu0 0
        %1262 = vmatmul.mubr.bf16.gmra.mxu0 %v1047
        %v1263 = vpop.f32.mrf.mxu0
        %v1264 = vadd.f32 0.0, %v1263
        %v1265 = vpop.f32.mrf.mxu0
        %v1266 = vpop.f32.mrf.mxu0
        %v1267 = vadd.f32 0.0, %v1266
        %v1268 = vpop.f32.mrf.mxu0
        %1269 = vmatprep.mubr.bf16.mxu0 0
        %1270 = vmatmul.mubr.bf16.gmra.mxu0 %v1050
        %v1271 = vpop.f32.mrf.mxu0
        %v1272 = vadd.f32 0.0, %v1271
        %v1273 = vpop.f32.mrf.mxu0
        %v1274 = vpop.f32.mrf.mxu0
        %v1275 = vadd.f32 0.0, %v1274
        %v1276 = vpop.f32.mrf.mxu0
        %1277 = vmatprep.mubr.bf16.mxu0 0
        %1278 = vmatmul.mubr.bf16.gmra.mxu0 %v1053
        %v1279 = vpop.f32.mrf.mxu0
        %v1280 = vadd.f32 0.0, %v1279
        %v1281 = vpop.f32.mrf.mxu0
        %v1282 = vpop.f32.mrf.mxu0
        %v1283 = vadd.f32 0.0, %v1282
        %v1284 = vpop.f32.mrf.mxu0
        %1285 = vmatprep.mubr.bf16.mxu0 0
        %1286 = vmatmul.mubr.bf16.gmra.mxu0 %v1056
        %v1287 = vpop.f32.mrf.mxu0
        %v1288 = vadd.f32 0.0, %v1287
        %v1289 = vpop.f32.mrf.mxu0
        %v1290 = vpop.f32.mrf.mxu0
        %v1291 = vadd.f32 0.0, %v1290
        %v1292 = vpop.f32.mrf.mxu0
        %1293 = vmatprep.mubr.bf16.mxu0 0
        %1294 = vmatmul.mubr.bf16.gmra.mxu0 %v1059
        %v1295 = vpop.f32.mrf.mxu0
        %v1296 = vadd.f32 0.0, %v1295
        %v1297 = vpop.f32.mrf.mxu0
        %v1298 = vpop.f32.mrf.mxu0
        %v1299 = vadd.f32 0.0, %v1298
        %v1300 = vpop.f32.mrf.mxu0
        %1301 = vmatprep.mubr.bf16.mxu0 0
        %1302 = vmatmul.mubr.bf16.gmra.mxu0 %v1062
        %v1303 = vpop.f32.mrf.mxu0
        %v1304 = vadd.f32 0.0, %v1303
        %v1305 = vpop.f32.mrf.mxu0
        %v1306 = vpop.f32.mrf.mxu0
        %v1307 = vadd.f32 0.0, %v1306
        %v1308 = vpop.f32.mrf.mxu0
        %1309 = vmatprep.mubr.bf16.mxu0 0
        %1310 = vmatmul.mubr.bf16.gmra.mxu0 %v1065
        %v1311 = vpop.f32.mrf.mxu0
        %v1312 = vadd.f32 0.0, %v1311
        %v1313 = vpop.f32.mrf.mxu0
        %v1314 = vpop.f32.mrf.mxu0
        %v1315 = vadd.f32 0.0, %v1314
        %v1316 = vpop.f32.mrf.mxu0
        %1317 = vmatprep.mubr.bf16.mxu0 0
        %1318 = vmatmul.mubr.bf16.gmra.mxu0 %v1068
        %v1319 = vpop.f32.mrf.mxu0
        %v1320 = vadd.f32 0.0, %v1319
        %v1321 = vpop.f32.mrf.mxu0
        %v1322 = vpop.f32.mrf.mxu0
        %v1323 = vadd.f32 0.0, %v1322
        %v1324 = vpop.f32.mrf.mxu0
        %1325 = vmatprep.mubr.bf16.mxu0 0
        %1326 = vmatmul.mubr.bf16.gmra.mxu0 %v1071
        %v1327 = vpop.f32.mrf.mxu0
        %v1328 = vadd.f32 0.0, %v1327
        %v1329 = vpop.f32.mrf.mxu0
        %v1330 = vpop.f32.mrf.mxu0
        %v1331 = vadd.f32 0.0, %v1330
        %v1332 = vpop.f32.mrf.mxu0
        %1333 = vmatprep.mubr.bf16.mxu0 0
        %1334 = vmatmul.mubr.bf16.gmra.mxu0 %v1074
        %v1335 = vpop.f32.mrf.mxu0
        %v1336 = vadd.f32 0.0, %v1335
        %v1337 = vpop.f32.mrf.mxu0
        %v1338 = vpop.f32.mrf.mxu0
        %v1339 = vadd.f32 0.0, %v1338
        %v1340 = vpop.f32.mrf.mxu0
        %1341 = vmatprep.mubr.bf16.mxu0 0
        %1342 = vmatmul.mubr.bf16.gmra.mxu0 %v1077
        %v1343 = vpop.f32.mrf.mxu0
        %v1344 = vadd.f32 0.0, %v1343
        %v1345 = vpop.f32.mrf.mxu0
        %v1346 = vpop.f32.mrf.mxu0
        %v1347 = vadd.f32 0.0, %v1346
        %v1348 = vpop.f32.mrf.mxu0
        %1349 = vmatprep.mubr.bf16.mxu0 0
        %1350 = vmatmul.mubr.bf16.gmra.mxu0 %v1080
        %v1351 = vpop.f32.mrf.mxu0
        %v1352 = vadd.f32 0.0, %v1351
        %v1353 = vpop.f32.mrf.mxu0
        %v1354 = vpop.f32.mrf.mxu0
        %v1355 = vadd.f32 0.0, %v1354
        %v1356 = vpop.f32.mrf.mxu0
        %1357 = vmatprep.mubr.bf16.mxu0 0
        %1358 = vmatmul.mubr.bf16.gmra.mxu0 %v1083
        %v1359 = vpop.f32.mrf.mxu0
        %v1360 = vadd.f32 0.0, %v1359
        %v1361 = vpop.f32.mrf.mxu0
        %v1362 = vpop.f32.mrf.mxu0
        %v1363 = vadd.f32 0.0, %v1362
        %v1364 = vpop.f32.mrf.mxu0
        %1365 = vmatprep.mubr.bf16.mxu0 0
        %1366 = vmatmul.mubr.bf16.gmra.mxu0 %v1086
        %v1367 = vpop.f32.mrf.mxu0
        %v1368 = vadd.f32 0.0, %v1367
        %v1369 = vpop.f32.mrf.mxu0
        %v1370 = vpop.f32.mrf.mxu0
        %v1371 = vadd.f32 0.0, %v1370
        %v1372 = vpop.f32.mrf.mxu0
        %1373 = vmatprep.mubr.bf16.mxu0 0
        %1374 = vmatmul.mubr.bf16.gmra.mxu0 %v1089
        %v1375 = vpop.f32.mrf.mxu0
        %v1376 = vadd.f32 0.0, %v1375
        %v1377 = vpop.f32.mrf.mxu0
        %v1378 = vpop.f32.mrf.mxu0
        %v1379 = vadd.f32 0.0, %v1378
        %v1380 = vpop.f32.mrf.mxu0
        %1381 = vmatprep.mubr.bf16.mxu0 0
        %1382 = vmatmul.mubr.bf16.gmra.mxu0 %v1092
        %v1383 = vpop.f32.mrf.mxu0
        %v1384 = vadd.f32 0.0, %v1383
        %v1385 = vpop.f32.mrf.mxu0
        %v1386 = vpop.f32.mrf.mxu0
        %v1387 = vadd.f32 0.0, %v1386
        %v1388 = vpop.f32.mrf.mxu0
        %1389 = vmatprep.mubr.bf16.mxu0 0
        %1390 = vmatmul.mubr.bf16.gmra.mxu0 %v1095
        %v1391 = vpop.f32.mrf.mxu0
        %v1392 = vadd.f32 0.0, %v1391
        %v1393 = vpop.f32.mrf.mxu0
        %v1394 = vpop.f32.mrf.mxu0
        %v1395 = vadd.f32 0.0, %v1394
        %v1396 = vpop.f32.mrf.mxu0
        %1397 = vmatprep.mubr.bf16.mxu0 0
        %1398 = vmatmul.mubr.bf16.gmra.mxu0 %v1098
        %v1399 = vpop.f32.mrf.mxu0
        %v1400 = vadd.f32 0.0, %v1399
        %v1401 = vpop.f32.mrf.mxu0
        %v1402 = vpop.f32.mrf.mxu0
        %v1403 = vadd.f32 0.0, %v1402
        %v1404 = vpop.f32.mrf.mxu0
        %1405 = vmatprep.mubr.bf16.mxu0 0
        %1406 = vmatmul.mubr.bf16.gmra.mxu0 %v1101
        %v1407 = vpop.f32.mrf.mxu0
        %v1408 = vadd.f32 0.0, %v1407
        %v1409 = vpop.f32.mrf.mxu0
        %v1410 = vpop.f32.mrf.mxu0
        %v1411 = vadd.f32 0.0, %v1410
        %v1412 = vpop.f32.mrf.mxu0
        %1413 = vmatprep.mubr.bf16.mxu0 0
        %1414 = vmatmul.mubr.bf16.gmra.mxu0 %v1104
        %v1415 = vpop.f32.mrf.mxu0
        %v1416 = vadd.f32 0.0, %v1415
        %v1417 = vpop.f32.mrf.mxu0
        %v1418 = vpop.f32.mrf.mxu0
        %v1419 = vadd.f32 0.0, %v1418
        %v1420 = vpop.f32.mrf.mxu0
        %1421 = vmatprep.mubr.bf16.mxu0 0
        %1422 = vmatmul.mubr.bf16.gmra.mxu0 %v1107
        %v1423 = vpop.f32.mrf.mxu0
        %v1424 = vadd.f32 0.0, %v1423
        %v1425 = vpop.f32.mrf.mxu0
        %v1426 = vpop.f32.mrf.mxu0
        %v1427 = vadd.f32 0.0, %v1426
        %v1428 = vpop.f32.mrf.mxu0
        %1429 = vmatprep.mubr.bf16.mxu0 0
        %1430 = vmatmul.mubr.bf16.gmra.mxu0 %v1110
        %v1431 = vpop.f32.mrf.mxu0
        %v1432 = vadd.f32 0.0, %v1431
        %v1433 = vpop.f32.mrf.mxu0
        %v1434 = vpop.f32.mrf.mxu0
        %v1435 = vadd.f32 0.0, %v1434
        %v1436 = vpop.f32.mrf.mxu0
        %1437 = vmatprep.mubr.bf16.mxu0 0
        %1438 = vmatmul.mubr.bf16.gmra.mxu0 %v1113
        %v1439 = vpop.f32.mrf.mxu0
        %v1440 = vadd.f32 0.0, %v1439
        %v1441 = vpop.f32.mrf.mxu0
        %v1442 = vpop.f32.mrf.mxu0
        %v1443 = vadd.f32 0.0, %v1442
        %v1444 = vpop.f32.mrf.mxu0
        %1445 = vmatprep.mubr.bf16.mxu0 0
        %1446 = vmatmul.mubr.bf16.gmra.mxu0 %v1116
        %v1447 = vpop.f32.mrf.mxu0
        %v1448 = vadd.f32 0.0, %v1447
        %v1449 = vpop.f32.mrf.mxu0
        %v1450 = vpop.f32.mrf.mxu0
        %v1451 = vadd.f32 0.0, %v1450
        %v1452 = vpop.f32.mrf.mxu0
        %1453 = vmatprep.mubr.bf16.mxu0 0
        %1454 = vmatmul.mubr.bf16.gmra.mxu0 %v1119
        %v1455 = vpop.f32.mrf.mxu0
        %v1456 = vadd.f32 0.0, %v1455
        %v1457 = vpop.f32.mrf.mxu0
        %v1458 = vpop.f32.mrf.mxu0
        %v1459 = vadd.f32 0.0, %v1458
        %v1460 = vpop.f32.mrf.mxu0
        %1461 = vmatprep.mubr.bf16.mxu0 0
        %1462 = vmatmul.mubr.bf16.gmra.mxu0 %v1122
        %v1463 = vpop.f32.mrf.mxu0
        %v1464 = vadd.f32 0.0, %v1463
        %v1465 = vpop.f32.mrf.mxu0
        %v1466 = vpop.f32.mrf.mxu0
        %v1467 = vadd.f32 0.0, %v1466
        %v1468 = vpop.f32.mrf.mxu0
        %1469 = vmatprep.mubr.bf16.mxu0 0
        %1470 = vmatmul.mubr.bf16.gmra.mxu0 %v1125
        %v1471 = vpop.f32.mrf.mxu0
        %v1472 = vadd.f32 0.0, %v1471
        %v1473 = vpop.f32.mrf.mxu0
        %v1474 = vpop.f32.mrf.mxu0
        %v1475 = vadd.f32 0.0, %v1474
        %v1476 = vpop.f32.mrf.mxu0
        %1477 = vmatprep.mubr.bf16.mxu0 0
        %1478 = vmatmul.mubr.bf16.gmra.mxu0 %v1128
        %v1479 = vpop.f32.mrf.mxu0
        %v1480 = vadd.f32 0.0, %v1479
        %v1481 = vpop.f32.mrf.mxu0
        %v1482 = vpop.f32.mrf.mxu0
        %v1483 = vadd.f32 0.0, %v1482
        %v1484 = vpop.f32.mrf.mxu0
        %1485 = vmatprep.mubr.bf16.mxu0 0
        %1486 = vmatmul.mubr.bf16.gmra.mxu0 %v1131
        %v1487 = vpop.f32.mrf.mxu0
        %v1488 = vadd.f32 0.0, %v1487
        %v1489 = vpop.f32.mrf.mxu0
        %v1490 = vpop.f32.mrf.mxu0
        %v1491 = vadd.f32 0.0, %v1490
        %v1492 = vpop.f32.mrf.mxu0
        %1493 = vmatprep.mubr.bf16.mxu0 0
        %1494 = vmatmul.mubr.bf16.gmra.mxu0 %v1134
        %v1495 = vpop.f32.mrf.mxu0
        %v1496 = vadd.f32 0.0, %v1495
        %v1497 = vpop.f32.mrf.mxu0
        %v1498 = vpop.f32.mrf.mxu0
        %v1499 = vadd.f32 0.0, %v1498
        %v1500 = vpop.f32.mrf.mxu0
        %1501 = vmatprep.mubr.bf16.mxu0 0
        %1502 = vmatmul.mubr.bf16.gmra.mxu0 %v1137
        %v1503 = vpop.f32.mrf.mxu0
        %v1504 = vadd.f32 0.0, %v1503
        %v1505 = vpop.f32.mrf.mxu0
        %v1506 = vpop.f32.mrf.mxu0
        %v1507 = vadd.f32 0.0, %v1506
        %v1508 = vpop.f32.mrf.mxu0
        %1509 = vmatprep.mubr.bf16.mxu0 0
        %1510 = vmatmul.mubr.bf16.gmra.mxu0 %v1140
        %v1511 = vpop.f32.mrf.mxu0
        %v1512 = vadd.f32 0.0, %v1511
        %v1513 = vpop.f32.mrf.mxu0
        %v1514 = vpop.f32.mrf.mxu0
        %v1515 = vadd.f32 0.0, %v1514
        %v1516 = vpop.f32.mrf.mxu0
        %1517 = vmatprep.mubr.bf16.mxu0 0
        %1518 = vmatmul.mubr.bf16.gmra.mxu0 %v1143
        %v1519 = vpop.f32.mrf.mxu0
        %v1520 = vadd.f32 0.0, %v1519
        %v1521 = vpop.f32.mrf.mxu0
        %v1522 = vpop.f32.mrf.mxu0
        %v1523 = vadd.f32 0.0, %v1522
        %v1524 = vpop.f32.mrf.mxu0
        %1525 = vmatprep.mubr.bf16.mxu0 0
        %1526 = vmatmul.mubr.bf16.gmra.mxu0 %v1146
        %v1527 = vpop.f32.mrf.mxu0
        %v1528 = vadd.f32 0.0, %v1527
        %v1529 = vpop.f32.mrf.mxu0
        %v1530 = vpop.f32.mrf.mxu0
        %v1531 = vadd.f32 0.0, %v1530
        %v1532 = vpop.f32.mrf.mxu0
        %1533 = vmatprep.mubr.bf16.mxu0 0
        %1534 = vmatmul.mubr.bf16.gmra.mxu0 %v1149
        %v1535 = vpop.f32.mrf.mxu0
        %v1536 = vadd.f32 0.0, %v1535
        %v1537 = vpop.f32.mrf.mxu0
        %v1538 = vpop.f32.mrf.mxu0
        %v1539 = vadd.f32 0.0, %v1538
        %v1540 = vpop.f32.mrf.mxu0
        %1541 = vmatprep.mubr.bf16.mxu0 0
        %1542 = vmatmul.mubr.bf16.gmra.mxu0 %v1152
        %v1543 = vpop.f32.mrf.mxu0
        %v1544 = vadd.f32 0.0, %v1543
        %v1545 = vpop.f32.mrf.mxu0
        %v1546 = vpop.f32.mrf.mxu0
        %v1547 = vadd.f32 0.0, %v1546
        %v1548 = vpop.f32.mrf.mxu0
        %1549 = vmatprep.mubr.bf16.mxu0 0
        %1550 = vmatmul.mubr.bf16.gmra.mxu0 %v1155
        %v1551 = vpop.f32.mrf.mxu0
        %v1552 = vadd.f32 0.0, %v1551
        %v1553 = vpop.f32.mrf.mxu0
        %v1554 = vpop.f32.mrf.mxu0
        %v1555 = vadd.f32 0.0, %v1554
        %v1556 = vpop.f32.mrf.mxu0
        %1557 = vmatprep.mubr.bf16.mxu0 0
        %1558 = vmatmul.mubr.bf16.gmra.mxu0 %v1158
        %v1559 = vpop.f32.mrf.mxu0
        %v1560 = vadd.f32 0.0, %v1559
        %v1561 = vpop.f32.mrf.mxu0
        %v1562 = vpop.f32.mrf.mxu0
        %v1563 = vadd.f32 0.0, %v1562
        %v1564 = vpop.f32.mrf.mxu0
        %1565 = vmatprep.mubr.bf16.mxu0 0
        %1566 = vmatmul.mubr.bf16.gmra.mxu0 %v1161
        %v1567 = vpop.f32.mrf.mxu0
        %v1568 = vadd.f32 0.0, %v1567
        %v1569 = vpop.f32.mrf.mxu0
        %v1570 = vpop.f32.mrf.mxu0
        %v1571 = vadd.f32 0.0, %v1570
        %v1572 = vpop.f32.mrf.mxu0
        %1573 = vmatprep.mubr.bf16.mxu0 0
        %1574 = vmatmul.mubr.bf16.gmra.mxu0 %v1164
        %v1575 = vpop.f32.mrf.mxu0
        %v1576 = vadd.f32 0.0, %v1575
        %v1577 = vpop.f32.mrf.mxu0
        %v1578 = vpop.f32.mrf.mxu0
        %v1579 = vadd.f32 0.0, %v1578
        %v1580 = vpop.f32.mrf.mxu0
        %1581 = vmatprep.mubr.bf16.mxu0 0
        %1582 = vmatmul.mubr.bf16.gmra.mxu0 %v1167
        %v1583 = vpop.f32.mrf.mxu0
        %v1584 = vadd.f32 0.0, %v1583
        %v1585 = vpop.f32.mrf.mxu0
        %v1586 = vpop.f32.mrf.mxu0
        %v1587 = vadd.f32 0.0, %v1586
        %v1588 = vpop.f32.mrf.mxu0
        %1589 = vmatprep.mubr.bf16.mxu0 0
        %1590 = vmatmul.mubr.bf16.gmra.mxu0 %v1170
        %v1591 = vpop.f32.mrf.mxu0
        %v1592 = vadd.f32 0.0, %v1591
        %v1593 = vpop.f32.mrf.mxu0
        %v1594 = vpop.f32.mrf.mxu0
        %v1595 = vadd.f32 0.0, %v1594
        %v1596 = vpop.f32.mrf.mxu0
        %1597 = vmatprep.mubr.bf16.mxu0 0
        %1598 = vmatmul.mubr.bf16.gmra.mxu0 %v1173
        %v1599 = vpop.f32.mrf.mxu0
        %v1600 = vadd.f32 0.0, %v1599
        %v1601 = vpop.f32.mrf.mxu0
        %v1602 = vpop.f32.mrf.mxu0
        %v1603 = vadd.f32 0.0, %v1602
        %v1604 = vpop.f32.mrf.mxu0
        %1605 = vmatprep.mubr.bf16.mxu0 0
        %1606 = vmatmul.mubr.bf16.gmra.mxu0 %v1176
        %v1607 = vpop.f32.mrf.mxu0
        %v1608 = vadd.f32 0.0, %v1607
        %v1609 = vpop.f32.mrf.mxu0
        %v1610 = vpop.f32.mrf.mxu0
        %v1611 = vadd.f32 0.0, %v1610
        %v1612 = vpop.f32.mrf.mxu0
        %1613 = vmatprep.mubr.bf16.mxu0 0
        %1614 = vmatmul.mubr.bf16.gmra.mxu0 %v1179
        %v1615 = vpop.f32.mrf.mxu0
        %v1616 = vadd.f32 0.0, %v1615
        %v1617 = vpop.f32.mrf.mxu0
        %v1618 = vpop.f32.mrf.mxu0
        %v1619 = vadd.f32 0.0, %v1618
        %v1620 = vpop.f32.mrf.mxu0
        %1621 = vmatprep.mubr.bf16.mxu0 0
        %1622 = vmatmul.mubr.bf16.gmra.mxu0 %v1182
        %v1623 = vpop.f32.mrf.mxu0
        %v1624 = vadd.f32 0.0, %v1623
        %v1625 = vpop.f32.mrf.mxu0
        %v1626 = vpop.f32.mrf.mxu0
        %v1627 = vadd.f32 0.0, %v1626
        %v1628 = vpop.f32.mrf.mxu0
        %1629 = vmatprep.mubr.bf16.mxu0 0
        %1630 = vmatmul.mubr.bf16.gmra.mxu0 %v1185
        %v1631 = vpop.f32.mrf.mxu0
        %v1632 = vadd.f32 0.0, %v1631
        %v1633 = vpop.f32.mrf.mxu0
        %v1634 = vpop.f32.mrf.mxu0
        %v1635 = vadd.f32 0.0, %v1634
        %v1636 = vpop.f32.mrf.mxu0
        %1637 = vmatprep.mubr.bf16.mxu0 0
        %1638 = vmatmul.mubr.bf16.gmra.mxu0 %v1188
        %v1639 = vpop.f32.mrf.mxu0
        %v1640 = vadd.f32 0.0, %v1639
        %v1641 = vpop.f32.mrf.mxu0
        %v1642 = vpop.f32.mrf.mxu0
        %v1643 = vadd.f32 0.0, %v1642
        %v1644 = vpop.f32.mrf.mxu0
        %1645 = vdwg.mxu0
        %v1646 = vmax.f32 %v1232, %v1336
        %v1647 = vmax.f32 %v1235, %v1339
        %v1648 = vmax.f32 %v1240, %v1344
        %v1649 = vmax.f32 %v1243, %v1347
        %v1650 = vmax.f32 %v1248, %v1352
        %v1651 = vmax.f32 %v1251, %v1355
        %v1652 = vmax.f32 %v1256, %v1360
        %v1653 = vmax.f32 %v1259, %v1363
        %v1654 = vmax.f32 %v1264, %v1368
        %v1655 = vmax.f32 %v1267, %v1371
        %v1656 = vmax.f32 %v1272, %v1376
        %v1657 = vmax.f32 %v1275, %v1379
        %v1658 = vmax.f32 %v1280, %v1384
        %v1659 = vmax.f32 %v1283, %v1387
        %v1660 = vmax.f32 %v1288, %v1392
        %v1661 = vmax.f32 %v1291, %v1395
        %v1662 = vmax.f32 %v1296, %v1400
        %v1663 = vmax.f32 %v1299, %v1403
        %v1664 = vmax.f32 %v1304, %v1408
        %v1665 = vmax.f32 %v1307, %v1411
        %v1666 = vmax.f32 %v1312, %v1416
        %v1667 = vmax.f32 %v1315, %v1419
        %v1668 = vmax.f32 %v1320, %v1424
        %v1669 = vmax.f32 %v1323, %v1427
        %v1670 = vmax.f32 %v1328, %v1432
        %v1671 = vmax.f32 %v1331, %v1435
        %v1672 = vmax.f32 %v1440, %v1544
        %v1673 = vmax.f32 %v1443, %v1547
        %v1674 = vmax.f32 %v1448, %v1552
        %v1675 = vmax.f32 %v1451, %v1555
        %v1676 = vmax.f32 %v1456, %v1560
        %v1677 = vmax.f32 %v1459, %v1563
        %v1678 = vmax.f32 %v1464, %v1568
        %v1679 = vmax.f32 %v1467, %v1571
        %v1680 = vmax.f32 %v1472, %v1576
        %v1681 = vmax.f32 %v1475, %v1579
        %v1682 = vmax.f32 %v1480, %v1584
        %v1683 = vmax.f32 %v1483, %v1587
        %v1684 = vmax.f32 %v1488, %v1592
        %v1685 = vmax.f32 %v1491, %v1595
        %v1686 = vmax.f32 %v1496, %v1600
        %v1687 = vmax.f32 %v1499, %v1603
        %v1688 = vmax.f32 %v1504, %v1608
        %v1689 = vmax.f32 %v1507, %v1611
        %v1690 = vmax.f32 %v1512, %v1616
        %v1691 = vmax.f32 %v1515, %v1619
        %v1692 = vmax.f32 %v1520, %v1624
        %v1693 = vmax.f32 %v1523, %v1627
        %v1694 = vmax.f32 %v1528, %v1632
        %v1695 = vmax.f32 %v1531, %v1635
        %v1696 = vmax.f32 %v1536, %v1640
        %v1697 = vmax.f32 %v1539, %v1643
        %v1698 = vmax.f32 %v1646, %v1672
        %v1699 = vmax.f32 %v1647, %v1673
        %v1700 = vmax.f32 %v1648, %v1674
        %v1701 = vmax.f32 %v1649, %v1675
        %v1702 = vmax.f32 %v1650, %v1676
        %v1703 = vmax.f32 %v1651, %v1677
        %v1704 = vmax.f32 %v1652, %v1678
        %v1705 = vmax.f32 %v1653, %v1679
        %v1706 = vmax.f32 %v1654, %v1680
        %v1707 = vmax.f32 %v1655, %v1681
        %v1708 = vmax.f32 %v1656, %v1682
        %v1709 = vmax.f32 %v1657, %v1683
        %v1710 = vmax.f32 %v1658, %v1684
        %v1711 = vmax.f32 %v1659, %v1685
        %v1712 = vmax.f32 %v1660, %v1686
        %v1713 = vmax.f32 %v1661, %v1687
        %v1714 = vmax.f32 %v1662, %v1688
        %v1715 = vmax.f32 %v1663, %v1689
        %v1716 = vmax.f32 %v1664, %v1690
        %v1717 = vmax.f32 %v1665, %v1691
        %v1718 = vmax.f32 %v1666, %v1692
        %v1719 = vmax.f32 %v1667, %v1693
        %v1720 = vmax.f32 %v1668, %v1694
        %v1721 = vmax.f32 %v1669, %v1695
        %v1722 = vmax.f32 %v1670, %v1696
        %v1723 = vmax.f32 %v1671, %v1697
        %v1724 = vld [vmem:[%s2] sm:$0x1]
        %v1726 = vlaneseq
        %v1727 = vshrl.u32 %v1726, 7
        %v1728 = vsub.s32 0, %v1727
        %v1729 = vrot.slane %v1724, %v1728
        %v1731 = vadd.f32 %v1698, %v1729
        %v1732 = vadd.f32 %v1699, %v1729
        %v1733 = vadd.f32 %v1700, %v1729
        %v1734 = vadd.f32 %v1701, %v1729
        %v1735 = vadd.f32 %v1702, %v1729
        %v1736 = vadd.f32 %v1703, %v1729
        %v1737 = vadd.f32 %v1704, %v1729
        %v1738 = vadd.f32 %v1705, %v1729
        %v1739 = vadd.f32 %v1706, %v1729
        %v1740 = vadd.f32 %v1707, %v1729
        %v1741 = vadd.f32 %v1708, %v1729
        %v1742 = vadd.f32 %v1709, %v1729
        %v1743 = vadd.f32 %v1710, %v1729
        %v1744 = vadd.f32 %v1711, %v1729
        %v1745 = vadd.f32 %v1712, %v1729
        %v1746 = vadd.f32 %v1713, %v1729
        %v1747 = vadd.f32 %v1714, %v1729
        %v1748 = vadd.f32 %v1715, %v1729
        %v1749 = vadd.f32 %v1716, %v1729
        %v1750 = vadd.f32 %v1717, %v1729
        %v1751 = vadd.f32 %v1718, %v1729
        %v1752 = vadd.f32 %v1719, %v1729
        %v1753 = vadd.f32 %v1720, %v1729
        %v1754 = vadd.f32 %v1721, %v1729
        %v1755 = vadd.f32 %v1722, %v1729
        %v1756 = vadd.f32 %v1723, %v1729
        %v1757 = vmax.f32 %v1731, 0.0
        %v1758 = vmax.f32 %v1732, 0.0
        %v1759 = vmax.f32 %v1733, 0.0
        %v1760 = vmax.f32 %v1734, 0.0
        %v1761 = vmax.f32 %v1735, 0.0
        %v1762 = vmax.f32 %v1736, 0.0
        %v1763 = vmax.f32 %v1737, 0.0
        %v1764 = vmax.f32 %v1738, 0.0
        %v1765 = vmax.f32 %v1739, 0.0
        %v1766 = vmax.f32 %v1740, 0.0
        %v1767 = vmax.f32 %v1741, 0.0
        %v1768 = vmax.f32 %v1742, 0.0
        %v1769 = vmax.f32 %v1743, 0.0
        %v1770 = vmax.f32 %v1744, 0.0
        %v1771 = vmax.f32 %v1745, 0.0
        %v1772 = vmax.f32 %v1746, 0.0
        %v1773 = vmax.f32 %v1747, 0.0
        %v1774 = vmax.f32 %v1748, 0.0
        %v1775 = vmax.f32 %v1749, 0.0
        %v1776 = vmax.f32 %v1750, 0.0
        %v1777 = vmax.f32 %v1751, 0.0
        %v1778 = vmax.f32 %v1752, 0.0
        %v1779 = vmax.f32 %v1753, 0.0
        %v1780 = vmax.f32 %v1754, 0.0
        %v1781 = vmax.f32 %v1755, 0.0
        %v1782 = vmax.f32 %v1756, 0.0
        %v1783 = vpack.c.bf16 %v1758, %v1757
        %v1784 = vpack.c.bf16 %v1760, %v1759
        %v1785 = vpack.c.bf16 %v1762, %v1761
        %v1786 = vpack.c.bf16 %v1764, %v1763
        %v1787 = vpack.c.bf16 %v1766, %v1765
        %v1788 = vpack.c.bf16 %v1768, %v1767
        %v1789 = vpack.c.bf16 %v1770, %v1769
        %v1790 = vpack.c.bf16 %v1772, %v1771
        %v1791 = vpack.c.bf16 %v1774, %v1773
        %v1792 = vpack.c.bf16 %v1776, %v1775
        %v1793 = vpack.c.bf16 %v1778, %v1777
        %v1794 = vpack.c.bf16 %v1780, %v1779
        %v1795 = vpack.c.bf16 %v1782, %v1781
        %v1809 = vunpack.c.l.b16 %v1783
        %v1810 = vunpack.c.h.b16 %v1783
        %v1811 = vunpack.c.l.b16 %v1784
        %v1812 = vunpack.c.h.b16 %v1784
        %v1813 = vunpack.c.l.b16 %v1785
        %v1814 = vunpack.c.h.b16 %v1785
        %v1815 = vunpack.c.l.b16 %v1786
        %v1816 = vunpack.c.h.b16 %v1786
        %v1817 = vunpack.c.l.b16 %v1787
        %v1818 = vunpack.c.h.b16 %v1787
        %v1819 = vunpack.c.l.b16 %v1788
        %v1820 = vunpack.c.h.b16 %v1788
        %v1821 = vunpack.c.l.b16 %v1789
        %v1822 = vunpack.c.h.b16 %v1789
        %v1823 = vunpack.c.l.b16 %v1790
        %v1824 = vunpack.c.h.b16 %v1790
        %v1825 = vunpack.c.l.b16 %v1791
        %v1826 = vunpack.c.h.b16 %v1791
        %v1827 = vunpack.c.l.b16 %v1792
        %v1828 = vunpack.c.h.b16 %v1792
        %v1829 = vunpack.c.l.b16 %v1793
        %v1830 = vunpack.c.h.b16 %v1793
        %v1831 = vunpack.c.l.b16 %v1794
        %v1832 = vunpack.c.h.b16 %v1794
        %v1833 = vunpack.c.l.b16 %v1795
        %v1834 = vunpack.c.h.b16 %v1795
        %v1835 = vpack.c.b16 %v1809, %v1809
        %v1836 = vpack.c.b16 %v1810, %v1810
        %v1837 = vpack.c.b16 %v1811, %v1811
        %v1838 = vpack.c.b16 %v1812, %v1812
        %v1839 = vpack.c.b16 %v1813, %v1813
        %v1840 = vpack.c.b16 %v1814, %v1814
        %v1841 = vpack.c.b16 %v1815, %v1815
        %v1842 = vpack.c.b16 %v1816, %v1816
        %v1843 = vpack.c.b16 %v1817, %v1817
        %v1844 = vpack.c.b16 %v1818, %v1818
        %v1845 = vpack.c.b16 %v1819, %v1819
        %v1846 = vpack.c.b16 %v1820, %v1820
        %v1847 = vpack.c.b16 %v1821, %v1821
        %v1848 = vpack.c.b16 %v1822, %v1822
        %v1849 = vpack.c.b16 %v1823, %v1823
        %v1850 = vpack.c.b16 %v1824, %v1824
        %v1851 = vpack.c.b16 %v1825, %v1825
        %v1852 = vpack.c.b16 %v1826, %v1826
        %v1853 = vpack.c.b16 %v1827, %v1827
        %v1854 = vpack.c.b16 %v1828, %v1828
        %v1855 = vpack.c.b16 %v1829, %v1829
        %v1856 = vpack.c.b16 %v1830, %v1830
        %v1857 = vpack.c.b16 %v1831, %v1831
        %v1858 = vpack.c.b16 %v1832, %v1832
        %v1859 = vpack.c.b16 %v1833, %v1833
        %v1860 = vpack.c.b16 %v1834, %v1834
        %vm1887 = vcmask 44032
        %1888 = vst.msk [vmem:[%s627] sm:$0xf] %vm1887, %v1835
        %1889 = vst.msk [vmem:[%s627 + $0x4] sm:$0xf] %vm1887, %v1836
        %1890 = vst.msk [vmem:[%s627 + $0x8] sm:$0xf] %vm1887, %v1837
        %1891 = vst.msk [vmem:[%s627 + $0xc] sm:$0xf] %vm1887, %v1838
        %1892 = vst.msk [vmem:[%s627 + $0x10] sm:$0xf] %vm1887, %v1839
        %1893 = vst.msk [vmem:[%s627 + $0x14] sm:$0xf] %vm1887, %v1840
        %1894 = vst.msk [vmem:[%s627 + $0x18] sm:$0xf] %vm1887, %v1841
        %1895 = vst.msk [vmem:[%s627 + $0x1c] sm:$0xf] %vm1887, %v1842
        %1896 = vst.msk [vmem:[%s627 + $0x20] sm:$0xf] %vm1887, %v1843
        %1897 = vst.msk [vmem:[%s627 + $0x24] sm:$0xf] %vm1887, %v1844
        %1898 = vst.msk [vmem:[%s627 + $0x28] sm:$0xf] %vm1887, %v1845
        %1899 = vst.msk [vmem:[%s627 + $0x2c] sm:$0xf] %vm1887, %v1846
        %1900 = vst.msk [vmem:[%s627 + $0x30] sm:$0xf] %vm1887, %v1847
        %1901 = vst.msk [vmem:[%s627 + $0x34] sm:$0xf] %vm1887, %v1848
        %1902 = vst.msk [vmem:[%s627 + $0x38] sm:$0xf] %vm1887, %v1849
        %1903 = vst.msk [vmem:[%s627 + $0x3c] sm:$0xf] %vm1887, %v1850
        %1904 = vst.msk [vmem:[%s627 + $0x40] sm:$0xf] %vm1887, %v1851
        %1905 = vst.msk [vmem:[%s627 + $0x44] sm:$0xf] %vm1887, %v1852
        %1906 = vst.msk [vmem:[%s627 + $0x48] sm:$0xf] %vm1887, %v1853
        %1907 = vst.msk [vmem:[%s627 + $0x4c] sm:$0xf] %vm1887, %v1854
        %1908 = vst.msk [vmem:[%s627 + $0x50] sm:$0xf] %vm1887, %v1855
        %1909 = vst.msk [vmem:[%s627 + $0x54] sm:$0xf] %vm1887, %v1856
        %1910 = vst.msk [vmem:[%s627 + $0x58] sm:$0xf] %vm1887, %v1857
        %1911 = vst.msk [vmem:[%s627 + $0x5c] sm:$0xf] %vm1887, %v1858
        %1912 = vst.msk [vmem:[%s627 + $0x60] sm:$0xf] %vm1887, %v1859
        %1913 = vst.msk [vmem:[%s627 + $0x64] sm:$0xf] %vm1887, %v1860
        %s1914 = smul.u32 26, %s14
        %p1915 = scmp.lt.s32.totalorder %s1914, 51
        %s1916 = scalar_select %p1915, %s1914, 51
        %s1917 = smul.addr %s1916, 4
        %s1918 = scalar_lea.vmem %s3, %s1917
        // Predicated region
        $region74: #{net_forward.3} parent=68 // pred_check
          %p1919 = pneg %p100
        $region75: #{net_forward.3} parent=68 // pred_check_branch
          %1921 = sbr.rel (%p1919) target = $region77
        $region76: #{net_forward.3} parent=68 // pred_region
          %s1922 = smul.u32 26, %s14
        $region77: #{net_forward.3} parent=68 // pred_fallthru
          _
      $region69: #{net_forward.3} parent=5 // pred_fallthru
        _
      %p1923 = scmp.le.s32.totalorder 2, %s9
      // Predicated region
      $region78: #{net_forward.3} parent=5 // pred_check
        %p1924 = pneg %p1923
      $region79: #{net_forward.3} parent=5 // pred_check_branch
        %1926 = sbr.rel (%p1924) target = $region81
      $region80: #{net_forward.3} parent=5 // pred_region
        %s1927 = ssub.s32 %s9, 2
        // Predicated region
        $region82: #{net_forward.3} parent=80 // pred_check
          %p1928 = pneg %p106
        $region83: #{net_forward.3} parent=80 // pred_check_branch
          %1930 = sbr.rel (%p1928) target = $region85
        $region84: #{net_forward.3} parent=80 // pred_region
          %s1931 = smul.u32 26, %s15
          %p1932 = scmp.lt.s32.totalorder %s1931, 51
          %s1933 = scalar_select %p1932, %s1931, 51
          %s1934 = smul.addr %s1933, 4
          %s1935 = scalar_lea.vmem %s3, %s1934
        $region85: #{net_forward.3} parent=80 // pred_fallthru
          _
      $region81: #{net_forward.3} parent=5 // pred_fallthru
        _
    $region6: #{net_forward.3} parent=1 // loop_footer
      %s13 = sadd.s32 1, %s9
    $region7: #{net_forward.3} parent=1 // loop_footer_branch
      %8 = sbr.rel target = $region3
    $region8: #{net_forward.3} parent=1 // loop_exit
      _

// kernel: net_forward.4
$region0: #{net_forward.4}
  #allocation0 [shape = 'u32[]', space=smem, size = 0x4, offset = 0x4, fixed_abs, tag = 'smem constant byte address 0x4 - core index']
  #allocation1 [shape = 'u32[144,128]{1,0:T(1,128)}', space=vmem, size = 0x12000, scoped, tag = 'internal scratch']
  %s0 = inlined_call_operand.vmem [shape: bf16[4,64,150], index: 0, kind: input, shape index: {}]
  %s1 = inlined_call_operand.vmem [shape: bf16[150,16], index: 1, kind: input, shape index: {}]
  %s2 = inlined_call_operand.vmem [shape: f32[1,16], index: 2, kind: input, shape index: {}]
  %s3 = inlined_call_operand.vmem [shape: bf16[64,16], index: 3, kind: output, shape index: {}]
  %s4 = sld [smem:[#allocation0]]
  $region83: #{net_forward.4} parent=0
    _
  %s6 = ssub.s32 1, %s4
  %s7 = scalar_select 0, %s6, %s4
  $region1: #{net_forward.4} parent=0
    #allocation2 [shape = 'u8[131072]{0}', space=vmem, size = 0x20000, scoped, tag = 'input window, operand 0']
    loop: start=0, step=1, limit=4
    $region2: #{net_forward.4} parent=1 // loop_pre_header
      _
    $region3: #{net_forward.4} parent=1 // loop_header
      %s9 = sphi 0, %s13
      %p10 = scmp.ge.s32.totalorder %s9, 4
      %s19 = sphi 0, %s21
      %s22 = sphi 0, %s19
      %s23 = sphi 0, %s22
      %s39 = sphi 0, %s23
      %s43 = sphi 0, %s43
      %s45 = sphi 0, %s43
      %s46 = sphi 0, %s45
      %s60 = sphi 0, %s46
      %s64 = sphi 0, %s64
      %s66 = sphi 0, %s64
      %s67 = sphi 0, %s66
      %s81 = sphi 0, %s67
      %s87 = sphi 0, %s89
      %s90 = sphi 0, %s87
      %s91 = sphi 0, %s90
      %s107 = sphi 0, %s91
    $region4: #{net_forward.4} parent=1 // loop_header_branch
      %12 = sbr.rel (%p10) target = $region8
    $region5: #{net_forward.4} parent=1 // loop_body
      %s14 = ssub.s32 %s9, 1
      %s15 = ssub.s32 %s9, 2
      %s16 = sadd.s32 %s9, 1
      %s17 = ssub.s32 %s9, %s16
      %p18 = scmp.eq.s32.totalorder %s17, 0
      %s20 = sadd.s32 %s19, 1
      %s21 = scalar_select %p18, %s19, %s20
      %p24 = pneg %p18
      %p25 = scmp.eq.s32.totalorder %s9, 1
      %p26 = por %p24, %p25
      %p27 = scmp.ne.s32.totalorder %s19, %s22
      %p28 = scmp.eq.s32.totalorder %s9, 0
      %p29 = por %p27, %p28
      %p30 = scmp.ne.s32.totalorder %s19, %s22
      %p31 = scmp.eq.s32.totalorder %s14, 1
      %p32 = por %p30, %p31
      %p33 = scmp.ne.s32.totalorder %s22, %s23
      %p34 = scmp.eq.s32.totalorder %s14, 0
      %p35 = por %p33, %p34
      %p36 = scmp.ne.s32.totalorder %s22, %s23
      %p37 = scmp.eq.s32.totalorder %s15, 1
      %p38 = por %p36, %p37
      %p40 = scmp.ne.s32.totalorder %s23, %s39
      %p41 = scmp.eq.s32.totalorder %s15, 0
      %p42 = por %p40, %p41
      %s44 = sadd.s32 %s43, 1
      %p47 = scmp.eq.s32.totalorder %s9, 1
      %p48 = scmp.ne.s32.totalorder %s43, %s45
      %p49 = scmp.eq.s32.totalorder %s9, 0
      %p50 = por %p48, %p49
      %p51 = scmp.ne.s32.totalorder %s43, %s45
      %p52 = scmp.eq.s32.totalorder %s14, 1
      %p53 = por %p51, %p52
      %p54 = scmp.ne.s32.totalorder %s45, %s46
      %p55 = scmp.eq.s32.totalorder %s14, 0
      %p56 = por %p54, %p55
      %p57 = scmp.ne.s32.totalorder %s45, %s46
      %p58 = scmp.eq.s32.totalorder %s15, 1
      %p59 = por %p57, %p58
      %p61 = scmp.ne.s32.totalorder %s46, %s60
      %p62 = scmp.eq.s32.totalorder %s15, 0
      %p63 = por %p61, %p62
      %s65 = sadd.s32 %s64, 1
      %p68 = scmp.eq.s32.totalorder %s9, 1
      %p69 = scmp.ne.s32.totalorder %s64, %s66
      %p70 = scmp.eq.s32.totalorder %s9, 0
      %p71 = por %p69, %p70
      %p72 = scmp.ne.s32.totalorder %s64, %s66
      %p73 = scmp.eq.s32.totalorder %s14, 1
      %p74 = por %p72, %p73
      %p75 = scmp.ne.s32.totalorder %s66, %s67
      %p76 = scmp.eq.s32.totalorder %s14, 0
      %p77 = por %p75, %p76
      %p78 = scmp.ne.s32.totalorder %s66, %s67
      %p79 = scmp.eq.s32.totalorder %s15, 1
      %p80 = por %p78, %p79
      %p82 = scmp.ne.s32.totalorder %s67, %s81
      %p83 = scmp.eq.s32.totalorder %s15, 0
      %p84 = por %p82, %p83
      %s85 = ssub.s32 %s9, %s16
      %p86 = scmp.eq.s32.totalorder %s85, 0
      %s88 = sadd.s32 %s87, 1
      %s89 = scalar_select %p86, %s87, %s88
      %p92 = pneg %p86
      %p93 = scmp.eq.s32.totalorder %s9, 1
      %p94 = por %p92, %p93
      %p95 = scmp.ne.s32.totalorder %s87, %s90
      %p96 = scmp.eq.s32.totalorder %s9, 0
      %p97 = por %p95, %p96
      %p98 = scmp.ne.s32.totalorder %s87, %s90
      %p99 = scmp.eq.s32.totalorder %s14, 1
      %p100 = por %p98, %p99
      %p101 = scmp.ne.s32.totalorder %s90, %s91
      %p102 = scmp.eq.s32.totalorder %s14, 0
      %p103 = por %p101, %p102
      %p104 = scmp.ne.s32.totalorder %s90, %s91
      %p105 = scmp.eq.s32.totalorder %s15, 1
      %p106 = por %p104, %p105
      %p108 = scmp.ne.s32.totalorder %s91, %s107
      %p109 = scmp.eq.s32.totalorder %s15, 0
      %p110 = por %p108, %p109
      %p111 = scmp.le.s32.totalorder 1, %s9
      %p112 = scmp.lt.s32.totalorder %s9, 3
      %p113 = pnand %p111, %p112
      %p114 = pneg %p113
      // Predicated region
      $region9: #{net_forward.4} parent=5 // pred_check
        _
      $region10: #{net_forward.4} parent=5 // pred_check_branch
        %116 = sbr.rel (%p113) target = $region12
      $region11: #{net_forward.4} parent=5 // pred_region
        %s117 = ssub.s32 %s9, 1
        // Predicated region
        $region13: #{net_forward.4} parent=11 // pred_check
          %p118 = pneg %p56
        $region14: #{net_forward.4} parent=11 // pred_check_branch
          %120 = sbr.rel (%p118) target = $region16
        $region15: #{net_forward.4} parent=11 // pred_region
          _
        $region16: #{net_forward.4} parent=11 // pred_fallthru
          _
        // Predicated region
        $region17: #{net_forward.4} parent=11 // pred_check
          %p121 = pneg %p77
        $region18: #{net_forward.4} parent=11 // pred_check_branch
          %123 = sbr.rel (%p121) target = $region20
        $region19: #{net_forward.4} parent=11 // pred_region
          _
        $region20: #{net_forward.4} parent=11 // pred_fallthru
          _
      $region12: #{net_forward.4} parent=5 // pred_fallthru
        _
      %p124 = scmp.lt.s32.totalorder %s9, 2
      // Predicated region
      $region21: #{net_forward.4} parent=5 // pred_check
        %p125 = pneg %p124
      $region22: #{net_forward.4} parent=5 // pred_check_branch
        %127 = sbr.rel (%p125) target = $region24
      $region23: #{net_forward.4} parent=5 // pred_region
        // Predicated region
        $region25: #{net_forward.4} parent=23 // pred_check
          %p128 = pneg %p29
        $region26: #{net_forward.4} parent=23 // pred_check_branch
          %130 = sbr.rel (%p128) target = $region28
        $region27: #{net_forward.4} parent=23 // pred_region
          %s131 = sand.u32 %s19, 1
          %s132 = sand.u32 %s19, 1
          %s133 = smul.addr %s132, 128
          %s134 = scalar_lea.vmem [#allocation2], %s133
          %s135 = smul.u32 4, %s9
          %s136 = smul.addr %s135, 2
          %s137 = smul.addr %s136, 4
          %s138 = scalar_lea.vmem %s0, %s137
          // Predicated region
          $region29: #{net_forward.4} parent=27 // pred_check
            _
          $region30: #{net_forward.4} parent=27 // pred_check_branch
            %140 = sbr.rel (0) target = $region32
          $region31: #{net_forward.4} parent=27 // pred_region
            // Predicated region
            $region33: #{net_forward.4} parent=31 // pred_check
              _
            $region34: #{net_forward.4} parent=31 // pred_check_branch
              %142 = sbr.rel (0) target = $region36
            $region35: #{net_forward.4} parent=31 // pred_region
              // Predicated region
              $region48: #{net_forward.4} parent=35 // pred_check
                _
              $region49: #{net_forward.4} parent=35 // pred_check_branch
                %188 = sbr.rel (0) target = $region51
              $region50: #{net_forward.4} parent=35 // pred_region
                loop: start=0, step=1, limit=1
                $region52: #{net_forward.4} parent=50 // loop_pre_header
                  _
                $region53: #{net_forward.4} parent=50 // loop_header
                  %s190 = sphi 0, %s194
                  %p191 = scmp.ge.s32.totalorder %s190, 1
                  %s195 = sphi %s138, %s138
                  %s196 = sphi %s134, %s134
                $region54: #{net_forward.4} parent=50 // loop_header_branch
                  %193 = sbr.rel (%p191) target = $region58
                $region55: #{net_forward.4} parent=50 // loop_body
                  %v197 = vld [vmem:[%s195] sm:$0xff]
                  %198 = vst [vmem:[%s196] sm:$0xff] %v197
                  %v199 = vld [vmem:[%s195 + $0x8] sm:$0xff]
                  %200 = vst [vmem:[%s196 + $0x8] sm:$0xff] %v199
                  %v201 = vld [vmem:[%s195 + $0x10] sm:$0xff]
                  %202 = vst [vmem:[%s196 + $0x10] sm:$0xff] %v201
                  %v203 = vld [vmem:[%s195 + $0x18] sm:$0xff]
                  %204 = vst [vmem:[%s196 + $0x18] sm:$0xff] %v203
                  %v205 = vld [vmem:[%s195 + $0x40] sm:$0xff]
                  %206 = vst [vmem:[%s196 + $0x20] sm:$0xff] %v205
                  %v207 = vld [vmem:[%s195 + $0x48] sm:$0xff]
                  %208 = vst [vmem:[%s196 + $0x28] sm:$0xff] %v207
                  %v209 = vld [vmem:[%s195 + $0x50] sm:$0xff]
                  %210 = vst [vmem:[%s196 + $0x30] sm:$0xff] %v209
                  %v211 = vld [vmem:[%s195 + $0x58] sm:$0xff]
                  %212 = vst [vmem:[%s196 + $0x38] sm:$0xff] %v211
                  %v213 = vld [vmem:[%s195 + $0x80] sm:$0xff]
                  %214 = vst [vmem:[%s196 + $0x40] sm:$0xff] %v213
                  %v215 = vld [vmem:[%s195 + $0x88] sm:$0xff]
                  %216 = vst [vmem:[%s196 + $0x48] sm:$0xff] %v215
                  %v217 = vld [vmem:[%s195 + $0x90] sm:$0xff]
                  %218 = vst [vmem:[%s196 + $0x50] sm:$0xff] %v217
                  %v219 = vld [vmem:[%s195 + $0x98] sm:$0xff]
                  %220 = vst [vmem:[%s196 + $0x58] sm:$0xff] %v219
                  %v221 = vld [vmem:[%s195 + $0xc0] sm:$0xff]
                  %222 = vst [vmem:[%s196 + $0x60] sm:$0xff] %v221
                  %v223 = vld [vmem:[%s195 + $0xc8] sm:$0xff]
                  %224 = vst [vmem:[%s196 + $0x68] sm:$0xff] %v223
                  %v225 = vld [vmem:[%s195 + $0xd0] sm:$0xff]
                  %226 = vst [vmem:[%s196 + $0x70] sm:$0xff] %v225
                  %v227 = vld [vmem:[%s195 + $0xd8] sm:$0xff]
                  %228 = vst [vmem:[%s196 + $0x78] sm:$0xff] %v227
                $region56: #{net_forward.4} parent=50 // loop_footer
                  %s194 = sadd.s32 1, %s190
                $region57: #{net_forward.4} parent=50 // loop_footer_branch
                  %189 = sbr.rel target = $region53
                $region58: #{net_forward.4} parent=50 // loop_exit
                  _
              $region51: #{net_forward.4} parent=35 // pred_fallthru
                _
              // Predicated region
              $region59: #{net_forward.4} parent=35 // pred_check
                _
              $region60: #{net_forward.4} parent=35 // pred_check_branch
                %230 = sbr.rel target = $region62
              $region61: #{net_forward.4} parent=35 // pred_region
                _
              $region62: #{net_forward.4} parent=35 // pred_fallthru
                _
            $region36: #{net_forward.4} parent=31 // pred_fallthru
              _
            // Predicated region
            $region37: #{net_forward.4} parent=31 // pred_check
              _
            $region38: #{net_forward.4} parent=31 // pred_check_branch
              %144 = sbr.rel target = $region40
            $region39: #{net_forward.4} parent=31 // pred_region
              %s146 = ssub.s32 256, 1
              loop: start=0, step=1, limit=1
              $region41: #{net_forward.4} parent=39 // loop_pre_header
                _
              $region42: #{net_forward.4} parent=39 // loop_header
                %s148 = sphi 0, %s152
                %p149 = scmp.ge.s32.totalorder %s148, 1
                %s153 = sphi %s138, %s138
                %s154 = sphi %s134, %s134
              $region43: #{net_forward.4} parent=39 // loop_header_branch
                %151 = sbr.rel (%p149) target = $region47
              $region44: #{net_forward.4} parent=39 // loop_body
                %v155 = vld [vmem:[%s153] sm:%s146]
                %156 = vst [vmem:[%s154] sm:%s146] %v155
                %v157 = vld [vmem:[%s153 + $0x8] sm:%s146]
                %158 = vst [vmem:[%s154 + $0x8] sm:%s146] %v157
                %v159 = vld [vmem:[%s153 + $0x10] sm:%s146]
                %160 = vst [vmem:[%s154 + $0x10] sm:%s146] %v159
                %v161 = vld [vmem:[%s153 + $0x18] sm:%s146]
                %162 = vst [vmem:[%s154 + $0x18] sm:%s146] %v161
                %v163 = vld [vmem:[%s153 + $0x40] sm:%s146]
                %164 = vst [vmem:[%s154 + $0x20] sm:%s146] %v163
                %v165 = vld [vmem:[%s153 + $0x48] sm:%s146]
                %166 = vst [vmem:[%s154 + $0x28] sm:%s146] %v165
                %v167 = vld [vmem:[%s153 + $0x50] sm:%s146]
                %168 = vst [vmem:[%s154 + $0x30] sm:%s146] %v167
                %v169 = vld [vmem:[%s153 + $0x58] sm:%s146]
                %170 = vst [vmem:[%s154 + $0x38] sm:%s146] %v169
                %v171 = vld [vmem:[%s153 + $0x80] sm:%s146]
                %172 = vst [vmem:[%s154 + $0x40] sm:%s146] %v171
                %v173 = vld [vmem:[%s153 + $0x88] sm:%s146]
                %174 = vst [vmem:[%s154 + $0x48] sm:%s146] %v173
                %v175 = vld [vmem:[%s153 + $0x90] sm:%s146]
                %176 = vst [vmem:[%s154 + $0x50] sm:%s146] %v175
                %v177 = vld [vmem:[%s153 + $0x98] sm:%s146]
                %178 = vst [vmem:[%s154 + $0x58] sm:%s146] %v177
                %v179 = vld [vmem:[%s153 + $0xc0] sm:%s146]
                %180 = vst [vmem:[%s154 + $0x60] sm:%s146] %v179
                %v181 = vld [vmem:[%s153 + $0xc8] sm:%s146]
                %182 = vst [vmem:[%s154 + $0x68] sm:%s146] %v181
                %v183 = vld [vmem:[%s153 + $0xd0] sm:%s146]
                %184 = vst [vmem:[%s154 + $0x70] sm:%s146] %v183
                %v185 = vld [vmem:[%s153 + $0xd8] sm:%s146]
                %186 = vst [vmem:[%s154 + $0x78] sm:%s146] %v185
              $region45: #{net_forward.4} parent=39 // loop_footer
                %s152 = sadd.s32 1, %s148
              $region46: #{net_forward.4} parent=39 // loop_footer_branch
                %147 = sbr.rel target = $region42
              $region47: #{net_forward.4} parent=39 // loop_exit
                _
            $region40: #{net_forward.4} parent=31 // pred_fallthru
              _
          $region32: #{net_forward.4} parent=27 // pred_fallthru
            _
          %231 = vnop
        $region28: #{net_forward.4} parent=23 // pred_fallthru
          _
      $region24: #{net_forward.4} parent=5 // pred_fallthru
        _
      %p232 = scmp.le.s32.totalorder 1, %s9
      %p233 = scmp.lt.s32.totalorder %s9, 3
      %p234 = pnand %p232, %p233
      %p235 = pneg %p234
      // Predicated region
      $region63: #{net_forward.4} parent=5 // pred_check
        _
      $region64: #{net_forward.4} parent=5 // pred_check_branch
        %237 = sbr.rel (%p234) target = $region66
      $region65: #{net_forward.4} parent=5 // pred_region
        %s238 = ssub.s32 %s9, 1
        %s239 = sand.u32 %s22, 1
        %s240 = sand.u32 %s22, 1
        %s241 = smul.addr %s240, 128
        %s242 = scalar_lea.vmem [#allocation2], %s241
        // Predicated region
        $region67: #{net_forward.4} parent=65 // pred_check
          %p243 = pneg %p35
        $region68: #{net_forward.4} parent=65 // pred_check_branch
          %245 = sbr.rel (%p243) target = $region70
        $region69: #{net_forward.4} parent=65 // pred_region
          _
        $region70: #{net_forward.4} parent=65 // pred_fallthru
          _
        %s246 = sand.u32 %s22, 1
        %s247 = sand.u32 %s22, 1
        %s248 = smul.addr %s247, 128
        %s249 = scalar_lea.vmem [#allocation2], %s248
        %p250 = pneg %p35
        %p251 = pneg %p32
        %p252 = pneg %p56
        %p253 = pneg %p53
        %p254 = pneg %p77
        %p255 = pneg %p74
        %p256 = pneg %p103
        %p257 = pneg %p100
        %s258 = smul.u32 4, %s14
        %p259 = scmp.lt.s32.totalorder %s258, 7
        %s260 = scalar_select %p259, %s258, 7
        %s261 = smul.addr %s260, 4
        %s262 = scalar_lea.vmem %s3, %s261
        %s263 = smul.u32 4, %s14
        %s264 = smul.u32 4, %s14
        %p265 = scmp.lt.s32.totalorder %s264, 7
        %s266 = scalar_select %p265, %s264, 7
        %s267 = smul.addr %s266, 4
        %s268 = scalar_lea.vmem %s3, %s267
        %s269 = smul.u32 4, %s14
        %v271 = vld [vmem:[%s242] sm:$0xff]
        %v272 = vld [vmem:[%s242 + $0x8] sm:$0xff]
        %v273 = vld [vmem:[%s242 + $0x10] sm:$0xff]
        %v274 = vld [vmem:[%s242 + $0x18] sm:$0xff]
        %v275 = vld [vmem:[%s242 + $0x20] sm:$0xff]
        %v276 = vld [vmem:[%s242 + $0x28] sm:$0xff]
        %v277 = vld [vmem:[%s242 + $0x30] sm:$0xff]
        %v278 = vld [vmem:[%s242 + $0x38] sm:$0xff]
        %v279 = vld [vmem:[%s242 + $0x40] sm:$0xff]
        %v280 = vld [vmem:[%s242 + $0x48] sm:$0xff]
        %v281 = vld [vmem:[%s242 + $0x50] sm:$0xff]
        %v282 = vld [vmem:[%s242 + $0x58] sm:$0xff]
        %v283 = vld [vmem:[%s242 + $0x60] sm:$0xff]
        %v284 = vld [vmem:[%s242 + $0x68] sm:$0xff]
        %v285 = vld [vmem:[%s242 + $0x70] sm:$0xff]
        %v286 = vld [vmem:[%s242 + $0x78] sm:$0xff]
        %v287 = vld [vmem:[%s1] sm:$0xf]
        %v288 = vld [vmem:[%s1 + $0x4] sm:$0xf]
        %v289 = vld [vmem:[%s1 + $0x8] sm:$0xf]
        %v290 = vld [vmem:[%s1 + $0xc] sm:$0xf]
        %v291 = vld [vmem:[%s1 + $0x10] sm:$0xf]
        %v292 = vld [vmem:[%s1 + $0x14] sm:$0xf]
        %v293 = vld [vmem:[%s1 + $0x18] sm:$0xf]
        %v294 = vld [vmem:[%s1 + $0x1c] sm:$0xf]
        %v295 = vld [vmem:[%s1 + $0x20] sm:$0xf]
        %v296 = vld [vmem:[%s1 + $0x24] sm:$0xf]
        %v297 = vld [vmem:[%s1 + $0x28] sm:$0xf]
        %v298 = vld [vmem:[%s1 + $0x2c] sm:$0xf]
        %v299 = vld [vmem:[%s1 + $0x30] sm:$0xf]
        %v300 = vld [vmem:[%s1 + $0x34] sm:$0xf]
        %v301 = vld [vmem:[%s1 + $0x38] sm:$0xf]
        %v302 = vld [vmem:[%s1 + $0x3c] sm:$0xf]
        %v303 = vld [vmem:[%s1 + $0x40] sm:$0xf]
        %v304 = vld [vmem:[%s1 + $0x44] sm:$0xf]
        %v305 = vld [vmem:[%s1 + $0x48] sm:$0x7]
        %v322 = vunpack.c.l.b16 %v271
        %v323 = vunpack.c.h.b16 %v271
        %v324 = vunpack.c.l.b16 %v272
        %v325 = vunpack.c.h.b16 %v272
        %v326 = vunpack.c.l.b16 %v273
        %v327 = vunpack.c.h.b16 %v273
        %v328 = vunpack.c.l.b16 %v274
        %v329 = vunpack.c.h.b16 %v274
        %v330 = vunpack.c.l.b16 %v275
        %v331 = vunpack.c.h.b16 %v275
        %v332 = vunpack.c.l.b16 %v276
        %v333 = vunpack.c.h.b16 %v276
        %v334 = vunpack.c.l.b16 %v277
        %v335 = vunpack.c.h.b16 %v277
        %v336 = vunpack.c.l.b16 %v278
        %v337 = vunpack.c.h.b16 %v278
        %v338 = vunpack.c.l.b16 %v279
        %v339 = vunpack.c.h.b16 %v279
        %v340 = vunpack.c.l.b16 %v280
        %v341 = vunpack.c.h.b16 %v280
        %v342 = vunpack.c.l.b16 %v281
        %v343 = vunpack.c.h.b16 %v281
        %v344 = vunpack.c.l.b16 %v282
        %v345 = vunpack.c.h.b16 %v282
        %v346 = vunpack.c.l.b16 %v283
        %v347 = vunpack.c.h.b16 %v283
        %v348 = vunpack.c.l.b16 %v284
        %v349 = vunpack.c.h.b16 %v284
        %v350 = vunpack.c.l.b16 %v285
        %v351 = vunpack.c.h.b16 %v285
        %v352 = vunpack.c.l.b16 %v286
        %v353 = vunpack.c.h.b16 %v286
        %v354 = vpack.c.b16 %v324, %v322
        %v355 = vpack.c.b16 %v325, %v323
        %v356 = vpack.c.b16 %v328, %v326
        %v357 = vpack.c.b16 %v329, %v327
        %v358 = vpack.c.b16 %v332, %v330
        %v359 = vpack.c.b16 %v333, %v331
        %v360 = vpack.c.b16 %v336, %v334
        %v361 = vpack.c.b16 %v337, %v335
        %v362 = vpack.c.b16 %v340, %v338
        %v363 = vpack.c.b16 %v341, %v339
        %v364 = vpack.c.b16 %v344, %v342
        %v365 = vpack.c.b16 %v345, %v343
        %v366 = vpack.c.b16 %v348, %v346
        %v367 = vpack.c.b16 %v349, %v347
        %v368 = vpack.c.b16 %v352, %v350
        %v369 = vpack.c.b16 %v353, %v351
        %v397 = vunpack.c.l.b16 %v287
        %v398 = vunpack.c.l.b16 %v288
        %v399 = vunpack.c.l.b16 %v289
        %v400 = vunpack.c.l.b16 %v290
        %v401 = vunpack.c.l.b16 %v291
        %v402 = vunpack.c.l.b16 %v292
        %v403 = vunpack.c.l.b16 %v293
        %v404 = vunpack.c.l.b16 %v294
        %v405 = vunpack.c.l.b16 %v295
        %v406 = vunpack.c.l.b16 %v296
        %v407 = vunpack.c.l.b16 %v297
        %v408 = vunpack.c.l.b16 %v298
        %v409 = vunpack.c.l.b16 %v299
        %v410 = vunpack.c.l.b16 %v300
        %v411 = vunpack.c.l.b16 %v301
        %v412 = vunpack.c.l.b16 %v302
        %v413 = vunpack.c.l.b16 %v303
        %v414 = vunpack.c.l.b16 %v304
        %v415 = vunpack.c.l.b16 %v305
        %v416 = vpack.c.b16 %v398, %v397
        %v417 = vpack.c.b16 %v400, %v399
        %v418 = vpack.c.b16 %v402, %v401
        %v419 = vpack.c.b16 %v404, %v403
        %v420 = vpack.c.b16 %v406, %v405
        %v421 = vpack.c.b16 %v408, %v407
        %v422 = vpack.c.b16 %v410, %v409
        %v423 = vpack.c.b16 %v412, %v411
        %v424 = vpack.c.b16 %v414, %v413
        %v425 = vpack.c.b16 %v415, %v415
        %vm435 = vcmask 179200
        %v437 = vsel %vm435, %v355, 0
        %v440 = vsel %vm435, %v357, 0
        %v443 = vsel %vm435, %v359, 0
        %v446 = vsel %vm435, %v361, 0
        %v449 = vsel %vm435, %v363, 0
        %v452 = vsel %vm435, %v365, 0
        %v455 = vsel %vm435, %v367, 0
        %v458 = vsel %vm435, %v369, 0
        %vm460 = vcmask 1042432
        %v462 = vsel %vm460, %v425, 0
        %464 = vmatprep.subr.bf16.mxu0 0
        %465 = vmatpush1.bf16.msra.mxu0 %v423
        %466 = vmatprep.subr.bf16.mxu0 0
        %467 = vmatpush1.bf16.msra.mxu0 %v422
        %468 = vmatprep.subr.bf16.mxu0 0
        %469 = vmatpush1.bf16.msra.mxu0 %v421
        %470 = vmatprep.subr.bf16.mxu0 0
        %471 = vmatpush1.bf16.msra.mxu0 %v420
        %472 = vmatprep.subr.bf16.mxu0 0
        %473 = vmatpush1.bf16.msra.mxu0 %v419
        %474 = vmatprep.subr.bf16.mxu0 0
        %475 = vmatpush1.bf16.msra.mxu0 %v418
        %476 = vmatprep.subr.bf16.mxu0 0
        %477 = vmatpush1.bf16.msra.mxu0 %v417
        %478 = vmatprep.subr.bf16.mxu0 0
        %479 = vmatpush1.bf16.msra.mxu0 %v416
        %480 = vmatprep.subr.bf16.mxu0 0
        %481 = vmatpush2.bf16.msra.mxu0 0
        %482 = vmatprep.subr.bf16.mxu0 0
        %483 = vmatpush2.bf16.msra.mxu0 0
        %484 = vmatprep.subr.bf16.mxu0 0
        %485 = vmatpush2.bf16.msra.mxu0 0
        %486 = vmatprep.subr.bf16.mxu0 0
        %487 = vmatpush2.bf16.msra.mxu0 0
        %488 = vmatprep.subr.bf16.mxu0 0
        %489 = vmatpush2.bf16.msra.mxu0 0
        %490 = vmatprep.subr.bf16.mxu0 0
        %491 = vmatpush2.bf16.msra.mxu0 0
        %492 = vmatprep.subr.bf16.mxu0 0
        %493 = vmatpush2.bf16.msra.mxu0 %v462
        %494 = vmatprep.subr.bf16.mxu0 0
        %495 = vmatpush2.bf16.msra.mxu0 %v424
        %496 = vmatprep.mubr.bf16.mxu0 %v437
        %497 = vmatmul.mubr.bf16.gmra.mxu0 %v354
        %v498 = vpop.f32.mrf.mxu0
        %v499 = vadd.f32 0.0, %v498
        %v500 = vpop.f32.mrf.mxu0
        %v501 = vpop.f32.mrf.mxu0
        %v502 = vadd.f32 0.0, %v501
        %v503 = vpop.f32.mrf.mxu0
        %504 = vmatprep.mubr.bf16.mxu0 %v440
        %505 = vmatmul.mubr.bf16.gmra.mxu0 %v356
        %v506 = vpop.f32.mrf.mxu0
        %v507 = vadd.f32 0.0, %v506
        %v508 = vpop.f32.mrf.mxu0
        %v509 = vpop.f32.mrf.mxu0
        %v510 = vadd.f32 0.0, %v509
        %v511 = vpop.f32.mrf.mxu0
        %512 = vmatprep.mubr.bf16.mxu0 %v443
        %513 = vmatmul.mubr.bf16.gmra.mxu0 %v358
        %v514 = vpop.f32.mrf.mxu0
        %v515 = vadd.f32 0.0, %v514
        %v516 = vpop.f32.mrf.mxu0
        %v517 = vpop.f32.mrf.mxu0
        %v518 = vadd.f32 0.0, %v517
        %v519 = vpop.f32.mrf.mxu0
        %520 = vmatprep.mubr.bf16.mxu0 %v446
        %521 = vmatmul.mubr.bf16.gmra.mxu0 %v360
        %v522 = vpop.f32.mrf.mxu0
        %v523 = vadd.f32 0.0, %v522
        %v524 = vpop.f32.mrf.mxu0
        %v525 = vpop.f32.mrf.mxu0
        %v526 = vadd.f32 0.0, %v525
        %v527 = vpop.f32.mrf.mxu0
        %528 = vmatprep.mubr.bf16.mxu0 %v449
        %529 = vmatmul.mubr.bf16.gmra.mxu0 %v362
        %v530 = vpop.f32.mrf.mxu0
        %v531 = vadd.f32 0.0, %v530
        %v532 = vpop.f32.mrf.mxu0
        %v533 = vpop.f32.mrf.mxu0
        %v534 = vadd.f32 0.0, %v533
        %v535 = vpop.f32.mrf.mxu0
        %536 = vmatprep.mubr.bf16.mxu0 %v452
        %537 = vmatmul.mubr.bf16.gmra.mxu0 %v364
        %v538 = vpop.f32.mrf.mxu0
        %v539 = vadd.f32 0.0, %v538
        %v540 = vpop.f32.mrf.mxu0
        %v541 = vpop.f32.mrf.mxu0
        %v542 = vadd.f32 0.0, %v541
        %v543 = vpop.f32.mrf.mxu0
        %544 = vmatprep.mubr.bf16.mxu0 %v455
        %545 = vmatmul.mubr.bf16.gmra.mxu0 %v366
        %v546 = vpop.f32.mrf.mxu0
        %v547 = vadd.f32 0.0, %v546
        %v548 = vpop.f32.mrf.mxu0
        %v549 = vpop.f32.mrf.mxu0
        %v550 = vadd.f32 0.0, %v549
        %v551 = vpop.f32.mrf.mxu0
        %552 = vmatprep.mubr.bf16.mxu0 %v458
        %553 = vmatmul.mubr.bf16.gmra.mxu0 %v368
        %v554 = vpop.f32.mrf.mxu0
        %v555 = vadd.f32 0.0, %v554
        %v556 = vpop.f32.mrf.mxu0
        %v557 = vpop.f32.mrf.mxu0
        %v558 = vadd.f32 0.0, %v557
        %v559 = vpop.f32.mrf.mxu0
        %560 = vdwg.mxu0
        %v561 = vmax.f32 %v499, %v515
        %v562 = vmax.f32 %v502, %v518
        %v563 = vmax.f32 %v507, %v523
        %v564 = vmax.f32 %v510, %v526
        %v565 = vmax.f32 %v531, %v547
        %v566 = vmax.f32 %v534, %v550
        %v567 = vmax.f32 %v539, %v555
        %v568 = vmax.f32 %v542, %v558
        %v569 = vmax.f32 %v561, %v565
        %v570 = vmax.f32 %v562, %v566
        %v571 = vmax.f32 %v563, %v567
        %v572 = vmax.f32 %v564, %v568
        %v573 = vld [vmem:[%s2] sm:$0x1]
        %v575 = vlaneseq
        %v576 = vshrl.u32 %v575, 7
        %v577 = vsub.s32 0, %v576
        %v578 = vrot.slane %v573, %v577
        %v580 = vadd.f32 %v569, %v578
        %v581 = vadd.f32 %v570, %v578
        %v582 = vadd.f32 %v571, %v578
        %v583 = vadd.f32 %v572, %v578
        %v584 = vmax.f32 %v580, 0.0
        %v585 = vmax.f32 %v581, 0.0
        %v586 = vmax.f32 %v582, 0.0
        %v587 = vmax.f32 %v583, 0.0
        %v588 = vpack.c.bf16 %v585, %v584
        %v589 = vpack.c.bf16 %v587, %v586
        %v592 = vunpack.c.l.b16 %v588
        %v593 = vunpack.c.h.b16 %v588
        %v594 = vunpack.c.l.b16 %v589
        %v595 = vunpack.c.h.b16 %v589
        %v596 = vpack.c.b16 %v592, %v592
        %v597 = vpack.c.b16 %v593, %v593
        %v598 = vpack.c.b16 %v594, %v594
        %v599 = vpack.c.b16 %v595, %v595
        %vm604 = vcmask 125952
        %605 = vst.msk [vmem:[%s268] sm:$0xf] %vm604, %v596
        %606 = vst.msk [vmem:[%s268 + $0x4] sm:$0xf] %vm604, %v597
        %607 = vst.msk [vmem:[%s268 + $0x8] sm:$0xf] %vm604, %v598
        %608 = vst.msk [vmem:[%s268 + $0xc] sm:$0xf] %vm604, %v599
        %s609 = smul.u32 4, %s14
        %p610 = scmp.lt.s32.totalorder %s609, 7
        %s611 = scalar_select %p610, %s609, 7
        %s612 = smul.addr %s611, 4
        %s613 = scalar_lea.vmem %s3, %s612
        // Predicated region
        $region71: #{net_forward.4} parent=65 // pred_check
          %p614 = pneg %p100
        $region72: #{net_forward.4} parent=65 // pred_check_branch
          %616 = sbr.rel (%p614) target = $region74
        $region73: #{net_forward.4} parent=65 // pred_region
          %s617 = smul.u32 4, %s14
        $region74: #{net_forward.4} parent=65 // pred_fallthru
          _
      $region66: #{net_forward.4} parent=5 // pred_fallthru
        _
      %p618 = scmp.le.s32.totalorder 2, %s9
      // Predicated region
      $region75: #{net_forward.4} parent=5 // pred_check
        %p619 = pneg %p618
      $region76: #{net_forward.4} parent=5 // pred_check_branch
        %621 = sbr.rel (%p619) target = $region78
      $region77: #{net_forward.4} parent=5 // pred_region
        %s622 = ssub.s32 %s9, 2
        // Predicated region
        $region79: #{net_forward.4} parent=77 // pred_check
          %p623 = pneg %p106
        $region80: #{net_forward.4} parent=77 // pred_check_branch
          %625 = sbr.rel (%p623) target = $region82
        $region81: #{net_forward.4} parent=77 // pred_region
          %s626 = smul.u32 4, %s15
          %p627 = scmp.lt.s32.totalorder %s626, 7
          %s628 = scalar_select %p627, %s626, 7
          %s629 = smul.addr %s628, 4
          %s630 = scalar_lea.vmem %s3, %s629
        $region82: #{net_forward.4} parent=77 // pred_fallthru
          _
      $region78: #{net_forward.4} parent=5 // pred_fallthru
        _
    $region6: #{net_forward.4} parent=1 // loop_footer
      %s13 = sadd.s32 1, %s9
    $region7: #{net_forward.4} parent=1 // loop_footer_branch
      %8 = sbr.rel target = $region3
    $region8: #{net_forward.4} parent=1 // loop_exit
      _

// kernel: net_forward.5
$region0: #{net_forward.5}
  #allocation0 [shape = 'u32[]', space=smem, size = 0x4, offset = 0x4, fixed_abs, tag = 'smem constant byte address 0x4 - core index']
  #allocation1 [shape = 'u32[144,128]{1,0:T(1,128)}', space=vmem, size = 0x12000, scoped, tag = 'internal scratch']
  %s0 = inlined_call_operand.vmem [shape: bf16[16,400], index: 0, kind: input, shape index: {}]
  %s1 = inlined_call_operand.vmem [shape: bf16[400,128], index: 1, kind: input, shape index: {}]
  %s2 = inlined_call_operand.vmem [shape: f32[1,128], index: 2, kind: input, shape index: {}]
  %s3 = inlined_call_operand.vmem [shape: bf16[128,128], index: 3, kind: input, shape index: {}]
  %s4 = inlined_call_operand.vmem [shape: f32[1,128], index: 4, kind: input, shape index: {}]
  %s5 = inlined_call_operand.vmem [shape: bf16[128,128], index: 5, kind: input, shape index: {}]
  %s6 = inlined_call_operand.vmem [shape: f32[1,128], index: 6, kind: input, shape index: {}]
  %s7 = inlined_call_operand.vmem [shape: f32[16,128], index: 7, kind: output, shape index: {}]
  %s8 = sld [smem:[#allocation0]]
  $region38: #{net_forward.5} parent=0
    _
  %s10 = ssub.s32 1, %s8
  %s11 = scalar_select 0, %s10, %s8
  // Predicated region
  $region2: #{net_forward.5} parent=0 // pred_check
    _
  $region3: #{net_forward.5} parent=0 // pred_check_branch
    %13 = sbr.rel (0) target = $region5
  $region4: #{net_forward.5} parent=0 // pred_region
    _
  $region5: #{net_forward.5} parent=0 // pred_fallthru
    _
  // Predicated region
  $region6: #{net_forward.5} parent=0 // pred_check
    _
  $region7: #{net_forward.5} parent=0 // pred_check_branch
    %15 = sbr.rel (0) target = $region9
  $region8: #{net_forward.5} parent=0 // pred_region
    _
  $region9: #{net_forward.5} parent=0 // pred_fallthru
    _
  // Predicated region
  $region10: #{net_forward.5} parent=0 // pred_check
    _
  $region11: #{net_forward.5} parent=0 // pred_check_branch
    %17 = sbr.rel (0) target = $region13
  $region12: #{net_forward.5} parent=0 // pred_region
    _
  $region13: #{net_forward.5} parent=0 // pred_fallthru
    _
  // Predicated region
  $region14: #{net_forward.5} parent=0 // pred_check
    _
  $region15: #{net_forward.5} parent=0 // pred_check_branch
    %19 = sbr.rel (0) target = $region17
  $region16: #{net_forward.5} parent=0 // pred_region
    _
  $region17: #{net_forward.5} parent=0 // pred_fallthru
    _
  // Predicated region
  $region18: #{net_forward.5} parent=0 // pred_check
    _
  $region19: #{net_forward.5} parent=0 // pred_check_branch
    %21 = sbr.rel (0) target = $region21
  $region20: #{net_forward.5} parent=0 // pred_region
    _
  $region21: #{net_forward.5} parent=0 // pred_fallthru
    _
  // Predicated region
  $region22: #{net_forward.5} parent=0 // pred_check
    _
  $region23: #{net_forward.5} parent=0 // pred_check_branch
    %23 = sbr.rel (0) target = $region25
  $region24: #{net_forward.5} parent=0 // pred_region
    _
  $region25: #{net_forward.5} parent=0 // pred_fallthru
    _
  // Predicated region
  $region26: #{net_forward.5} parent=0 // pred_check
    _
  $region27: #{net_forward.5} parent=0 // pred_check_branch
    %25 = sbr.rel (0) target = $region29
  $region28: #{net_forward.5} parent=0 // pred_region
    _
  $region29: #{net_forward.5} parent=0 // pred_fallthru
    _
  %v27 = vld [vmem:[%s0] sm:$0xff]
  %v28 = vld [vmem:[%s0 + $0x8] sm:$0xff]
  %v29 = vld [vmem:[%s0 + $0x10] sm:$0xff]
  %v30 = vld [vmem:[%s0 + $0x18] sm:$0xff]
  %v31 = vld [vmem:[%s1] sm:$0xf]
  %v32 = vld [vmem:[%s1 + $0x4] sm:$0xf]
  %v33 = vld [vmem:[%s1 + $0x8] sm:$0xf]
  %v34 = vld [vmem:[%s1 + $0xc] sm:$0xf]
  %v35 = vld [vmem:[%s1 + $0x10] sm:$0xf]
  %v36 = vld [vmem:[%s1 + $0x14] sm:$0xf]
  %v37 = vld [vmem:[%s1 + $0x18] sm:$0xf]
  %v38 = vld [vmem:[%s1 + $0x1c] sm:$0xf]
  %v39 = vld [vmem:[%s1 + $0x20] sm:$0xf]
  %v40 = vld [vmem:[%s1 + $0x24] sm:$0xf]
  %v41 = vld [vmem:[%s1 + $0x28] sm:$0xf]
  %v42 = vld [vmem:[%s1 + $0x2c] sm:$0xf]
  %v43 = vld [vmem:[%s1 + $0x30] sm:$0xf]
  %v44 = vld [vmem:[%s1 + $0x34] sm:$0xf]
  %v45 = vld [vmem:[%s1 + $0x38] sm:$0xf]
  %v46 = vld [vmem:[%s1 + $0x3c] sm:$0xf]
  %v47 = vld [vmem:[%s1 + $0x40] sm:$0xf]
  %v48 = vld [vmem:[%s1 + $0x44] sm:$0xf]
  %v49 = vld [vmem:[%s1 + $0x48] sm:$0xf]
  %v50 = vld [vmem:[%s1 + $0x4c] sm:$0xf]
  %v51 = vld [vmem:[%s1 + $0x50] sm:$0xf]
  %v52 = vld [vmem:[%s1 + $0x54] sm:$0xf]
  %v53 = vld [vmem:[%s1 + $0x58] sm:$0xf]
  %v54 = vld [vmem:[%s1 + $0x5c] sm:$0xf]
  %v55 = vld [vmem:[%s1 + $0x60] sm:$0xf]
  %v56 = vld [vmem:[%s1 + $0x64] sm:$0xf]
  %v57 = vld [vmem:[%s1 + $0x68] sm:$0xf]
  %v58 = vld [vmem:[%s1 + $0x6c] sm:$0xf]
  %v59 = vld [vmem:[%s1 + $0x70] sm:$0xf]
  %v60 = vld [vmem:[%s1 + $0x74] sm:$0xf]
  %v61 = vld [vmem:[%s1 + $0x78] sm:$0xf]
  %v62 = vld [vmem:[%s1 + $0x7c] sm:$0xf]
  %v63 = vld [vmem:[%s1 + $0x80] sm:$0xf]
  %v64 = vld [vmem:[%s1 + $0x84] sm:$0xf]
  %v65 = vld [vmem:[%s1 + $0x88] sm:$0xf]
  %v66 = vld [vmem:[%s1 + $0x8c] sm:$0xf]
  %v67 = vld [vmem:[%s1 + $0x90] sm:$0xf]
  %v68 = vld [vmem:[%s1 + $0x94] sm:$0xf]
  %v69 = vld [vmem:[%s1 + $0x98] sm:$0xf]
  %v70 = vld [vmem:[%s1 + $0x9c] sm:$0xf]
  %v71 = vld [vmem:[%s1 + $0xa0] sm:$0xf]
  %v72 = vld [vmem:[%s1 + $0xa4] sm:$0xf]
  %v73 = vld [vmem:[%s1 + $0xa8] sm:$0xf]
  %v74 = vld [vmem:[%s1 + $0xac] sm:$0xf]
  %v75 = vld [vmem:[%s1 + $0xb0] sm:$0xf]
  %v76 = vld [vmem:[%s1 + $0xb4] sm:$0xf]
  %v77 = vld [vmem:[%s1 + $0xb8] sm:$0xf]
  %v78 = vld [vmem:[%s1 + $0xbc] sm:$0xf]
  %v79 = vld [vmem:[%s1 + $0xc0] sm:$0xf]
  %v80 = vld [vmem:[%s1 + $0xc4] sm:$0xf]
  %v81 = vld [vmem:[%s2] sm:$0x1]
  %v83 = vlaneseq
  %v84 = vshrl.u32 %v83, 7
  %v85 = vsub.s32 0, %v84
  %v86 = vrot.slane %v81, %v85
  %v92 = vunpack.c.l.b16 %v27
  %v93 = vunpack.c.h.b16 %v27
  %v94 = vunpack.c.l.b16 %v28
  %v95 = vunpack.c.h.b16 %v28
  %v96 = vunpack.c.l.b16 %v29
  %v97 = vunpack.c.h.b16 %v29
  %v98 = vunpack.c.l.b16 %v30
  %v99 = vunpack.c.h.b16 %v30
  %v100 = vpack.c.b16 %v96, %v92
  %v101 = vpack.c.b16 %v97, %v93
  %v102 = vpack.c.b16 %v98, %v94
  %v103 = vpack.c.b16 %v99, %v95
  %v157 = vunpack.c.l.b16 %v31
  %v158 = vunpack.c.l.b16 %v32
  %v159 = vunpack.c.l.b16 %v33
  %v160 = vunpack.c.l.b16 %v34
  %v161 = vunpack.c.l.b16 %v35
  %v162 = vunpack.c.l.b16 %v36
  %v163 = vunpack.c.l.b16 %v37
  %v164 = vunpack.c.l.b16 %v38
  %v165 = vunpack.c.l.b16 %v39
  %v166 = vunpack.c.l.b16 %v40
  %v167 = vunpack.c.l.b16 %v41
  %v168 = vunpack.c.l.b16 %v42
  %v169 = vunpack.c.l.b16 %v43
  %v170 = vunpack.c.l.b16 %v44
  %v171 = vunpack.c.l.b16 %v45
  %v172 = vunpack.c.l.b16 %v46
  %v173 = vunpack.c.l.b16 %v47
  %v174 = vunpack.c.l.b16 %v48
  %v175 = vunpack.c.l.b16 %v49
  %v176 = vunpack.c.l.b16 %v50
  %v177 = vunpack.c.l.b16 %v51
  %v178 = vunpack.c.l.b16 %v52
  %v179 = vunpack.c.l.b16 %v53
  %v180 = vunpack.c.l.b16 %v54
  %v181 = vunpack.c.l.b16 %v55
  %v182 = vunpack.c.l.b16 %v56
  %v183 = vunpack.c.l.b16 %v57
  %v184 = vunpack.c.l.b16 %v58
  %v185 = vunpack.c.l.b16 %v59
  %v186 = vunpack.c.l.b16 %v60
  %v187 = vunpack.c.l.b16 %v61
  %v188 = vunpack.c.l.b16 %v62
  %v189 = vunpack.c.l.b16 %v63
  %v190 = vunpack.c.l.b16 %v64
  %v191 = vunpack.c.l.b16 %v65
  %v192 = vunpack.c.l.b16 %v66
  %v193 = vunpack.c.l.b16 %v67
  %v194 = vunpack.c.l.b16 %v68
  %v195 = vunpack.c.l.b16 %v69
  %v196 = vunpack.c.l.b16 %v70
  %v197 = vunpack.c.l.b16 %v71
  %v198 = vunpack.c.l.b16 %v72
  %v199 = vunpack.c.l.b16 %v73
  %v200 = vunpack.c.l.b16 %v74
  %v201 = vunpack.c.l.b16 %v75
  %v202 = vunpack.c.l.b16 %v76
  %v203 = vunpack.c.l.b16 %v77
  %v204 = vunpack.c.l.b16 %v78
  %v205 = vunpack.c.l.b16 %v79
  %v206 = vunpack.c.l.b16 %v80
  %v207 = vpack.c.b16 %v158, %v157
  %v208 = vpack.c.b16 %v160, %v159
  %v209 = vpack.c.b16 %v162, %v161
  %v210 = vpack.c.b16 %v164, %v163
  %v211 = vpack.c.b16 %v166, %v165
  %v212 = vpack.c.b16 %v168, %v167
  %v213 = vpack.c.b16 %v170, %v169
  %v214 = vpack.c.b16 %v172, %v171
  %v215 = vpack.c.b16 %v174, %v173
  %v216 = vpack.c.b16 %v176, %v175
  %v217 = vpack.c.b16 %v178, %v177
  %v218 = vpack.c.b16 %v180, %v179
  %v219 = vpack.c.b16 %v182, %v181
  %v220 = vpack.c.b16 %v184, %v183
  %v221 = vpack.c.b16 %v186, %v185
  %v222 = vpack.c.b16 %v188, %v187
  %v223 = vpack.c.b16 %v190, %v189
  %v224 = vpack.c.b16 %v192, %v191
  %v225 = vpack.c.b16 %v194, %v193
  %v226 = vpack.c.b16 %v196, %v195
  %v227 = vpack.c.b16 %v198, %v197
  %v228 = vpack.c.b16 %v200, %v199
  %v229 = vpack.c.b16 %v202, %v201
  %v230 = vpack.c.b16 %v204, %v203
  %v231 = vpack.c.b16 %v206, %v205
  %vm257 = vcmask 130048
  %v259 = vsel %vm257, %v103, 0
  %261 = vmatprep.subr.bf16.mxu0 0
  %262 = vmatpush1.bf16.msra.mxu0 %v214
  %263 = vmatprep.subr.bf16.mxu0 0
  %264 = vmatpush1.bf16.msra.mxu0 %v213
  %265 = vmatprep.subr.bf16.mxu0 0
  %266 = vmatpush1.bf16.msra.mxu0 %v212
  %267 = vmatprep.subr.bf16.mxu0 0
  %268 = vmatpush1.bf16.msra.mxu0 %v211
  %269 = vmatprep.subr.bf16.mxu0 0
  %270 = vmatpush1.bf16.msra.mxu0 %v210
  %271 = vmatprep.subr.bf16.mxu0 0
  %272 = vmatpush1.bf16.msra.mxu0 %v209
  %273 = vmatprep.subr.bf16.mxu0 0
  %274 = vmatpush1.bf16.msra.mxu0 %v208
  %275 = vmatprep.subr.bf16.mxu0 0
  %276 = vmatpush1.bf16.msra.mxu0 %v207
  %277 = vmatprep.subr.bf16.mxu0 0
  %278 = vmatpush2.bf16.msra.mxu0 %v222
  %279 = vmatprep.subr.bf16.mxu0 0
  %280 = vmatpush2.bf16.msra.mxu0 %v221
  %281 = vmatprep.subr.bf16.mxu0 0
  %282 = vmatpush2.bf16.msra.mxu0 %v220
  %283 = vmatprep.subr.bf16.mxu0 0
  %284 = vmatpush2.bf16.msra.mxu0 %v219
  %285 = vmatprep.subr.bf16.mxu0 0
  %286 = vmatpush2.bf16.msra.mxu0 %v218
  %287 = vmatprep.subr.bf16.mxu0 0
  %288 = vmatpush2.bf16.msra.mxu0 %v217
  %289 = vmatprep.subr.bf16.mxu0 0
  %290 = vmatpush2.bf16.msra.mxu0 %v216
  %291 = vmatprep.subr.bf16.mxu0 0
  %292 = vmatpush2.bf16.msra.mxu0 %v215
  %293 = vmatprep.mubr.bf16.mxu0 %v101
  %294 = vmatmul.mubr.bf16.gmra.mxu0 %v100
  %v295 = vpop.f32.mrf.mxu0
  %v296 = vadd.f32 %v86, %v295
  %v297 = vpop.f32.mrf.mxu0
  %v298 = vpop.f32.mrf.mxu0
  %v299 = vadd.f32 %v86, %v298
  %v300 = vpop.f32.mrf.mxu0
  %301 = vdwg.mxu0
  %302 = vmatprep.subr.bf16.mxu0 0
  %303 = vmatpush1.bf16.msra.mxu0 %v230
  %304 = vmatprep.subr.bf16.mxu0 0
  %305 = vmatpush1.bf16.msra.mxu0 %v229
  %306 = vmatprep.subr.bf16.mxu0 0
  %307 = vmatpush1.bf16.msra.mxu0 %v228
  %308 = vmatprep.subr.bf16.mxu0 0
  %309 = vmatpush1.bf16.msra.mxu0 %v227
  %310 = vmatprep.subr.bf16.mxu0 0
  %311 = vmatpush1.bf16.msra.mxu0 %v226
  %312 = vmatprep.subr.bf16.mxu0 0
  %313 = vmatpush1.bf16.msra.mxu0 %v225
  %314 = vmatprep.subr.bf16.mxu0 0
  %315 = vmatpush1.bf16.msra.mxu0 %v224
  %316 = vmatprep.subr.bf16.mxu0 0
  %317 = vmatpush1.bf16.msra.mxu0 %v223
  %318 = vmatprep.subr.bf16.mxu0 0
  %319 = vmatpush2.bf16.msra.mxu0 0
  %320 = vmatprep.subr.bf16.mxu0 0
  %321 = vmatpush2.bf16.msra.mxu0 0
  %322 = vmatprep.subr.bf16.mxu0 0
  %323 = vmatpush2.bf16.msra.mxu0 0
  %324 = vmatprep.subr.bf16.mxu0 0
  %325 = vmatpush2.bf16.msra.mxu0 0
  %326 = vmatprep.subr.bf16.mxu0 0
  %327 = vmatpush2.bf16.msra.mxu0 0
  %328 = vmatprep.subr.bf16.mxu0 0
  %329 = vmatpush2.bf16.msra.mxu0 0
  %330 = vmatprep.subr.bf16.mxu0 0
  %331 = vmatpush2.bf16.msra.mxu0 0
  %332 = vmatprep.subr.bf16.mxu0 0
  %333 = vmatpush2.bf16.msra.mxu0 %v231
  %334 = vmatprep.mubr.bf16.mxu0 %v259
  %335 = vmatmul.mubr.bf16.gmra.mxu0 %v102
  %v336 = vpop.f32.mrf.mxu0
  %v337 = vadd.f32 %v296, %v336
  %v338 = vpop.f32.mrf.mxu0
  %v339 = vpop.f32.mrf.mxu0
  %v340 = vadd.f32 %v299, %v339
  %v341 = vpop.f32.mrf.mxu0
  %342 = vdwg.mxu0
  %v343 = vmax.f32 %v337, 0.0
  %v344 = vmax.f32 %v340, 0.0
  %v345 = vpack.c.bf16 %v344, %v343
  %v346 = vld [vmem:[%s3] sm:$0xf]
  %v347 = vld [vmem:[%s3 + $0x4] sm:$0xf]
  %v348 = vld [vmem:[%s3 + $0x8] sm:$0xf]
  %v349 = vld [vmem:[%s3 + $0xc] sm:$0xf]
  %v350 = vld [vmem:[%s3 + $0x10] sm:$0xf]
  %v351 = vld [vmem:[%s3 + $0x14] sm:$0xf]
  %v352 = vld [vmem:[%s3 + $0x18] sm:$0xf]
  %v353 = vld [vmem:[%s3 + $0x1c] sm:$0xf]
  %v354 = vld [vmem:[%s3 + $0x20] sm:$0xf]
  %v355 = vld [vmem:[%s3 + $0x24] sm:$0xf]
  %v356 = vld [vmem:[%s3 + $0x28] sm:$0xf]
  %v357 = vld [vmem:[%s3 + $0x2c] sm:$0xf]
  %v358 = vld [vmem:[%s3 + $0x30] sm:$0xf]
  %v359 = vld [vmem:[%s3 + $0x34] sm:$0xf]
  %v360 = vld [vmem:[%s3 + $0x38] sm:$0xf]
  %v361 = vld [vmem:[%s3 + $0x3c] sm:$0xf]
  %v362 = vld [vmem:[%s4] sm:$0x1]
  %v364 = vlaneseq
  %v365 = vshrl.u32 %v364, 7
  %v366 = vsub.s32 0, %v365
  %v367 = vrot.slane %v362, %v366
  %v385 = vunpack.c.l.b16 %v346
  %v386 = vunpack.c.l.b16 %v347
  %v387 = vunpack.c.l.b16 %v348
  %v388 = vunpack.c.l.b16 %v349
  %v389 = vunpack.c.l.b16 %v350
  %v390 = vunpack.c.l.b16 %v351
  %v391 = vunpack.c.l.b16 %v352
  %v392 = vunpack.c.l.b16 %v353
  %v393 = vunpack.c.l.b16 %v354
  %v394 = vunpack.c.l.b16 %v355
  %v395 = vunpack.c.l.b16 %v356
  %v396 = vunpack.c.l.b16 %v357
  %v397 = vunpack.c.l.b16 %v358
  %v398 = vunpack.c.l.b16 %v359
  %v399 = vunpack.c.l.b16 %v360
  %v400 = vunpack.c.l.b16 %v361
  %v401 = vpack.c.b16 %v386, %v385
  %v402 = vpack.c.b16 %v388, %v387
  %v403 = vpack.c.b16 %v390, %v389
  %v404 = vpack.c.b16 %v392, %v391
  %v405 = vpack.c.b16 %v394, %v393
  %v406 = vpack.c.b16 %v396, %v395
  %v407 = vpack.c.b16 %v398, %v397
  %v408 = vpack.c.b16 %v400, %v399
  %417 = vmatprep.subr.bf16.mxu0 0
  %418 = vmatpush1.bf16.msra.mxu0 %v408
  %419 = vmatprep.subr.bf16.mxu0 0
  %420 = vmatpush1.bf16.msra.mxu0 %v407
  %421 = vmatprep.subr.bf16.mxu0 0
  %422 = vmatpush1.bf16.msra.mxu0 %v406
  %423 = vmatprep.subr.bf16.mxu0 0
  %424 = vmatpush1.bf16.msra.mxu0 %v405
  %425 = vmatprep.subr.bf16.mxu0 0
  %426 = vmatpush1.bf16.msra.mxu0 %v404
  %427 = vmatprep.subr.bf16.mxu0 0
  %428 = vmatpush1.bf16.msra.mxu0 %v403
  %429 = vmatprep.subr.bf16.mxu0 0
  %430 = vmatpush1.bf16.msra.mxu0 %v402
  %431 = vmatprep.subr.bf16.mxu0 0
  %432 = vmatpush1.bf16.msra.mxu0 %v401
  %433 = vmatprep.subr.bf16.mxu0 0
  %434 = vmatpush2.bf16.msra.mxu0 0
  %435 = vmatprep.subr.bf16.mxu0 0
  %436 = vmatpush2.bf16.msra.mxu0 0
  %437 = vmatprep.subr.bf16.mxu0 0
  %438 = vmatpush2.bf16.msra.mxu0 0
  %439 = vmatprep.subr.bf16.mxu0 0
  %440 = vmatpush2.bf16.msra.mxu0 0
  %441 = vmatprep.subr.bf16.mxu0 0
  %442 = vmatpush2.bf16.msra.mxu0 0
  %443 = vmatprep.subr.bf16.mxu0 0
  %444 = vmatpush2.bf16.msra.mxu0 0
  %445 = vmatprep.subr.bf16.mxu0 0
  %446 = vmatpush2.bf16.msra.mxu0 0
  %447 = vmatprep.subr.bf16.mxu0 0
  %448 = vmatpush2.bf16.msra.mxu0 0
  %449 = vmatprep.mubr.bf16.mxu0 0
  %450 = vmatmul.mubr.bf16.gmra.mxu0 %v345
  %v451 = vpop.f32.mrf.mxu0
  %v452 = vadd.f32 %v367, %v451
  %v453 = vpop.f32.mrf.mxu0
  %v454 = vpop.f32.mrf.mxu0
  %v455 = vadd.f32 %v367, %v454
  %v456 = vpop.f32.mrf.mxu0
  %457 = vdwg.mxu0
  %v458 = vmax.f32 %v452, 0.0
  %v459 = vmax.f32 %v455, 0.0
  %v460 = vpack.c.bf16 %v459, %v458
  %v461 = vld [vmem:[%s5] sm:$0xf]
  %v462 = vld [vmem:[%s5 + $0x4] sm:$0xf]
  %v463 = vld [vmem:[%s5 + $0x8] sm:$0xf]
  %v464 = vld [vmem:[%s5 + $0xc] sm:$0xf]
  %v465 = vld [vmem:[%s5 + $0x10] sm:$0xf]
  %v466 = vld [vmem:[%s5 + $0x14] sm:$0xf]
  %v467 = vld [vmem:[%s5 + $0x18] sm:$0xf]
  %v468 = vld [vmem:[%s5 + $0x1c] sm:$0xf]
  %v469 = vld [vmem:[%s5 + $0x20] sm:$0xf]
  %v470 = vld [vmem:[%s5 + $0x24] sm:$0xf]
  %v471 = vld [vmem:[%s5 + $0x28] sm:$0xf]
  %v472 = vld [vmem:[%s5 + $0x2c] sm:$0xf]
  %v473 = vld [vmem:[%s5 + $0x30] sm:$0xf]
  %v474 = vld [vmem:[%s5 + $0x34] sm:$0xf]
  %v475 = vld [vmem:[%s5 + $0x38] sm:$0xf]
  %v476 = vld [vmem:[%s5 + $0x3c] sm:$0xf]
  %v477 = vld [vmem:[%s6] sm:$0x1]
  %v479 = vlaneseq
  %v480 = vshrl.u32 %v479, 7
  %v481 = vsub.s32 0, %v480
  %v482 = vrot.slane %v477, %v481
  %v500 = vunpack.c.l.b16 %v461
  %v501 = vunpack.c.l.b16 %v462
  %v502 = vunpack.c.l.b16 %v463
  %v503 = vunpack.c.l.b16 %v464
  %v504 = vunpack.c.l.b16 %v465
  %v505 = vunpack.c.l.b16 %v466
  %v506 = vunpack.c.l.b16 %v467
  %v507 = vunpack.c.l.b16 %v468
  %v508 = vunpack.c.l.b16 %v469
  %v509 = vunpack.c.l.b16 %v470
  %v510 = vunpack.c.l.b16 %v471
  %v511 = vunpack.c.l.b16 %v472
  %v512 = vunpack.c.l.b16 %v473
  %v513 = vunpack.c.l.b16 %v474
  %v514 = vunpack.c.l.b16 %v475
  %v515 = vunpack.c.l.b16 %v476
  %v516 = vpack.c.b16 %v501, %v500
  %v517 = vpack.c.b16 %v503, %v502
  %v518 = vpack.c.b16 %v505, %v504
  %v519 = vpack.c.b16 %v507, %v506
  %v520 = vpack.c.b16 %v509, %v508
  %v521 = vpack.c.b16 %v511, %v510
  %v522 = vpack.c.b16 %v513, %v512
  %v523 = vpack.c.b16 %v515, %v514
  %532 = vmatprep.subr.bf16.mxu0 0
  %533 = vmatpush1.bf16.msra.mxu0 %v523
  %534 = vmatprep.subr.bf16.mxu0 0
  %535 = vmatpush1.bf16.msra.mxu0 %v522
  %536 = vmatprep.subr.bf16.mxu0 0
  %537 = vmatpush1.bf16.msra.mxu0 %v521
  %538 = vmatprep.subr.bf16.mxu0 0
  %539 = vmatpush1.bf16.msra.mxu0 %v520
  %540 = vmatprep.subr.bf16.mxu0 0
  %541 = vmatpush1.bf16.msra.mxu0 %v519
  %542 = vmatprep.subr.bf16.mxu0 0
  %543 = vmatpush1.bf16.msra.mxu0 %v518
  %544 = vmatprep.subr.bf16.mxu0 0
  %545 = vmatpush1.bf16.msra.mxu0 %v517
  %546 = vmatprep.subr.bf16.mxu0 0
  %547 = vmatpush1.bf16.msra.mxu0 %v516
  %548 = vmatprep.subr.bf16.mxu0 0
  %549 = vmatpush2.bf16.msra.mxu0 0
  %550 = vmatprep.subr.bf16.mxu0 0
  %551 = vmatpush2.bf16.msra.mxu0 0
  %552 = vmatprep.subr.bf16.mxu0 0
  %553 = vmatpush2.bf16.msra.mxu0 0
  %554 = vmatprep.subr.bf16.mxu0 0
  %555 = vmatpush2.bf16.msra.mxu0 0
  %556 = vmatprep.subr.bf16.mxu0 0
  %557 = vmatpush2.bf16.msra.mxu0 0
  %558 = vmatprep.subr.bf16.mxu0 0
  %559 = vmatpush2.bf16.msra.mxu0 0
  %560 = vmatprep.subr.bf16.mxu0 0
  %561 = vmatpush2.bf16.msra.mxu0 0
  %562 = vmatprep.subr.bf16.mxu0 0
  %563 = vmatpush2.bf16.msra.mxu0 0
  %564 = vmatprep.mubr.bf16.mxu0 0
  %565 = vmatmul.mubr.bf16.gmra.mxu0 %v460
  %v566 = vpop.f32.mrf.mxu0
  %v567 = vadd.f32 %v482, %v566
  %v568 = vpop.f32.mrf.mxu0
  %v569 = vpop.f32.mrf.mxu0
  %v570 = vadd.f32 %v482, %v569
  %v571 = vpop.f32.mrf.mxu0
  %572 = vdwg.mxu0
  %573 = vst [vmem:[%s7] sm:$0xff] %v567
  %574 = vst [vmem:[%s7 + $0x8] sm:$0xff] %v570
  // Predicated region
  $region30: #{net_forward.5} parent=0 // pred_check
    _
  $region31: #{net_forward.5} parent=0 // pred_check_branch
    %576 = sbr.rel (0) target = $region33
  $region32: #{net_forward.5} parent=0 // pred_region
    _
  $region33: #{net_forward.5} parent=0 // pred_fallthru
    _
  // Predicated region
  $region34: #{net_forward.5} parent=0 // pred_check
    _
  $region35: #{net_forward.5} parent=0 // pred_check_branch
    %578 = sbr.rel (0) target = $region37
  $region36: #{net_forward.5} parent=0 // pred_region
    _
  $region37: #{net_forward.5} parent=0 // pred_fallthru
    _

</llo_original>
